<compile_context>
chip_gen: v6e
topology: v6e:2x2x1
jax: 0.10.0
libtpu: 0.0.40
codegen_flags: <defaults>
</compile_context>

<pallas_src>
import functools

import jax
import jax.numpy as jnp
from jax.experimental import pallas as pl
from jax.experimental.pallas import tpu as pltpu


# ----------------------------- Pallas kernel -------------------------------
def _downsample_kernel(x_ref, w_ref, s_ref, *rest, rh, rw, c_in, win, wo, t_ho):
    """One grid step: t_ho output rows of one batch element.

    x_ref: (C, t_ho, rh*win)    input band; lane index = kh*win + w
    w_ref: (rh, rw, C_out, C)   conv weight, rearranged once on the host
    s_ref: (win, rw*wo) bf16    0/1 selection; col kw*wo + ow picks w = ow*rw + kw
    optional b_ref: (C_out, 1)
    o_ref: (C_out, t_ho*wo)     lane-dense output block (flattened (t_ho, Wo))
    """
    if len(rest) == 2:
        b_ref, o_ref = rest
    else:
        b_ref = None
        (o_ref,) = rest

    # One-hot selection matrix: bf16 in HBM/VMEM (exact for 0/1), widened once.
    s_mat = s_ref[...].astype(jnp.float32)                  # (win, rw*wo)
    bias = b_ref[...] if b_ref is not None else None        # (C_out, 1)
    # Hoist the small per-(kh,kw) weight slices out of the row loop.
    w_sl = [[w_ref[kh, kw] for kw in range(rw)] for kh in range(rh)]  # (C_out, C)

    # ---- strided-column gather (lane de-interleave), batched over (C, t_ho).
    # One big MXU matmul per kh replaces t_ho small per-row gathers.  The
    # leading-dim merge (C, t_ho, win) -> (C*t_ho, win) is layout-free when
    # t_ho is a multiple of 8 (guaranteed by _pick_row_tile, else fall back).
    batch_rows = (t_ho % 8 == 0) or (t_ho == 1)
    pks = []
    if batch_rows:
        for kh in range(rh):
            xk = x_ref[:, :, kh * win:(kh + 1) * win]        # (C, t_ho, win)
            xk2 = xk.reshape(c_in * t_ho, win)
            pk = jnp.dot(xk2, s_mat, preferred_element_type=jnp.float32)
            pks.append(pk.reshape(c_in, t_ho, rw * wo))      # (C, t_ho, rw*wo)

    for r in range(t_ho):                                    # static unroll (bounded)
        acc = None
        for kh in range(rh):
            if batch_rows:
                pk_r = pks[kh][:, r, :]                      # (C, rw*wo)
            else:
                xk = x_ref[:, r, kh * win:(kh + 1) * win]    # (C, win)  ref slice
                pk_r = jnp.dot(xk, s_mat, preferred_element_type=jnp.float32)
            for kw in range(rw):
                pkk = pk_r[:, kw * wo:(kw + 1) * wo]         # (C, wo)
                contrib = jnp.dot(w_sl[kh][kw], pkk,
                                  preferred_element_type=jnp.float32)  # (C_out, wo)
                acc = contrib if acc is None else acc + contrib
        if bias is not None:
            acc = acc + bias                                 # broadcast over lanes
        # Lane-dense store: row r occupies lanes [r*wo, (r+1)*wo) of the block.
        o_ref[:, r * wo:(r + 1) * wo] = acc.astype(o_ref.dtype)


# ----------------------------- tiling helpers ------------------------------
def _pick_row_tile(ho, wo, c_in, rh, win, n_batch, itemsize=4,
                   max_block_bytes=8 * 2**20, max_rows=64):
    """Pick t_ho (output rows per grid step).

    Constraints for t_ho < Ho (BlockSpec (8,128) rule + VMEM budget):
      * Ho % t_ho == 0
      * t_ho % 8 == 0                  (input block second-to-last dim)
      * (t_ho * Wo) % 128 == 0         (lane-dense output block last dim)
      * C * t_ho * rh * Win * itemsize <= max_block_bytes  (per pipeline buffer)
    Preference: largest admissible (bounded unroll); if N == 1, prefer >= 2 grid
    steps along the row axis so both v7x TensorCores get work.
    Fallback: t_ho = Ho (full-extent blocks are always legal).
    """
    def xbytes(t):
        return c_in * t * rh * win * itemsize

    cands = [t for t in range(8, min(ho - 1, max_rows) + 1, 8)
             if ho % t == 0 and (t * wo) % 128 == 0
             and xbytes(t) <= max_block_bytes]
    if n_batch == 1:
        multi = [t for t in cands if ho // t >= 2]
        if multi:
            cands = multi
    if cands:
        return max(cands)
    # TODO(synk): very large C*Win with awkward Ho needs a W-axis grid split.
    return ho


# ------------------------------- wrapper ------------------------------------
def _downsample_conv_2d(x, weight, bias, ratios):
    """x: (N, C, H, W) NCHW, weight: (C_out, C, rh, rw), bias: (C_out,) or None."""
    N, C, H, Win = x.shape
    C_out = weight.shape[0]
    rh, rw = ratios
    Ho, Wo = H // rh, Win // rw
    isz = x.dtype.itemsize
    t_ho = _pick_row_tile(Ho, Wo, C, rh, Win, N, itemsize=isz)

    # Free contiguous reshape: (N, C, H, W) -> (N, C, Ho, rh*W).
    xr = x.reshape(N, C, Ho, rh * Win)

    # Weight (C_out, C, rh, rw) -> (rh, rw, C_out, C): tiny, once per call.
    w_r = jnp.transpose(weight, (2, 3, 0, 1))

    # 0/1 selection matrix (bf16 is exact for one-hot): column kw*Wo + ow picks
    # input column ow*rw + kw.
    w_idx = jnp.arange(Win)
    cols = (w_idx % rw) * Wo + (w_idx // rw)
    s_mat = jax.nn.one_hot(cols, rw * Wo, dtype=jnp.bfloat16)    # (Win, rw*Wo)

    kernel = functools.partial(_downsample_kernel, rh=rh, rw=rw, c_in=C,
                               win=Win, wo=Wo, t_ho=t_ho)

    in_specs = [
        pl.BlockSpec((None, C, t_ho, rh * Win), lambda n, i: (n, 0, i, 0)),
        pl.BlockSpec((rh, rw, C_out, C), lambda n, i: (0, 0, 0, 0)),
        pl.BlockSpec((Win, rw * Wo), lambda n, i: (0, 0)),
    ]
    args = [xr, w_r, s_mat]
    if bias is not None:
        in_specs.append(pl.BlockSpec((C_out, 1), lambda n, i: (0, 0)))
        args.append(bias.reshape(C_out, 1).astype(x.dtype))

    # Explicit VMEM budget from the block sizes (double-buffered) with headroom.
    x_blk = C * t_ho * rh * Win * isz
    o_blk = C_out * t_ho * Wo * isz
    s_blk = Win * rw * Wo * 2
    w_blk = rh * rw * C_out * C * isz
    b_blk = C_out * isz
    vmem_limit = int(min(max(2 * (x_blk + o_blk + s_blk + w_blk + b_blk) * 1.5,
                             32 * 2**20), 128 * 2**20))

    out_flat = pl.pallas_call(
        kernel,
        out_shape=jax.ShapeDtypeStruct((N, C_out, Ho * Wo), x.dtype),
        grid_spec=pltpu.PrefetchScalarGridSpec(
            num_scalar_prefetch=0,
            grid=(N, Ho // t_ho),
            in_specs=in_specs,
            # Lane-dense output block: last dim t_ho*Wo (multiple of 128 or full).
            out_specs=pl.BlockSpec((None, C_out, t_ho * Wo),
                                   lambda n, i: (n, 0, i)),
        ),
        compiler_params=pltpu.CompilerParams(
            dimension_semantics=("parallel", "parallel"),
            vmem_limit_bytes=vmem_limit),
    )(*args)

    # Free reshape back to NCHW.
    return out_flat.reshape(N, C_out, Ho, Wo)


# ----------------------------- Module wrapper ------------------------------
class DownsampleConv:
    """JAX/Pallas equivalent of the PyTorch DownsampleConv (2D case).

    Forward: strided Conv2d with kernel_size = stride = ratios, padding = 0.
    """

    def __init__(self, in_channels, out_channels, spatial_resolution, ratios,
                 case=2, use_bias=True, dtype=jnp.float32, key=None):
        if case != 2:
            raise NotImplementedError("this Pallas kernel implements the 2D case")
        if len(spatial_resolution) != 2 or len(ratios) != 2:
            raise ValueError("2D case expects 2 spatial dims and 2 ratios")
        if len(spatial_resolution) + 2 <= len(ratios):
            raise ValueError("inputs must have at least 1 more dim than ratios")
        if not all(s % r == 0 for s, r in zip(spatial_resolution, ratios)):
            raise ValueError("spatial resolution must divide the downsampling ratios")

        self.in_channels = in_channels
        self.out_channels = out_channels
        self.ratios = tuple(ratios)
        self.use_bias = use_bias
        self.dtype = dtype

        if key is None:
            key = jax.random.PRNGKey(0)
        rh, rw = self.ratios
        fan_in = in_channels * rh * rw
        # Deterministic init mimicking kaiming_uniform_(a=sqrt(5)):
        # uniform in [-1/sqrt(fan_in), 1/sqrt(fan_in)].
        bound = 1.0 / jnp.sqrt(jnp.float32(fan_in))
        self.weight = jax.random.uniform(
            key, (out_channels, in_channels, rh, rw),
            minval=-bound, maxval=bound, dtype=dtype)
        # bias_init = zeros_ (only materialized when use_bias=True)
        self.bias = jnp.zeros((out_channels,), dtype=dtype) if use_bias else None

    def __call__(self, x):
        # x: (N, C_in, H, W) NCHW, matching PyTorch; returns (N, C_out, Ho, Wo).
        return _downsample_conv_2d(
            x, self.weight, self.bias if self.use_bias else None, self.ratios)


# ------------------------------- Example -----------------------------------
if __name__ == "__main__":
    key = jax.random.PRNGKey(0)
    k_x, k_w, k_b = jax.random.split(key, 3)

    N, C_in, H, W = 2, 4, 16, 16
    C_out = 8
    ratios = (2, 2)

    x = jax.random.normal(k_x, (N, C_in, H, W), dtype=jnp.float32)

    # Bias path (parameter init is zeros_, but exercise a non-trivial bias).
    layer = DownsampleConv(C_in, C_out, (H, W), ratios, case=2, use_bias=True,
                           key=k_w)
    layer.bias = 0.1 * jax.random.normal(k_b, (C_out,), dtype=jnp.float32)

    out = jax.block_until_ready(layer(x))

    ref = jax.lax.conv_general_dilated(
        x, layer.weight, window_strides=ratios, padding="VALID",
        dimension_numbers=("NCHW", "OIHW", "NCHW"))
    ref = ref + layer.bias.reshape(1, C_out, 1, 1)

    assert out.shape == (N, C_out, H // ratios[0], W // ratios[1])
    assert jnp.allclose(out, ref, atol=1e-5, rtol=1e-5), \
        float(jnp.max(jnp.abs(out - ref)))

    # No-bias path (Conv2d(bias=False) semantics).
    layer_nb = DownsampleConv(C_in, C_out, (H, W), ratios, case=2,
                              use_bias=False, key=k_w)
    out_nb = jax.block_until_ready(layer_nb(x))
    ref_nb = jax.lax.conv_general_dilated(
        x, layer_nb.weight, window_strides=ratios, padding="VALID",
        dimension_numbers=("NCHW", "OIHW", "NCHW"))
    assert jnp.allclose(out_nb, ref_nb, atol=1e-5, rtol=1e-5), \
        float(jnp.max(jnp.abs(out_nb - ref_nb)))

    print("KERNEL_OK")
</pallas_src>

<mosaic_0001>
module attributes {stable_mosaic.version = 11 : i64} {
  func.func @_downsample_kernel(%arg0: i32, %arg1: i32, %arg2: memref<1x4x8x32xf32, #tpu.memory_space<vmem>>, %arg3: memref<2x2x8x4xf32, #tpu.memory_space<vmem>>, %arg4: memref<16x16xbf16, #tpu.memory_space<vmem>>, %arg5: memref<8x1xf32, #tpu.memory_space<vmem>>, %arg6: memref<1x8x64xf32, #tpu.memory_space<vmem>>) attributes {dimension_semantics = [#tpu.dimension_semantics<parallel>, #tpu.dimension_semantics<parallel>], iteration_bounds = array<i64: 2, 1>, scalar_prefetch = 0 : i64, scratch_operands = 0 : i64, tpu.core_type = #tpu.core_type<tc>, window_params = [{transform_indices = @transform_0, window_bounds = array<i64: 1, 4, 8, 32>}, {pipeline_mode = #tpu.pipeline_mode<synchronous>, transform_indices = @transform_1, window_bounds = array<i64: 2, 2, 8, 4>}, {pipeline_mode = #tpu.pipeline_mode<synchronous>, transform_indices = @transform_2, window_bounds = array<i64: 16, 16>}, {pipeline_mode = #tpu.pipeline_mode<synchronous>, transform_indices = @transform_3, window_bounds = array<i64: 8, 1>}, {transform_indices = @transform_4, window_bounds = array<i64: 1, 8, 64>}]} {
    %c0 = arith.constant 0 : index
    %c0_0 = arith.constant 0 : index
    %0 = vector.load %arg4[%c0, %c0_0] : memref<16x16xbf16, #tpu.memory_space<vmem>>, vector<16x16xbf16>
    %1 = arith.extf %0 : vector<16x16xbf16> to vector<16x16xf32>
    %c0_1 = arith.constant 0 : index
    %c0_2 = arith.constant 0 : index
    %2 = vector.load %arg5[%c0_1, %c0_2] : memref<8x1xf32, #tpu.memory_space<vmem>>, vector<8x1xf32>
    %c0_3 = arith.constant 0 : index
    %c0_4 = arith.constant 0 : index
    %c0_5 = arith.constant 0 : index
    %c0_6 = arith.constant 0 : index
    %3 = vector.load %arg3[%c0_3, %c0_4, %c0_5, %c0_6] : memref<2x2x8x4xf32, #tpu.memory_space<vmem>>, vector<1x1x8x4xf32>
    %4 = vector.shape_cast %3 : vector<1x1x8x4xf32> to vector<8x4xf32>
    %c0_7 = arith.constant 0 : index
    %c1 = arith.constant 1 : index
    %c0_8 = arith.constant 0 : index
    %c0_9 = arith.constant 0 : index
    %5 = vector.load %arg3[%c0_7, %c1, %c0_8, %c0_9] : memref<2x2x8x4xf32, #tpu.memory_space<vmem>>, vector<1x1x8x4xf32>
    %6 = vector.shape_cast %5 : vector<1x1x8x4xf32> to vector<8x4xf32>
    %c1_10 = arith.constant 1 : index
    %c0_11 = arith.constant 0 : index
    %c0_12 = arith.constant 0 : index
    %c0_13 = arith.constant 0 : index
    %7 = vector.load %arg3[%c1_10, %c0_11, %c0_12, %c0_13] : memref<2x2x8x4xf32, #tpu.memory_space<vmem>>, vector<1x1x8x4xf32>
    %8 = vector.shape_cast %7 : vector<1x1x8x4xf32> to vector<8x4xf32>
    %c1_14 = arith.constant 1 : index
    %c1_15 = arith.constant 1 : index
    %c0_16 = arith.constant 0 : index
    %c0_17 = arith.constant 0 : index
    %9 = vector.load %arg3[%c1_14, %c1_15, %c0_16, %c0_17] : memref<2x2x8x4xf32, #tpu.memory_space<vmem>>, vector<1x1x8x4xf32>
    %10 = vector.shape_cast %9 : vector<1x1x8x4xf32> to vector<8x4xf32>
    %c0_18 = arith.constant 0 : index
    %c0_19 = arith.constant 0 : index
    %c0_20 = arith.constant 0 : index
    %c0_21 = arith.constant 0 : index
    %11 = vector.load %arg2[%c0_18, %c0_19, %c0_20, %c0_21] : memref<1x4x8x32xf32, #tpu.memory_space<vmem>>, vector<1x4x8x16xf32>
    %12 = vector.shape_cast %11 : vector<1x4x8x16xf32> to vector<4x8x16xf32>
    %13 = vector.shape_cast %12 : vector<4x8x16xf32> to vector<32x16xf32>
    %cst = arith.constant dense<0.000000e+00> : vector<32x16xf32>
    %14 = tpu.matmul %13, %1, %cst {dimension_numbers = #tpu.dot_dimension_numbers<[1], [0], [0], [1], [0, 0, 1, 1], [], []>} : vector<32x16xf32>, vector<16x16xf32>, vector<32x16xf32> -> vector<32x16xf32>
    %15 = vector.shape_cast %14 : vector<32x16xf32> to vector<4x8x16xf32>
    %c0_22 = arith.constant 0 : index
    %c0_23 = arith.constant 0 : index
    %c0_24 = arith.constant 0 : index
    %c16 = arith.constant 16 : index
    %16 = vector.load %arg2[%c0_22, %c0_23, %c0_24, %c16] : memref<1x4x8x32xf32, #tpu.memory_space<vmem>>, vector<1x4x8x16xf32>
    %17 = vector.shape_cast %16 : vector<1x4x8x16xf32> to vector<4x8x16xf32>
    %18 = vector.shape_cast %17 : vector<4x8x16xf32> to vector<32x16xf32>
    %cst_25 = arith.constant dense<0.000000e+00> : vector<32x16xf32>
    %19 = tpu.matmul %18, %1, %cst_25 {dimension_numbers = #tpu.dot_dimension_numbers<[1], [0], [0], [1], [0, 0, 1, 1], [], []>} : vector<32x16xf32>, vector<16x16xf32>, vector<32x16xf32> -> vector<32x16xf32>
    %20 = vector.shape_cast %19 : vector<32x16xf32> to vector<4x8x16xf32>
    %21 = vector.extract_strided_slice %15 {offsets = [0, 0, 0], sizes = [4, 1, 16], strides = [1, 1, 1]} : vector<4x8x16xf32> to vector<4x1x16xf32>
    %22 = vector.shape_cast %21 : vector<4x1x16xf32> to vector<4x16xf32>
    %23 = vector.extract_strided_slice %22 {offsets = [0, 0], sizes = [4, 8], strides = [1, 1]} : vector<4x16xf32> to vector<4x8xf32>
    %cst_26 = arith.constant dense<0.000000e+00> : vector<8x8xf32>
    %24 = tpu.matmul %4, %23, %cst_26 {dimension_numbers = #tpu.dot_dimension_numbers<[1], [0], [0], [1], [0, 0, 1, 1], [], []>} : vector<8x4xf32>, vector<4x8xf32>, vector<8x8xf32> -> vector<8x8xf32>
    %25 = vector.extract_strided_slice %22 {offsets = [0, 8], sizes = [4, 8], strides = [1, 1]} : vector<4x16xf32> to vector<4x8xf32>
    %cst_27 = arith.constant dense<0.000000e+00> : vector<8x8xf32>
    %26 = tpu.matmul %6, %25, %cst_27 {dimension_numbers = #tpu.dot_dimension_numbers<[1], [0], [0], [1], [0, 0, 1, 1], [], []>} : vector<8x4xf32>, vector<4x8xf32>, vector<8x8xf32> -> vector<8x8xf32>
    %27 = arith.addf %24, %26 : vector<8x8xf32>
    %28 = vector.extract_strided_slice %20 {offsets = [0, 0, 0], sizes = [4, 1, 16], strides = [1, 1, 1]} : vector<4x8x16xf32> to vector<4x1x16xf32>
    %29 = vector.shape_cast %28 : vector<4x1x16xf32> to vector<4x16xf32>
    %30 = vector.extract_strided_slice %29 {offsets = [0, 0], sizes = [4, 8], strides = [1, 1]} : vector<4x16xf32> to vector<4x8xf32>
    %cst_28 = arith.constant dense<0.000000e+00> : vector<8x8xf32>
    %31 = tpu.matmul %8, %30, %cst_28 {dimension_numbers = #tpu.dot_dimension_numbers<[1], [0], [0], [1], [0, 0, 1, 1], [], []>} : vector<8x4xf32>, vector<4x8xf32>, vector<8x8xf32> -> vector<8x8xf32>
    %32 = arith.addf %27, %31 : vector<8x8xf32>
    %33 = vector.extract_strided_slice %29 {offsets = [0, 8], sizes = [4, 8], strides = [1, 1]} : vector<4x16xf32> to vector<4x8xf32>
    %cst_29 = arith.constant dense<0.000000e+00> : vector<8x8xf32>
    %34 = tpu.matmul %10, %33, %cst_29 {dimension_numbers = #tpu.dot_dimension_numbers<[1], [0], [0], [1], [0, 0, 1, 1], [], []>} : vector<8x4xf32>, vector<4x8xf32>, vector<8x8xf32> -> vector<8x8xf32>
    %35 = arith.addf %32, %34 : vector<8x8xf32>
    %36 = vector.broadcast %2 : vector<8x1xf32> to vector<8x8xf32>
    %37 = arith.addf %35, %36 : vector<8x8xf32>
    %c0_30 = arith.constant 0 : index
    %c0_31 = arith.constant 0 : index
    %c0_32 = arith.constant 0 : index
    %38 = vector.load %arg6[%c0_30, %c0_31, %c0_32] : memref<1x8x64xf32, #tpu.memory_space<vmem>>, vector<1x8x8xf32>
    %39 = vector.shape_cast %38 : vector<1x8x8xf32> to vector<8x8xf32>
    %40 = vector.shape_cast %37 : vector<8x8xf32> to vector<1x8x8xf32>
    tpu.vector_store %arg6[%c0_30, %c0_31, %c0_32], %40 {strides = array<i32>} : memref<1x8x64xf32, #tpu.memory_space<vmem>>, vector<1x8x8xf32>,
    %41 = vector.extract_strided_slice %15 {offsets = [0, 1, 0], sizes = [4, 1, 16], strides = [1, 1, 1]} : vector<4x8x16xf32> to vector<4x1x16xf32>
    %42 = vector.shape_cast %41 : vector<4x1x16xf32> to vector<4x16xf32>
    %43 = vector.extract_strided_slice %42 {offsets = [0, 0], sizes = [4, 8], strides = [1, 1]} : vector<4x16xf32> to vector<4x8xf32>
    %cst_33 = arith.constant dense<0.000000e+00> : vector<8x8xf32>
    %44 = tpu.matmul %4, %43, %cst_33 {dimension_numbers = #tpu.dot_dimension_numbers<[1], [0], [0], [1], [0, 0, 1, 1], [], []>} : vector<8x4xf32>, vector<4x8xf32>, vector<8x8xf32> -> vector<8x8xf32>
    %45 = vector.extract_strided_slice %42 {offsets = [0, 8], sizes = [4, 8], strides = [1, 1]} : vector<4x16xf32> to vector<4x8xf32>
    %cst_34 = arith.constant dense<0.000000e+00> : vector<8x8xf32>
    %46 = tpu.matmul %6, %45, %cst_34 {dimension_numbers = #tpu.dot_dimension_numbers<[1], [0], [0], [1], [0, 0, 1, 1], [], []>} : vector<8x4xf32>, vector<4x8xf32>, vector<8x8xf32> -> vector<8x8xf32>
    %47 = arith.addf %44, %46 : vector<8x8xf32>
    %48 = vector.extract_strided_slice %20 {offsets = [0, 1, 0], sizes = [4, 1, 16], strides = [1, 1, 1]} : vector<4x8x16xf32> to vector<4x1x16xf32>
    %49 = vector.shape_cast %48 : vector<4x1x16xf32> to vector<4x16xf32>
    %50 = vector.extract_strided_slice %49 {offsets = [0, 0], sizes = [4, 8], strides = [1, 1]} : vector<4x16xf32> to vector<4x8xf32>
    %cst_35 = arith.constant dense<0.000000e+00> : vector<8x8xf32>
    %51 = tpu.matmul %8, %50, %cst_35 {dimension_numbers = #tpu.dot_dimension_numbers<[1], [0], [0], [1], [0, 0, 1, 1], [], []>} : vector<8x4xf32>, vector<4x8xf32>, vector<8x8xf32> -> vector<8x8xf32>
    %52 = arith.addf %47, %51 : vector<8x8xf32>
    %53 = vector.extract_strided_slice %49 {offsets = [0, 8], sizes = [4, 8], strides = [1, 1]} : vector<4x16xf32> to vector<4x8xf32>
    %cst_36 = arith.constant dense<0.000000e+00> : vector<8x8xf32>
    %54 = tpu.matmul %10, %53, %cst_36 {dimension_numbers = #tpu.dot_dimension_numbers<[1], [0], [0], [1], [0, 0, 1, 1], [], []>} : vector<8x4xf32>, vector<4x8xf32>, vector<8x8xf32> -> vector<8x8xf32>
    %55 = arith.addf %52, %54 : vector<8x8xf32>
    %56 = vector.broadcast %2 : vector<8x1xf32> to vector<8x8xf32>
    %57 = arith.addf %55, %56 : vector<8x8xf32>
    %c0_37 = arith.constant 0 : index
    %c0_38 = arith.constant 0 : index
    %c8 = arith.constant 8 : index
    %58 = vector.load %arg6[%c0_37, %c0_38, %c8] : memref<1x8x64xf32, #tpu.memory_space<vmem>>, vector<1x8x8xf32>
    %59 = vector.shape_cast %58 : vector<1x8x8xf32> to vector<8x8xf32>
    %60 = vector.shape_cast %57 : vector<8x8xf32> to vector<1x8x8xf32>
    tpu.vector_store %arg6[%c0_37, %c0_38, %c8], %60 {strides = array<i32>} : memref<1x8x64xf32, #tpu.memory_space<vmem>>, vector<1x8x8xf32>,
    %61 = vector.extract_strided_slice %15 {offsets = [0, 2, 0], sizes = [4, 1, 16], strides = [1, 1, 1]} : vector<4x8x16xf32> to vector<4x1x16xf32>
    %62 = vector.shape_cast %61 : vector<4x1x16xf32> to vector<4x16xf32>
    %63 = vector.extract_strided_slice %62 {offsets = [0, 0], sizes = [4, 8], strides = [1, 1]} : vector<4x16xf32> to vector<4x8xf32>
    %cst_39 = arith.constant dense<0.000000e+00> : vector<8x8xf32>
    %64 = tpu.matmul %4, %63, %cst_39 {dimension_numbers = #tpu.dot_dimension_numbers<[1], [0], [0], [1], [0, 0, 1, 1], [], []>} : vector<8x4xf32>, vector<4x8xf32>, vector<8x8xf32> -> vector<8x8xf32>
    %65 = vector.extract_strided_slice %62 {offsets = [0, 8], sizes = [4, 8], strides = [1, 1]} : vector<4x16xf32> to vector<4x8xf32>
    %cst_40 = arith.constant dense<0.000000e+00> : vector<8x8xf32>
    %66 = tpu.matmul %6, %65, %cst_40 {dimension_numbers = #tpu.dot_dimension_numbers<[1], [0], [0], [1], [0, 0, 1, 1], [], []>} : vector<8x4xf32>, vector<4x8xf32>, vector<8x8xf32> -> vector<8x8xf32>
    %67 = arith.addf %64, %66 : vector<8x8xf32>
    %68 = vector.extract_strided_slice %20 {offsets = [0, 2, 0], sizes = [4, 1, 16], strides = [1, 1, 1]} : vector<4x8x16xf32> to vector<4x1x16xf32>
    %69 = vector.shape_cast %68 : vector<4x1x16xf32> to vector<4x16xf32>
    %70 = vector.extract_strided_slice %69 {offsets = [0, 0], sizes = [4, 8], strides = [1, 1]} : vector<4x16xf32> to vector<4x8xf32>
    %cst_41 = arith.constant dense<0.000000e+00> : vector<8x8xf32>
    %71 = tpu.matmul %8, %70, %cst_41 {dimension_numbers = #tpu.dot_dimension_numbers<[1], [0], [0], [1], [0, 0, 1, 1], [], []>} : vector<8x4xf32>, vector<4x8xf32>, vector<8x8xf32> -> vector<8x8xf32>
    %72 = arith.addf %67, %71 : vector<8x8xf32>
    %73 = vector.extract_strided_slice %69 {offsets = [0, 8], sizes = [4, 8], strides = [1, 1]} : vector<4x16xf32> to vector<4x8xf32>
    %cst_42 = arith.constant dense<0.000000e+00> : vector<8x8xf32>
    %74 = tpu.matmul %10, %73, %cst_42 {dimension_numbers = #tpu.dot_dimension_numbers<[1], [0], [0], [1], [0, 0, 1, 1], [], []>} : vector<8x4xf32>, vector<4x8xf32>, vector<8x8xf32> -> vector<8x8xf32>
    %75 = arith.addf %72, %74 : vector<8x8xf32>
    %76 = vector.broadcast %2 : vector<8x1xf32> to vector<8x8xf32>
    %77 = arith.addf %75, %76 : vector<8x8xf32>
    %c0_43 = arith.constant 0 : index
    %c0_44 = arith.constant 0 : index
    %c16_45 = arith.constant 16 : index
    %78 = vector.load %arg6[%c0_43, %c0_44, %c16_45] : memref<1x8x64xf32, #tpu.memory_space<vmem>>, vector<1x8x8xf32>
    %79 = vector.shape_cast %78 : vector<1x8x8xf32> to vector<8x8xf32>
    %80 = vector.shape_cast %77 : vector<8x8xf32> to vector<1x8x8xf32>
    tpu.vector_store %arg6[%c0_43, %c0_44, %c16_45], %80 {strides = array<i32>} : memref<1x8x64xf32, #tpu.memory_space<vmem>>, vector<1x8x8xf32>,
    %81 = vector.extract_strided_slice %15 {offsets = [0, 3, 0], sizes = [4, 1, 16], strides = [1, 1, 1]} : vector<4x8x16xf32> to vector<4x1x16xf32>
    %82 = vector.shape_cast %81 : vector<4x1x16xf32> to vector<4x16xf32>
    %83 = vector.extract_strided_slice %82 {offsets = [0, 0], sizes = [4, 8], strides = [1, 1]} : vector<4x16xf32> to vector<4x8xf32>
    %cst_46 = arith.constant dense<0.000000e+00> : vector<8x8xf32>
    %84 = tpu.matmul %4, %83, %cst_46 {dimension_numbers = #tpu.dot_dimension_numbers<[1], [0], [0], [1], [0, 0, 1, 1], [], []>} : vector<8x4xf32>, vector<4x8xf32>, vector<8x8xf32> -> vector<8x8xf32>
    %85 = vector.extract_strided_slice %82 {offsets = [0, 8], sizes = [4, 8], strides = [1, 1]} : vector<4x16xf32> to vector<4x8xf32>
    %cst_47 = arith.constant dense<0.000000e+00> : vector<8x8xf32>
    %86 = tpu.matmul %6, %85, %cst_47 {dimension_numbers = #tpu.dot_dimension_numbers<[1], [0], [0], [1], [0, 0, 1, 1], [], []>} : vector<8x4xf32>, vector<4x8xf32>, vector<8x8xf32> -> vector<8x8xf32>
    %87 = arith.addf %84, %86 : vector<8x8xf32>
    %88 = vector.extract_strided_slice %20 {offsets = [0, 3, 0], sizes = [4, 1, 16], strides = [1, 1, 1]} : vector<4x8x16xf32> to vector<4x1x16xf32>
    %89 = vector.shape_cast %88 : vector<4x1x16xf32> to vector<4x16xf32>
    %90 = vector.extract_strided_slice %89 {offsets = [0, 0], sizes = [4, 8], strides = [1, 1]} : vector<4x16xf32> to vector<4x8xf32>
    %cst_48 = arith.constant dense<0.000000e+00> : vector<8x8xf32>
    %91 = tpu.matmul %8, %90, %cst_48 {dimension_numbers = #tpu.dot_dimension_numbers<[1], [0], [0], [1], [0, 0, 1, 1], [], []>} : vector<8x4xf32>, vector<4x8xf32>, vector<8x8xf32> -> vector<8x8xf32>
    %92 = arith.addf %87, %91 : vector<8x8xf32>
    %93 = vector.extract_strided_slice %89 {offsets = [0, 8], sizes = [4, 8], strides = [1, 1]} : vector<4x16xf32> to vector<4x8xf32>
    %cst_49 = arith.constant dense<0.000000e+00> : vector<8x8xf32>
    %94 = tpu.matmul %10, %93, %cst_49 {dimension_numbers = #tpu.dot_dimension_numbers<[1], [0], [0], [1], [0, 0, 1, 1], [], []>} : vector<8x4xf32>, vector<4x8xf32>, vector<8x8xf32> -> vector<8x8xf32>
    %95 = arith.addf %92, %94 : vector<8x8xf32>
    %96 = vector.broadcast %2 : vector<8x1xf32> to vector<8x8xf32>
    %97 = arith.addf %95, %96 : vector<8x8xf32>
    %c0_50 = arith.constant 0 : index
    %c0_51 = arith.constant 0 : index
    %c24 = arith.constant 24 : index
    %98 = vector.load %arg6[%c0_50, %c0_51, %c24] : memref<1x8x64xf32, #tpu.memory_space<vmem>>, vector<1x8x8xf32>
    %99 = vector.shape_cast %98 : vector<1x8x8xf32> to vector<8x8xf32>
    %100 = vector.shape_cast %97 : vector<8x8xf32> to vector<1x8x8xf32>
    tpu.vector_store %arg6[%c0_50, %c0_51, %c24], %100 {strides = array<i32>} : memref<1x8x64xf32, #tpu.memory_space<vmem>>, vector<1x8x8xf32>,
    %101 = vector.extract_strided_slice %15 {offsets = [0, 4, 0], sizes = [4, 1, 16], strides = [1, 1, 1]} : vector<4x8x16xf32> to vector<4x1x16xf32>
    %102 = vector.shape_cast %101 : vector<4x1x16xf32> to vector<4x16xf32>
    %103 = vector.extract_strided_slice %102 {offsets = [0, 0], sizes = [4, 8], strides = [1, 1]} : vector<4x16xf32> to vector<4x8xf32>
    %cst_52 = arith.constant dense<0.000000e+00> : vector<8x8xf32>
    %104 = tpu.matmul %4, %103, %cst_52 {dimension_numbers = #tpu.dot_dimension_numbers<[1], [0], [0], [1], [0, 0, 1, 1], [], []>} : vector<8x4xf32>, vector<4x8xf32>, vector<8x8xf32> -> vector<8x8xf32>
    %105 = vector.extract_strided_slice %102 {offsets = [0, 8], sizes = [4, 8], strides = [1, 1]} : vector<4x16xf32> to vector<4x8xf32>
    %cst_53 = arith.constant dense<0.000000e+00> : vector<8x8xf32>
    %106 = tpu.matmul %6, %105, %cst_53 {dimension_numbers = #tpu.dot_dimension_numbers<[1], [0], [0], [1], [0, 0, 1, 1], [], []>} : vector<8x4xf32>, vector<4x8xf32>, vector<8x8xf32> -> vector<8x8xf32>
    %107 = arith.addf %104, %106 : vector<8x8xf32>
    %108 = vector.extract_strided_slice %20 {offsets = [0, 4, 0], sizes = [4, 1, 16], strides = [1, 1, 1]} : vector<4x8x16xf32> to vector<4x1x16xf32>
    %109 = vector.shape_cast %108 : vector<4x1x16xf32> to vector<4x16xf32>
    %110 = vector.extract_strided_slice %109 {offsets = [0, 0], sizes = [4, 8], strides = [1, 1]} : vector<4x16xf32> to vector<4x8xf32>
    %cst_54 = arith.constant dense<0.000000e+00> : vector<8x8xf32>
    %111 = tpu.matmul %8, %110, %cst_54 {dimension_numbers = #tpu.dot_dimension_numbers<[1], [0], [0], [1], [0, 0, 1, 1], [], []>} : vector<8x4xf32>, vector<4x8xf32>, vector<8x8xf32> -> vector<8x8xf32>
    %112 = arith.addf %107, %111 : vector<8x8xf32>
    %113 = vector.extract_strided_slice %109 {offsets = [0, 8], sizes = [4, 8], strides = [1, 1]} : vector<4x16xf32> to vector<4x8xf32>
    %cst_55 = arith.constant dense<0.000000e+00> : vector<8x8xf32>
    %114 = tpu.matmul %10, %113, %cst_55 {dimension_numbers = #tpu.dot_dimension_numbers<[1], [0], [0], [1], [0, 0, 1, 1], [], []>} : vector<8x4xf32>, vector<4x8xf32>, vector<8x8xf32> -> vector<8x8xf32>
    %115 = arith.addf %112, %114 : vector<8x8xf32>
    %116 = vector.broadcast %2 : vector<8x1xf32> to vector<8x8xf32>
    %117 = arith.addf %115, %116 : vector<8x8xf32>
    %c0_56 = arith.constant 0 : index
    %c0_57 = arith.constant 0 : index
    %c32 = arith.constant 32 : index
    %118 = vector.load %arg6[%c0_56, %c0_57, %c32] : memref<1x8x64xf32, #tpu.memory_space<vmem>>, vector<1x8x8xf32>
    %119 = vector.shape_cast %118 : vector<1x8x8xf32> to vector<8x8xf32>
    %120 = vector.shape_cast %117 : vector<8x8xf32> to vector<1x8x8xf32>
    tpu.vector_store %arg6[%c0_56, %c0_57, %c32], %120 {strides = array<i32>} : memref<1x8x64xf32, #tpu.memory_space<vmem>>, vector<1x8x8xf32>,
    %121 = vector.extract_strided_slice %15 {offsets = [0, 5, 0], sizes = [4, 1, 16], strides = [1, 1, 1]} : vector<4x8x16xf32> to vector<4x1x16xf32>
    %122 = vector.shape_cast %121 : vector<4x1x16xf32> to vector<4x16xf32>
    %123 = vector.extract_strided_slice %122 {offsets = [0, 0], sizes = [4, 8], strides = [1, 1]} : vector<4x16xf32> to vector<4x8xf32>
    %cst_58 = arith.constant dense<0.000000e+00> : vector<8x8xf32>
    %124 = tpu.matmul %4, %123, %cst_58 {dimension_numbers = #tpu.dot_dimension_numbers<[1], [0], [0], [1], [0, 0, 1, 1], [], []>} : vector<8x4xf32>, vector<4x8xf32>, vector<8x8xf32> -> vector<8x8xf32>
    %125 = vector.extract_strided_slice %122 {offsets = [0, 8], sizes = [4, 8], strides = [1, 1]} : vector<4x16xf32> to vector<4x8xf32>
    %cst_59 = arith.constant dense<0.000000e+00> : vector<8x8xf32>
    %126 = tpu.matmul %6, %125, %cst_59 {dimension_numbers = #tpu.dot_dimension_numbers<[1], [0], [0], [1], [0, 0, 1, 1], [], []>} : vector<8x4xf32>, vector<4x8xf32>, vector<8x8xf32> -> vector<8x8xf32>
    %127 = arith.addf %124, %126 : vector<8x8xf32>
    %128 = vector.extract_strided_slice %20 {offsets = [0, 5, 0], sizes = [4, 1, 16], strides = [1, 1, 1]} : vector<4x8x16xf32> to vector<4x1x16xf32>
    %129 = vector.shape_cast %128 : vector<4x1x16xf32> to vector<4x16xf32>
    %130 = vector.extract_strided_slice %129 {offsets = [0, 0], sizes = [4, 8], strides = [1, 1]} : vector<4x16xf32> to vector<4x8xf32>
    %cst_60 = arith.constant dense<0.000000e+00> : vector<8x8xf32>
    %131 = tpu.matmul %8, %130, %cst_60 {dimension_numbers = #tpu.dot_dimension_numbers<[1], [0], [0], [1], [0, 0, 1, 1], [], []>} : vector<8x4xf32>, vector<4x8xf32>, vector<8x8xf32> -> vector<8x8xf32>
    %132 = arith.addf %127, %131 : vector<8x8xf32>
    %133 = vector.extract_strided_slice %129 {offsets = [0, 8], sizes = [4, 8], strides = [1, 1]} : vector<4x16xf32> to vector<4x8xf32>
    %cst_61 = arith.constant dense<0.000000e+00> : vector<8x8xf32>
    %134 = tpu.matmul %10, %133, %cst_61 {dimension_numbers = #tpu.dot_dimension_numbers<[1], [0], [0], [1], [0, 0, 1, 1], [], []>} : vector<8x4xf32>, vector<4x8xf32>, vector<8x8xf32> -> vector<8x8xf32>
    %135 = arith.addf %132, %134 : vector<8x8xf32>
    %136 = vector.broadcast %2 : vector<8x1xf32> to vector<8x8xf32>
    %137 = arith.addf %135, %136 : vector<8x8xf32>
    %c0_62 = arith.constant 0 : index
    %c0_63 = arith.constant 0 : index
    %c40 = arith.constant 40 : index
    %138 = vector.load %arg6[%c0_62, %c0_63, %c40] : memref<1x8x64xf32, #tpu.memory_space<vmem>>, vector<1x8x8xf32>
    %139 = vector.shape_cast %138 : vector<1x8x8xf32> to vector<8x8xf32>
    %140 = vector.shape_cast %137 : vector<8x8xf32> to vector<1x8x8xf32>
    tpu.vector_store %arg6[%c0_62, %c0_63, %c40], %140 {strides = array<i32>} : memref<1x8x64xf32, #tpu.memory_space<vmem>>, vector<1x8x8xf32>,
    %141 = vector.extract_strided_slice %15 {offsets = [0, 6, 0], sizes = [4, 1, 16], strides = [1, 1, 1]} : vector<4x8x16xf32> to vector<4x1x16xf32>
    %142 = vector.shape_cast %141 : vector<4x1x16xf32> to vector<4x16xf32>
    %143 = vector.extract_strided_slice %142 {offsets = [0, 0], sizes = [4, 8], strides = [1, 1]} : vector<4x16xf32> to vector<4x8xf32>
    %cst_64 = arith.constant dense<0.000000e+00> : vector<8x8xf32>
    %144 = tpu.matmul %4, %143, %cst_64 {dimension_numbers = #tpu.dot_dimension_numbers<[1], [0], [0], [1], [0, 0, 1, 1], [], []>} : vector<8x4xf32>, vector<4x8xf32>, vector<8x8xf32> -> vector<8x8xf32>
    %145 = vector.extract_strided_slice %142 {offsets = [0, 8], sizes = [4, 8], strides = [1, 1]} : vector<4x16xf32> to vector<4x8xf32>
    %cst_65 = arith.constant dense<0.000000e+00> : vector<8x8xf32>
    %146 = tpu.matmul %6, %145, %cst_65 {dimension_numbers = #tpu.dot_dimension_numbers<[1], [0], [0], [1], [0, 0, 1, 1], [], []>} : vector<8x4xf32>, vector<4x8xf32>, vector<8x8xf32> -> vector<8x8xf32>
    %147 = arith.addf %144, %146 : vector<8x8xf32>
    %148 = vector.extract_strided_slice %20 {offsets = [0, 6, 0], sizes = [4, 1, 16], strides = [1, 1, 1]} : vector<4x8x16xf32> to vector<4x1x16xf32>
    %149 = vector.shape_cast %148 : vector<4x1x16xf32> to vector<4x16xf32>
    %150 = vector.extract_strided_slice %149 {offsets = [0, 0], sizes = [4, 8], strides = [1, 1]} : vector<4x16xf32> to vector<4x8xf32>
    %cst_66 = arith.constant dense<0.000000e+00> : vector<8x8xf32>
    %151 = tpu.matmul %8, %150, %cst_66 {dimension_numbers = #tpu.dot_dimension_numbers<[1], [0], [0], [1], [0, 0, 1, 1], [], []>} : vector<8x4xf32>, vector<4x8xf32>, vector<8x8xf32> -> vector<8x8xf32>
    %152 = arith.addf %147, %151 : vector<8x8xf32>
    %153 = vector.extract_strided_slice %149 {offsets = [0, 8], sizes = [4, 8], strides = [1, 1]} : vector<4x16xf32> to vector<4x8xf32>
    %cst_67 = arith.constant dense<0.000000e+00> : vector<8x8xf32>
    %154 = tpu.matmul %10, %153, %cst_67 {dimension_numbers = #tpu.dot_dimension_numbers<[1], [0], [0], [1], [0, 0, 1, 1], [], []>} : vector<8x4xf32>, vector<4x8xf32>, vector<8x8xf32> -> vector<8x8xf32>
    %155 = arith.addf %152, %154 : vector<8x8xf32>
    %156 = vector.broadcast %2 : vector<8x1xf32> to vector<8x8xf32>
    %157 = arith.addf %155, %156 : vector<8x8xf32>
    %c0_68 = arith.constant 0 : index
    %c0_69 = arith.constant 0 : index
    %c48 = arith.constant 48 : index
    %158 = vector.load %arg6[%c0_68, %c0_69, %c48] : memref<1x8x64xf32, #tpu.memory_space<vmem>>, vector<1x8x8xf32>
    %159 = vector.shape_cast %158 : vector<1x8x8xf32> to vector<8x8xf32>
    %160 = vector.shape_cast %157 : vector<8x8xf32> to vector<1x8x8xf32>
    tpu.vector_store %arg6[%c0_68, %c0_69, %c48], %160 {strides = array<i32>} : memref<1x8x64xf32, #tpu.memory_space<vmem>>, vector<1x8x8xf32>,
    %161 = vector.extract_strided_slice %15 {offsets = [0, 7, 0], sizes = [4, 1, 16], strides = [1, 1, 1]} : vector<4x8x16xf32> to vector<4x1x16xf32>
    %162 = vector.shape_cast %161 : vector<4x1x16xf32> to vector<4x16xf32>
    %163 = vector.extract_strided_slice %162 {offsets = [0, 0], sizes = [4, 8], strides = [1, 1]} : vector<4x16xf32> to vector<4x8xf32>
    %cst_70 = arith.constant dense<0.000000e+00> : vector<8x8xf32>
    %164 = tpu.matmul %4, %163, %cst_70 {dimension_numbers = #tpu.dot_dimension_numbers<[1], [0], [0], [1], [0, 0, 1, 1], [], []>} : vector<8x4xf32>, vector<4x8xf32>, vector<8x8xf32> -> vector<8x8xf32>
    %165 = vector.extract_strided_slice %162 {offsets = [0, 8], sizes = [4, 8], strides = [1, 1]} : vector<4x16xf32> to vector<4x8xf32>
    %cst_71 = arith.constant dense<0.000000e+00> : vector<8x8xf32>
    %166 = tpu.matmul %6, %165, %cst_71 {dimension_numbers = #tpu.dot_dimension_numbers<[1], [0], [0], [1], [0, 0, 1, 1], [], []>} : vector<8x4xf32>, vector<4x8xf32>, vector<8x8xf32> -> vector<8x8xf32>
    %167 = arith.addf %164, %166 : vector<8x8xf32>
    %168 = vector.extract_strided_slice %20 {offsets = [0, 7, 0], sizes = [4, 1, 16], strides = [1, 1, 1]} : vector<4x8x16xf32> to vector<4x1x16xf32>
    %169 = vector.shape_cast %168 : vector<4x1x16xf32> to vector<4x16xf32>
    %170 = vector.extract_strided_slice %169 {offsets = [0, 0], sizes = [4, 8], strides = [1, 1]} : vector<4x16xf32> to vector<4x8xf32>
    %cst_72 = arith.constant dense<0.000000e+00> : vector<8x8xf32>
    %171 = tpu.matmul %8, %170, %cst_72 {dimension_numbers = #tpu.dot_dimension_numbers<[1], [0], [0], [1], [0, 0, 1, 1], [], []>} : vector<8x4xf32>, vector<4x8xf32>, vector<8x8xf32> -> vector<8x8xf32>
    %172 = arith.addf %167, %171 : vector<8x8xf32>
    %173 = vector.extract_strided_slice %169 {offsets = [0, 8], sizes = [4, 8], strides = [1, 1]} : vector<4x16xf32> to vector<4x8xf32>
    %cst_73 = arith.constant dense<0.000000e+00> : vector<8x8xf32>
    %174 = tpu.matmul %10, %173, %cst_73 {dimension_numbers = #tpu.dot_dimension_numbers<[1], [0], [0], [1], [0, 0, 1, 1], [], []>} : vector<8x4xf32>, vector<4x8xf32>, vector<8x8xf32> -> vector<8x8xf32>
    %175 = arith.addf %172, %174 : vector<8x8xf32>
    %176 = vector.broadcast %2 : vector<8x1xf32> to vector<8x8xf32>
    %177 = arith.addf %175, %176 : vector<8x8xf32>
    %c0_74 = arith.constant 0 : index
    %c0_75 = arith.constant 0 : index
    %c56 = arith.constant 56 : index
    %178 = vector.load %arg6[%c0_74, %c0_75, %c56] : memref<1x8x64xf32, #tpu.memory_space<vmem>>, vector<1x8x8xf32>
    %179 = vector.shape_cast %178 : vector<1x8x8xf32> to vector<8x8xf32>
    %180 = vector.shape_cast %177 : vector<8x8xf32> to vector<1x8x8xf32>
    tpu.vector_store %arg6[%c0_74, %c0_75, %c56], %180 {strides = array<i32>} : memref<1x8x64xf32, #tpu.memory_space<vmem>>, vector<1x8x8xf32>,
    return
  }
  func.func @transform_0(%arg0: i32, %arg1: i32) -> (i32, i32, i32, i32) {
    %c0_i32 = arith.constant 0 : i32
    %c0_i32_0 = arith.constant 0 : i32
    %c0_i32_1 = arith.constant 0 : i32
    return %arg0, %c0_i32, %arg1, %c0_i32_0 : i32, i32, i32, i32
  }
  func.func @transform_1(%arg0: i32, %arg1: i32) -> (i32, i32, i32, i32) {
    %c0_i32 = arith.constant 0 : i32
    %c0_i32_0 = arith.constant 0 : i32
    %c0_i32_1 = arith.constant 0 : i32
    %c0_i32_2 = arith.constant 0 : i32
    %c0_i32_3 = arith.constant 0 : i32
    return %c0_i32, %c0_i32_0, %c0_i32_1, %c0_i32_2 : i32, i32, i32, i32
  }
  func.func @transform_2(%arg0: i32, %arg1: i32) -> (i32, i32) {
    %c0_i32 = arith.constant 0 : i32
    %c0_i32_0 = arith.constant 0 : i32
    %c0_i32_1 = arith.constant 0 : i32
    return %c0_i32, %c0_i32_0 : i32, i32
  }
  func.func @transform_3(%arg0: i32, %arg1: i32) -> (i32, i32) {
    %c0_i32 = arith.constant 0 : i32
    %c0_i32_0 = arith.constant 0 : i32
    %c0_i32_1 = arith.constant 0 : i32
    return %c0_i32, %c0_i32_0 : i32, i32
  }
  func.func @transform_4(%arg0: i32, %arg1: i32) -> (i32, i32, i32) {
    %c0_i32 = arith.constant 0 : i32
    %c0_i32_0 = arith.constant 0 : i32
    return %arg0, %c0_i32, %arg1 : i32, i32, i32
  }
}

</mosaic_0001>

<llo_original>
// kernel: tpu_custom_call.1
$region0: #{tpu_custom_call.1}
  #allocation0 [shape = 'u32[]', space=smem, size = 0x4, offset = 0x4, fixed_abs, tag = 'smem constant byte address 0x4 - core index']
  #allocation1 [shape = 'u32[144,128]{1,0:T(1,128)}', space=vmem, size = 0x12000, scoped, tag = 'internal scratch']
  %s0 = inlined_call_operand.hbm [shape: f32[2,4,8,32], index: 0, kind: input, shape index: {}]
  %s1 = inlined_call_operand.vmem [shape: f32[2,2,8,4], index: 1, kind: input, shape index: {}]
  %s2 = inlined_call_operand.vmem [shape: bf16[16,16], index: 2, kind: input, shape index: {}]
  %s3 = inlined_call_operand.vmem [shape: f32[8,1], index: 3, kind: input, shape index: {}]
  %s4 = inlined_call_operand.hbm [shape: f32[2,8,64], index: 4, kind: output, shape index: {}]
  %s5 = sld [smem:[#allocation0]]
  $region53: #{tpu_custom_call.1} parent=0
    _
  %s7 = ssub.s32 1, %s5
  %s8 = scalar_select 0, %s7, %s5
  $region1: #{tpu_custom_call.1} parent=0
    #allocation2 [shape = 'u8[32768]{0}', space=vmem, size = 0x8000, scoped, tag = 'input window, operand 0']
    #allocation3 [shape = 's32[2]{0}', space=sflag, size = 0x8, scoped, tag = 'scoped memory for tpu_custom_call.1']
    #allocation4 [shape = 's32[2]{0}', space=sflag, size = 0x8, scoped, tag = 'scoped memory for tpu_custom_call.1']
    #allocation5 [shape = 'u8[8192]{0}', space=vmem, size = 0x2000, scoped, tag = 'output window, operand 0']
    %9 = vsyncpa [#allocation3], 0
    %s10 = scalar_lea.sflag [#allocation3], 1
    %11 = vsyncpa %s10, 0
    %12 = vsyncpa [#allocation4], 0
    %s13 = scalar_lea.sflag [#allocation4], 1
    %14 = vsyncpa %s13, 0
    loop: start=0, step=1, limit=4
    $region2: #{tpu_custom_call.1} parent=1 // loop_pre_header
      _
    $region3: #{tpu_custom_call.1} parent=1 // loop_header
      %s16 = sphi 0, %s20
      %p17 = scmp.ge.s32.totalorder %s16, 4
      %s23 = sphi 0, %s35
      %s24 = sphi 0, %s31
      %s25 = sphi 0, %s23
      %s26 = sphi 0, %s24
      %s27 = sphi 0, %s25
      %s28 = sphi 0, %s26
      %s40 = sphi 0, %s42
      %s43 = sphi 0, %s40
      %s44 = sphi 0, %s43
      %s60 = sphi 0, %s44
      %s64 = sphi 0, %s64
      %s66 = sphi 0, %s64
      %s67 = sphi 0, %s66
      %s81 = sphi 0, %s67
      %s85 = sphi 0, %s85
      %s87 = sphi 0, %s85
      %s88 = sphi 0, %s87
      %s102 = sphi 0, %s88
      %s106 = sphi 0, %s106
      %s108 = sphi 0, %s106
      %s109 = sphi 0, %s108
      %s123 = sphi 0, %s109
      %s131 = sphi 0, %s133
      %s134 = sphi 0, %s131
      %s135 = sphi 0, %s134
      %s151 = sphi 0, %s135
    $region4: #{tpu_custom_call.1} parent=1 // loop_header_branch
      %19 = sbr.rel (%p17) target = $region8
    $region5: #{tpu_custom_call.1} parent=1 // loop_body
      %s21 = ssub.s32 %s16, 1
      %s22 = ssub.s32 %s16, 2
      %s29 = sadd.s32 1, %s24
      %p30 = scmp.ge.s32.totalorder %s29, 1
      %s31 = scalar_select %p30, 0, %s29
      %s32 = sadd.s32 1, %s23
      %s33 = scalar_select %p30, %s32, %s23
      %p34 = scmp.ge.s32.totalorder %s33, 2
      %s35 = scalar_select %p34, 0, %s33
      %s36 = ssub.s32 %s23, %s35
      %s37 = ssub.s32 %s24, %s31
      %s38 = sor.u32 %s36, %s37
      %p39 = scmp.eq.s32.totalorder %s38, 0
      %s41 = sadd.s32 %s40, 1
      %s42 = scalar_select %p39, %s40, %s41
      %p45 = pneg %p39
      %p46 = scmp.eq.s32.totalorder %s16, 1
      %p47 = por %p45, %p46
      %p48 = scmp.ne.s32.totalorder %s40, %s43
      %p49 = scmp.eq.s32.totalorder %s16, 0
      %p50 = por %p48, %p49
      %p51 = scmp.ne.s32.totalorder %s40, %s43
      %p52 = scmp.eq.s32.totalorder %s21, 1
      %p53 = por %p51, %p52
      %p54 = scmp.ne.s32.totalorder %s43, %s44
      %p55 = scmp.eq.s32.totalorder %s21, 0
      %p56 = por %p54, %p55
      %p57 = scmp.ne.s32.totalorder %s43, %s44
      %p58 = scmp.eq.s32.totalorder %s22, 1
      %p59 = por %p57, %p58
      %p61 = scmp.ne.s32.totalorder %s44, %s60
      %p62 = scmp.eq.s32.totalorder %s22, 0
      %p63 = por %p61, %p62
      %s65 = sadd.s32 %s64, 1
      %p68 = scmp.eq.s32.totalorder %s16, 1
      %p69 = scmp.ne.s32.totalorder %s64, %s66
      %p70 = scmp.eq.s32.totalorder %s16, 0
      %p71 = por %p69, %p70
      %p72 = scmp.ne.s32.totalorder %s64, %s66
      %p73 = scmp.eq.s32.totalorder %s21, 1
      %p74 = por %p72, %p73
      %p75 = scmp.ne.s32.totalorder %s66, %s67
      %p76 = scmp.eq.s32.totalorder %s21, 0
      %p77 = por %p75, %p76
      %p78 = scmp.ne.s32.totalorder %s66, %s67
      %p79 = scmp.eq.s32.totalorder %s22, 1
      %p80 = por %p78, %p79
      %p82 = scmp.ne.s32.totalorder %s67, %s81
      %p83 = scmp.eq.s32.totalorder %s22, 0
      %p84 = por %p82, %p83
      %s86 = sadd.s32 %s85, 1
      %p89 = scmp.eq.s32.totalorder %s16, 1
      %p90 = scmp.ne.s32.totalorder %s85, %s87
      %p91 = scmp.eq.s32.totalorder %s16, 0
      %p92 = por %p90, %p91
      %p93 = scmp.ne.s32.totalorder %s85, %s87
      %p94 = scmp.eq.s32.totalorder %s21, 1
      %p95 = por %p93, %p94
      %p96 = scmp.ne.s32.totalorder %s87, %s88
      %p97 = scmp.eq.s32.totalorder %s21, 0
      %p98 = por %p96, %p97
      %p99 = scmp.ne.s32.totalorder %s87, %s88
      %p100 = scmp.eq.s32.totalorder %s22, 1
      %p101 = por %p99, %p100
      %p103 = scmp.ne.s32.totalorder %s88, %s102
      %p104 = scmp.eq.s32.totalorder %s22, 0
      %p105 = por %p103, %p104
      %s107 = sadd.s32 %s106, 1
      %p110 = scmp.eq.s32.totalorder %s16, 1
      %p111 = scmp.ne.s32.totalorder %s106, %s108
      %p112 = scmp.eq.s32.totalorder %s16, 0
      %p113 = por %p111, %p112
      %p114 = scmp.ne.s32.totalorder %s106, %s108
      %p115 = scmp.eq.s32.totalorder %s21, 1
      %p116 = por %p114, %p115
      %p117 = scmp.ne.s32.totalorder %s108, %s109
      %p118 = scmp.eq.s32.totalorder %s21, 0
      %p119 = por %p117, %p118
      %p120 = scmp.ne.s32.totalorder %s108, %s109
      %p121 = scmp.eq.s32.totalorder %s22, 1
      %p122 = por %p120, %p121
      %p124 = scmp.ne.s32.totalorder %s109, %s123
      %p125 = scmp.eq.s32.totalorder %s22, 0
      %p126 = por %p124, %p125
      %s127 = ssub.s32 %s23, %s35
      %s128 = ssub.s32 %s24, %s31
      %s129 = sor.u32 %s127, %s128
      %p130 = scmp.eq.s32.totalorder %s129, 0
      %s132 = sadd.s32 %s131, 1
      %s133 = scalar_select %p130, %s131, %s132
      %p136 = pneg %p130
      %p137 = scmp.eq.s32.totalorder %s16, 1
      %p138 = por %p136, %p137
      %p139 = scmp.ne.s32.totalorder %s131, %s134
      %p140 = scmp.eq.s32.totalorder %s16, 0
      %p141 = por %p139, %p140
      %p142 = scmp.ne.s32.totalorder %s131, %s134
      %p143 = scmp.eq.s32.totalorder %s21, 1
      %p144 = por %p142, %p143
      %p145 = scmp.ne.s32.totalorder %s134, %s135
      %p146 = scmp.eq.s32.totalorder %s21, 0
      %p147 = por %p145, %p146
      %p148 = scmp.ne.s32.totalorder %s134, %s135
      %p149 = scmp.eq.s32.totalorder %s22, 1
      %p150 = por %p148, %p149
      %p152 = scmp.ne.s32.totalorder %s135, %s151
      %p153 = scmp.eq.s32.totalorder %s22, 0
      %p154 = por %p152, %p153
      %p155 = scmp.le.s32.totalorder 1, %s16
      %p156 = scmp.lt.s32.totalorder %s16, 3
      %p157 = pnand %p155, %p156
      %p158 = pneg %p157
      // Predicated region
      $region9: #{tpu_custom_call.1} parent=5 // pred_check
        _
      $region10: #{tpu_custom_call.1} parent=5 // pred_check_branch
        %160 = sbr.rel (%p157) target = $region12
      $region11: #{tpu_custom_call.1} parent=5 // pred_region
        %s161 = ssub.s32 %s16, 1
        // Predicated region
        $region13: #{tpu_custom_call.1} parent=11 // pred_check
          %p162 = pneg %p77
        $region14: #{tpu_custom_call.1} parent=11 // pred_check_branch
          %164 = sbr.rel (%p162) target = $region16
        $region15: #{tpu_custom_call.1} parent=11 // pred_region
          _
        $region16: #{tpu_custom_call.1} parent=11 // pred_fallthru
          _
        // Predicated region
        $region17: #{tpu_custom_call.1} parent=11 // pred_check
          %p165 = pneg %p98
        $region18: #{tpu_custom_call.1} parent=11 // pred_check_branch
          %167 = sbr.rel (%p165) target = $region20
        $region19: #{tpu_custom_call.1} parent=11 // pred_region
          _
        $region20: #{tpu_custom_call.1} parent=11 // pred_fallthru
          _
        // Predicated region
        $region21: #{tpu_custom_call.1} parent=11 // pred_check
          %p168 = pneg %p119
        $region22: #{tpu_custom_call.1} parent=11 // pred_check_branch
          %170 = sbr.rel (%p168) target = $region24
        $region23: #{tpu_custom_call.1} parent=11 // pred_region
          _
        $region24: #{tpu_custom_call.1} parent=11 // pred_fallthru
          _
      $region12: #{tpu_custom_call.1} parent=5 // pred_fallthru
        _
      %p171 = scmp.lt.s32.totalorder %s16, 2
      // Predicated region
      $region25: #{tpu_custom_call.1} parent=5 // pred_check
        %p172 = pneg %p171
      $region26: #{tpu_custom_call.1} parent=5 // pred_check_branch
        %174 = sbr.rel (%p172) target = $region28
      $region27: #{tpu_custom_call.1} parent=5 // pred_region
        // Predicated region
        $region29: #{tpu_custom_call.1} parent=27 // pred_check
          %p175 = pneg %p50
        $region30: #{tpu_custom_call.1} parent=27 // pred_check_branch
          %177 = sbr.rel (%p175) target = $region32
        $region31: #{tpu_custom_call.1} parent=27 // pred_region
          %s178 = sand.u32 %s40, 1
          %s179 = scalar_lea.sflag [#allocation3], %s178
          %s180 = sand.u32 %s40, 1
          %s181 = smul.addr %s180, 32
          %s182 = scalar_lea.vmem [#allocation2], %s181
          %s184 = ssub.s32 512, 512
          %185 = vsyncadd %s179, %s184
          %s186 = smul.addr %s23, 4
          %s187 = sadd.s32 %s24, %s186
          %s188 = smul.addr %s187, 128
          %s189 = scalar_lea.hbm %s0, %s188
          %s190 = sshll.u32 %s182, 4
          %s191 = int_to_ptr.vmem [resolvable:$true] %s190
          %196 = dma.hbm_to_vmem [thread:$0]  %s189, 512, %s191, %s179, 128, 128, 8
        $region32: #{tpu_custom_call.1} parent=27 // pred_fallthru
          _
      $region28: #{tpu_custom_call.1} parent=5 // pred_fallthru
        _
      %p197 = scmp.le.s32.totalorder 1, %s16
      %p198 = scmp.lt.s32.totalorder %s16, 3
      %p199 = pnand %p197, %p198
      %p200 = pneg %p199
      // Predicated region
      $region33: #{tpu_custom_call.1} parent=5 // pred_check
        _
      $region34: #{tpu_custom_call.1} parent=5 // pred_check_branch
        %202 = sbr.rel (%p199) target = $region36
      $region35: #{tpu_custom_call.1} parent=5 // pred_region
        %s203 = ssub.s32 %s16, 1
        %s204 = sand.u32 %s43, 1
        %s205 = scalar_lea.sflag [#allocation3], %s204
        %s206 = sand.u32 %s43, 1
        %s207 = smul.addr %s206, 32
        %s208 = scalar_lea.vmem [#allocation2], %s207
        // Predicated region
        $region37: #{tpu_custom_call.1} parent=35 // pred_check
          %p209 = pneg %p56
        $region38: #{tpu_custom_call.1} parent=35 // pred_check_branch
          %211 = sbr.rel (%p209) target = $region40
        $region39: #{tpu_custom_call.1} parent=35 // pred_region
          %212 = dma.done %s205, 512
        $region40: #{tpu_custom_call.1} parent=35 // pred_fallthru
          _
        %s213 = sand.u32 %s43, 1
        %s214 = scalar_lea.sflag [#allocation3], %s213
        %s215 = sand.u32 %s43, 1
        %s216 = smul.addr %s215, 32
        %s217 = scalar_lea.vmem [#allocation2], %s216
        %p218 = pneg %p56
        %p219 = pneg %p53
        %p220 = pneg %p77
        %p221 = pneg %p74
        %p222 = pneg %p98
        %p223 = pneg %p95
        %p224 = pneg %p119
        %p225 = pneg %p116
        %p226 = pneg %p147
        %p227 = pneg %p144
        %s228 = sand.u32 %s134, 1
        %s229 = scalar_lea.sflag [#allocation4], %s228
        %s230 = sand.u32 %s134, 1
        %s231 = smul.addr %s230, 8
        %s232 = scalar_lea.vmem [#allocation5], %s231
        %v233 = vld [vmem:[%s2] sm:$0xf]
        %v234 = vld [vmem:[%s2 + $0x4] sm:$0xf]
        %v235 = vunpack.c.l.bf16 %v233
        %v236 = vunpack.c.l.bf16 %v234
        %v237 = vld [vmem:[%s3] sm:$0xff]
        %v238 = vld [vmem:[%s1] sm:$0xff]
        %s239 = scalar_lea.vmem %s1, 8
        %v240 = vld [vmem:[%s239] sm:$0xff]
        %s241 = scalar_lea.vmem %s1, 16
        %v242 = vld [vmem:[%s241] sm:$0xff]
        %s243 = scalar_lea.vmem %s1, 24
        %v244 = vld [vmem:[%s243] sm:$0xff]
        %v245 = vld [vmem:[%s208] sm:$0xff]
        %v246 = vld [vmem:[%s208 + $0x8] sm:$0xff]
        %v247 = vld [vmem:[%s208 + $0x10] sm:$0xff]
        %v248 = vld [vmem:[%s208 + $0x18] sm:$0xff]
        %vm249 = vcmask 130048
        %v251 = vsel %vm249, %v245, 0
        %v254 = vsel %vm249, %v246, 0
        %v257 = vsel %vm249, %v247, 0
        %v260 = vsel %vm249, %v248, 0
        %262 = vmatprep.subr.mxu0 0.0
        %263 = vmatpush1.msra.mxu0 0.0
        %264 = vmatprep.subr.mxu0 0.0
        %265 = vmatpush1.msra.mxu0 0.0
        %266 = vmatprep.subr.mxu0 0.0
        %267 = vmatpush1.msra.mxu0 0.0
        %268 = vmatprep.subr.mxu0 0.0
        %269 = vmatpush1.msra.mxu0 0.0
        %270 = vmatprep.subr.mxu0 0.0
        %271 = vmatpush1.msra.mxu0 0.0
        %272 = vmatprep.subr.mxu0 0.0
        %273 = vmatpush1.msra.mxu0 0.0
        %274 = vmatprep.subr.mxu0 0.0
        %275 = vmatpush1.msra.mxu0 0.0
        %276 = vmatprep.subr.mxu0 0.0
        %277 = vmatpush1.msra.mxu0 0.0
        %278 = vmatprep.subr.mxu0 0.0
        %279 = vmatpush1.msra.mxu0 0.0
        %280 = vmatprep.subr.mxu0 0.0
        %281 = vmatpush1.msra.mxu0 0.0
        %282 = vmatprep.subr.mxu0 0.0
        %283 = vmatpush1.msra.mxu0 0.0
        %284 = vmatprep.subr.mxu0 0.0
        %285 = vmatpush1.msra.mxu0 0.0
        %286 = vmatprep.subr.mxu0 0.0
        %287 = vmatpush1.msra.mxu0 0.0
        %288 = vmatprep.subr.mxu0 0.0
        %289 = vmatpush1.msra.mxu0 0.0
        %290 = vmatprep.subr.mxu0 0.0
        %291 = vmatpush1.msra.mxu0 %v236
        %292 = vmatprep.subr.mxu0 0.0
        %293 = vmatpush1.msra.mxu0 %v235
        %294 = vmatprep.subr.mxu0 0.0
        %295 = vmatpush2.msra.mxu0 0.0
        %296 = vmatprep.subr.mxu0 0.0
        %297 = vmatpush2.msra.mxu0 0.0
        %298 = vmatprep.subr.mxu0 0.0
        %299 = vmatpush2.msra.mxu0 0.0
        %300 = vmatprep.subr.mxu0 0.0
        %301 = vmatpush2.msra.mxu0 0.0
        %302 = vmatprep.subr.mxu0 0.0
        %303 = vmatpush2.msra.mxu0 0.0
        %304 = vmatprep.subr.mxu0 0.0
        %305 = vmatpush2.msra.mxu0 0.0
        %306 = vmatprep.subr.mxu0 0.0
        %307 = vmatpush2.msra.mxu0 0.0
        %308 = vmatprep.subr.mxu0 0.0
        %309 = vmatpush2.msra.mxu0 0.0
        %310 = vmatprep.subr.mxu0 0.0
        %311 = vmatpush2.msra.mxu0 0.0
        %312 = vmatprep.subr.mxu0 0.0
        %313 = vmatpush2.msra.mxu0 0.0
        %314 = vmatprep.subr.mxu0 0.0
        %315 = vmatpush2.msra.mxu0 0.0
        %316 = vmatprep.subr.mxu0 0.0
        %317 = vmatpush2.msra.mxu0 0.0
        %318 = vmatprep.subr.mxu0 0.0
        %319 = vmatpush2.msra.mxu0 0.0
        %320 = vmatprep.subr.mxu0 0.0
        %321 = vmatpush2.msra.mxu0 0.0
        %322 = vmatprep.subr.mxu0 0.0
        %323 = vmatpush2.msra.mxu0 0.0
        %324 = vmatprep.subr.mxu0 0.0
        %325 = vmatpush2.msra.mxu0 0.0
        %326 = vmatprep.mubr.f32.mxu0 0.0
        %327 = vmatmul.mubr.f32.gmra.mxu0 %v251
        %v328 = vpop.f32.mrf.mxu0
        %v329 = vadd.f32 0.0, %v328
        %v330 = vpop.f32.mrf.mxu0
        %331 = vmatprep.mubr.f32.mxu0 0.0
        %332 = vmatmul.mubr.f32.gmra.mxu0 %v254
        %v333 = vpop.f32.mrf.mxu0
        %v334 = vadd.f32 0.0, %v333
        %v335 = vpop.f32.mrf.mxu0
        %336 = vmatprep.mubr.f32.mxu0 0.0
        %337 = vmatmul.mubr.f32.gmra.mxu0 %v257
        %v338 = vpop.f32.mrf.mxu0
        %v339 = vadd.f32 0.0, %v338
        %v340 = vpop.f32.mrf.mxu0
        %341 = vmatprep.mubr.f32.mxu0 0.0
        %342 = vmatmul.mubr.f32.gmra.mxu0 %v260
        %v343 = vpop.f32.mrf.mxu0
        %v344 = vadd.f32 0.0, %v343
        %v345 = vpop.f32.mrf.mxu0
        %346 = vdwg.mxu0
        %347 = vrot.lane.b32.xlu0 %v245, 112
        %v348 = vpop.permute.xlu0 %347
        %349 = vrot.lane.b32.xlu0 %v246, 112
        %v350 = vpop.permute.xlu0 %349
        %351 = vrot.lane.b32.xlu0 %v247, 112
        %v352 = vpop.permute.xlu0 %351
        %353 = vrot.lane.b32.xlu0 %v248, 112
        %v354 = vpop.permute.xlu0 %353
        %v355 = vsel %vm249, %v348, 0
        %v357 = vsel %vm249, %v350, 0
        %v359 = vsel %vm249, %v352, 0
        %v361 = vsel %vm249, %v354, 0
        %363 = vmatprep.subr.mxu0 0.0
        %364 = vmatpush1.msra.mxu0 0.0
        %365 = vmatprep.subr.mxu0 0.0
        %366 = vmatpush1.msra.mxu0 0.0
        %367 = vmatprep.subr.mxu0 0.0
        %368 = vmatpush1.msra.mxu0 0.0
        %369 = vmatprep.subr.mxu0 0.0
        %370 = vmatpush1.msra.mxu0 0.0
        %371 = vmatprep.subr.mxu0 0.0
        %372 = vmatpush1.msra.mxu0 0.0
        %373 = vmatprep.subr.mxu0 0.0
        %374 = vmatpush1.msra.mxu0 0.0
        %375 = vmatprep.subr.mxu0 0.0
        %376 = vmatpush1.msra.mxu0 0.0
        %377 = vmatprep.subr.mxu0 0.0
        %378 = vmatpush1.msra.mxu0 0.0
        %379 = vmatprep.subr.mxu0 0.0
        %380 = vmatpush1.msra.mxu0 0.0
        %381 = vmatprep.subr.mxu0 0.0
        %382 = vmatpush1.msra.mxu0 0.0
        %383 = vmatprep.subr.mxu0 0.0
        %384 = vmatpush1.msra.mxu0 0.0
        %385 = vmatprep.subr.mxu0 0.0
        %386 = vmatpush1.msra.mxu0 0.0
        %387 = vmatprep.subr.mxu0 0.0
        %388 = vmatpush1.msra.mxu0 0.0
        %389 = vmatprep.subr.mxu0 0.0
        %390 = vmatpush1.msra.mxu0 0.0
        %391 = vmatprep.subr.mxu0 0.0
        %392 = vmatpush1.msra.mxu0 %v236
        %393 = vmatprep.subr.mxu0 0.0
        %394 = vmatpush1.msra.mxu0 %v235
        %395 = vmatprep.subr.mxu0 0.0
        %396 = vmatpush2.msra.mxu0 0.0
        %397 = vmatprep.subr.mxu0 0.0
        %398 = vmatpush2.msra.mxu0 0.0
        %399 = vmatprep.subr.mxu0 0.0
        %400 = vmatpush2.msra.mxu0 0.0
        %401 = vmatprep.subr.mxu0 0.0
        %402 = vmatpush2.msra.mxu0 0.0
        %403 = vmatprep.subr.mxu0 0.0
        %404 = vmatpush2.msra.mxu0 0.0
        %405 = vmatprep.subr.mxu0 0.0
        %406 = vmatpush2.msra.mxu0 0.0
        %407 = vmatprep.subr.mxu0 0.0
        %408 = vmatpush2.msra.mxu0 0.0
        %409 = vmatprep.subr.mxu0 0.0
        %410 = vmatpush2.msra.mxu0 0.0
        %411 = vmatprep.subr.mxu0 0.0
        %412 = vmatpush2.msra.mxu0 0.0
        %413 = vmatprep.subr.mxu0 0.0
        %414 = vmatpush2.msra.mxu0 0.0
        %415 = vmatprep.subr.mxu0 0.0
        %416 = vmatpush2.msra.mxu0 0.0
        %417 = vmatprep.subr.mxu0 0.0
        %418 = vmatpush2.msra.mxu0 0.0
        %419 = vmatprep.subr.mxu0 0.0
        %420 = vmatpush2.msra.mxu0 0.0
        %421 = vmatprep.subr.mxu0 0.0
        %422 = vmatpush2.msra.mxu0 0.0
        %423 = vmatprep.subr.mxu0 0.0
        %424 = vmatpush2.msra.mxu0 0.0
        %425 = vmatprep.subr.mxu0 0.0
        %426 = vmatpush2.msra.mxu0 0.0
        %427 = vmatprep.mubr.f32.mxu0 0.0
        %428 = vmatmul.mubr.f32.gmra.mxu0 %v355
        %v429 = vpop.f32.mrf.mxu0
        %v430 = vadd.f32 0.0, %v429
        %v431 = vpop.f32.mrf.mxu0
        %432 = vmatprep.mubr.f32.mxu0 0.0
        %433 = vmatmul.mubr.f32.gmra.mxu0 %v357
        %v434 = vpop.f32.mrf.mxu0
        %v435 = vadd.f32 0.0, %v434
        %v436 = vpop.f32.mrf.mxu0
        %437 = vmatprep.mubr.f32.mxu0 0.0
        %438 = vmatmul.mubr.f32.gmra.mxu0 %v359
        %v439 = vpop.f32.mrf.mxu0
        %v440 = vadd.f32 0.0, %v439
        %v441 = vpop.f32.mrf.mxu0
        %442 = vmatprep.mubr.f32.mxu0 0.0
        %443 = vmatmul.mubr.f32.gmra.mxu0 %v361
        %v444 = vpop.f32.mrf.mxu0
        %v445 = vadd.f32 0.0, %v444
        %v446 = vpop.f32.mrf.mxu0
        %447 = vdwg.mxu0
        %v452 = vrot.slane %v334, 7
        %vm453 = vcmask 1041409
        %v454 = vsel %vm453, %v452, %v329
        %v455 = vrot.slane %v339, 6
        %vm456 = vcmask 1042434
        %v457 = vsel %vm456, %v455, %v454
        %v458 = vrot.slane %v344, 5
        %vm459 = vcmask 1043459
        %v460 = vsel %vm459, %v458, %v457
        %461 = vrot.lane.b32.xlu0 %v460, 120
        %v462 = vpop.permute.xlu0 %461
        %vm463 = vcmask 31744
        %v465 = vsel %vm463, %v240, 0
        %vm467 = vcmask 1043456
        %v468 = vsel %vm467, %v462, 0
        %470 = vmatprep.subr.mxu0 0.0
        %471 = vmatpush1.msra.mxu0 0.0
        %472 = vmatprep.subr.mxu0 0.0
        %473 = vmatpush1.msra.mxu0 0.0
        %474 = vmatprep.subr.mxu0 0.0
        %475 = vmatpush1.msra.mxu0 0.0
        %476 = vmatprep.subr.mxu0 0.0
        %477 = vmatpush1.msra.mxu0 0.0
        %478 = vmatprep.subr.mxu0 0.0
        %479 = vmatpush1.msra.mxu0 0.0
        %480 = vmatprep.subr.mxu0 0.0
        %481 = vmatpush1.msra.mxu0 0.0
        %482 = vmatprep.subr.mxu0 0.0
        %483 = vmatpush1.msra.mxu0 0.0
        %484 = vmatprep.subr.mxu0 0.0
        %485 = vmatpush1.msra.mxu0 0.0
        %486 = vmatprep.subr.mxu0 0.0
        %487 = vmatpush1.msra.mxu0 0.0
        %488 = vmatprep.subr.mxu0 0.0
        %489 = vmatpush1.msra.mxu0 0.0
        %490 = vmatprep.subr.mxu0 0.0
        %491 = vmatpush1.msra.mxu0 0.0
        %492 = vmatprep.subr.mxu0 0.0
        %493 = vmatpush1.msra.mxu0 0.0
        %494 = vmatprep.subr.mxu0 0.0
        %495 = vmatpush1.msra.mxu0 0.0
        %496 = vmatprep.subr.mxu0 0.0
        %497 = vmatpush1.msra.mxu0 0.0
        %498 = vmatprep.subr.mxu0 0.0
        %499 = vmatpush1.msra.mxu0 0.0
        %500 = vmatprep.subr.mxu0 0.0
        %501 = vmatpush1.msra.mxu0 %v468
        %502 = vmatprep.subr.mxu0 0.0
        %503 = vmatpush2.msra.mxu0 0.0
        %504 = vmatprep.subr.mxu0 0.0
        %505 = vmatpush2.msra.mxu0 0.0
        %506 = vmatprep.subr.mxu0 0.0
        %507 = vmatpush2.msra.mxu0 0.0
        %508 = vmatprep.subr.mxu0 0.0
        %509 = vmatpush2.msra.mxu0 0.0
        %510 = vmatprep.subr.mxu0 0.0
        %511 = vmatpush2.msra.mxu0 0.0
        %512 = vmatprep.subr.mxu0 0.0
        %513 = vmatpush2.msra.mxu0 0.0
        %514 = vmatprep.subr.mxu0 0.0
        %515 = vmatpush2.msra.mxu0 0.0
        %516 = vmatprep.subr.mxu0 0.0
        %517 = vmatpush2.msra.mxu0 0.0
        %518 = vmatprep.subr.mxu0 0.0
        %519 = vmatpush2.msra.mxu0 0.0
        %520 = vmatprep.subr.mxu0 0.0
        %521 = vmatpush2.msra.mxu0 0.0
        %522 = vmatprep.subr.mxu0 0.0
        %523 = vmatpush2.msra.mxu0 0.0
        %524 = vmatprep.subr.mxu0 0.0
        %525 = vmatpush2.msra.mxu0 0.0
        %526 = vmatprep.subr.mxu0 0.0
        %527 = vmatpush2.msra.mxu0 0.0
        %528 = vmatprep.subr.mxu0 0.0
        %529 = vmatpush2.msra.mxu0 0.0
        %530 = vmatprep.subr.mxu0 0.0
        %531 = vmatpush2.msra.mxu0 0.0
        %532 = vmatprep.subr.mxu0 0.0
        %533 = vmatpush2.msra.mxu0 0.0
        %534 = vmatprep.mubr.f32.mxu0 0.0
        %535 = vmatmul.mubr.f32.gmra.mxu0 %v465
        %v536 = vpop.f32.mrf.mxu0
        %v537 = vadd.f32 0.0, %v536
        %v538 = vpop.f32.mrf.mxu0
        %539 = vdwg.mxu0
        %v541 = vsel %vm463, %v238, 0
        %v543 = vsel %vm467, %v460, 0
        %545 = vmatprep.subr.mxu0 0.0
        %546 = vmatpush1.msra.mxu0 0.0
        %547 = vmatprep.subr.mxu0 0.0
        %548 = vmatpush1.msra.mxu0 0.0
        %549 = vmatprep.subr.mxu0 0.0
        %550 = vmatpush1.msra.mxu0 0.0
        %551 = vmatprep.subr.mxu0 0.0
        %552 = vmatpush1.msra.mxu0 0.0
        %553 = vmatprep.subr.mxu0 0.0
        %554 = vmatpush1.msra.mxu0 0.0
        %555 = vmatprep.subr.mxu0 0.0
        %556 = vmatpush1.msra.mxu0 0.0
        %557 = vmatprep.subr.mxu0 0.0
        %558 = vmatpush1.msra.mxu0 0.0
        %559 = vmatprep.subr.mxu0 0.0
        %560 = vmatpush1.msra.mxu0 0.0
        %561 = vmatprep.subr.mxu0 0.0
        %562 = vmatpush1.msra.mxu0 0.0
        %563 = vmatprep.subr.mxu0 0.0
        %564 = vmatpush1.msra.mxu0 0.0
        %565 = vmatprep.subr.mxu0 0.0
        %566 = vmatpush1.msra.mxu0 0.0
        %567 = vmatprep.subr.mxu0 0.0
        %568 = vmatpush1.msra.mxu0 0.0
        %569 = vmatprep.subr.mxu0 0.0
        %570 = vmatpush1.msra.mxu0 0.0
        %571 = vmatprep.subr.mxu0 0.0
        %572 = vmatpush1.msra.mxu0 0.0
        %573 = vmatprep.subr.mxu0 0.0
        %574 = vmatpush1.msra.mxu0 0.0
        %575 = vmatprep.subr.mxu0 0.0
        %576 = vmatpush1.msra.mxu0 %v543
        %577 = vmatprep.subr.mxu0 0.0
        %578 = vmatpush2.msra.mxu0 0.0
        %579 = vmatprep.subr.mxu0 0.0
        %580 = vmatpush2.msra.mxu0 0.0
        %581 = vmatprep.subr.mxu0 0.0
        %582 = vmatpush2.msra.mxu0 0.0
        %583 = vmatprep.subr.mxu0 0.0
        %584 = vmatpush2.msra.mxu0 0.0
        %585 = vmatprep.subr.mxu0 0.0
        %586 = vmatpush2.msra.mxu0 0.0
        %587 = vmatprep.subr.mxu0 0.0
        %588 = vmatpush2.msra.mxu0 0.0
        %589 = vmatprep.subr.mxu0 0.0
        %590 = vmatpush2.msra.mxu0 0.0
        %591 = vmatprep.subr.mxu0 0.0
        %592 = vmatpush2.msra.mxu0 0.0
        %593 = vmatprep.subr.mxu0 0.0
        %594 = vmatpush2.msra.mxu0 0.0
        %595 = vmatprep.subr.mxu0 0.0
        %596 = vmatpush2.msra.mxu0 0.0
        %597 = vmatprep.subr.mxu0 0.0
        %598 = vmatpush2.msra.mxu0 0.0
        %599 = vmatprep.subr.mxu0 0.0
        %600 = vmatpush2.msra.mxu0 0.0
        %601 = vmatprep.subr.mxu0 0.0
        %602 = vmatpush2.msra.mxu0 0.0
        %603 = vmatprep.subr.mxu0 0.0
        %604 = vmatpush2.msra.mxu0 0.0
        %605 = vmatprep.subr.mxu0 0.0
        %606 = vmatpush2.msra.mxu0 0.0
        %607 = vmatprep.subr.mxu0 0.0
        %608 = vmatpush2.msra.mxu0 0.0
        %609 = vmatprep.mubr.f32.mxu0 0.0
        %610 = vmatmul.mubr.f32.gmra.mxu0 %v541
        %v611 = vpop.f32.mrf.mxu0
        %v612 = vadd.f32 %v537, %v611
        %v613 = vpop.f32.mrf.mxu0
        %614 = vdwg.mxu0
        %v619 = vrot.slane %v435, 7
        %v620 = vsel %vm453, %v619, %v430
        %v621 = vrot.slane %v440, 6
        %v622 = vsel %vm456, %v621, %v620
        %v623 = vrot.slane %v445, 5
        %v624 = vsel %vm459, %v623, %v622
        %v626 = vsel %vm463, %v242, 0
        %v628 = vsel %vm467, %v624, 0
        %630 = vmatprep.subr.mxu0 0.0
        %631 = vmatpush1.msra.mxu0 0.0
        %632 = vmatprep.subr.mxu0 0.0
        %633 = vmatpush1.msra.mxu0 0.0
        %634 = vmatprep.subr.mxu0 0.0
        %635 = vmatpush1.msra.mxu0 0.0
        %636 = vmatprep.subr.mxu0 0.0
        %637 = vmatpush1.msra.mxu0 0.0
        %638 = vmatprep.subr.mxu0 0.0
        %639 = vmatpush1.msra.mxu0 0.0
        %640 = vmatprep.subr.mxu0 0.0
        %641 = vmatpush1.msra.mxu0 0.0
        %642 = vmatprep.subr.mxu0 0.0
        %643 = vmatpush1.msra.mxu0 0.0
        %644 = vmatprep.subr.mxu0 0.0
        %645 = vmatpush1.msra.mxu0 0.0
        %646 = vmatprep.subr.mxu0 0.0
        %647 = vmatpush1.msra.mxu0 0.0
        %648 = vmatprep.subr.mxu0 0.0
        %649 = vmatpush1.msra.mxu0 0.0
        %650 = vmatprep.subr.mxu0 0.0
        %651 = vmatpush1.msra.mxu0 0.0
        %652 = vmatprep.subr.mxu0 0.0
        %653 = vmatpush1.msra.mxu0 0.0
        %654 = vmatprep.subr.mxu0 0.0
        %655 = vmatpush1.msra.mxu0 0.0
        %656 = vmatprep.subr.mxu0 0.0
        %657 = vmatpush1.msra.mxu0 0.0
        %658 = vmatprep.subr.mxu0 0.0
        %659 = vmatpush1.msra.mxu0 0.0
        %660 = vmatprep.subr.mxu0 0.0
        %661 = vmatpush1.msra.mxu0 %v628
        %662 = vmatprep.subr.mxu0 0.0
        %663 = vmatpush2.msra.mxu0 0.0
        %664 = vmatprep.subr.mxu0 0.0
        %665 = vmatpush2.msra.mxu0 0.0
        %666 = vmatprep.subr.mxu0 0.0
        %667 = vmatpush2.msra.mxu0 0.0
        %668 = vmatprep.subr.mxu0 0.0
        %669 = vmatpush2.msra.mxu0 0.0
        %670 = vmatprep.subr.mxu0 0.0
        %671 = vmatpush2.msra.mxu0 0.0
        %672 = vmatprep.subr.mxu0 0.0
        %673 = vmatpush2.msra.mxu0 0.0
        %674 = vmatprep.subr.mxu0 0.0
        %675 = vmatpush2.msra.mxu0 0.0
        %676 = vmatprep.subr.mxu0 0.0
        %677 = vmatpush2.msra.mxu0 0.0
        %678 = vmatprep.subr.mxu0 0.0
        %679 = vmatpush2.msra.mxu0 0.0
        %680 = vmatprep.subr.mxu0 0.0
        %681 = vmatpush2.msra.mxu0 0.0
        %682 = vmatprep.subr.mxu0 0.0
        %683 = vmatpush2.msra.mxu0 0.0
        %684 = vmatprep.subr.mxu0 0.0
        %685 = vmatpush2.msra.mxu0 0.0
        %686 = vmatprep.subr.mxu0 0.0
        %687 = vmatpush2.msra.mxu0 0.0
        %688 = vmatprep.subr.mxu0 0.0
        %689 = vmatpush2.msra.mxu0 0.0
        %690 = vmatprep.subr.mxu0 0.0
        %691 = vmatpush2.msra.mxu0 0.0
        %692 = vmatprep.subr.mxu0 0.0
        %693 = vmatpush2.msra.mxu0 0.0
        %694 = vmatprep.mubr.f32.mxu0 0.0
        %695 = vmatmul.mubr.f32.gmra.mxu0 %v626
        %v696 = vpop.f32.mrf.mxu0
        %v697 = vadd.f32 0.0, %v696
        %v698 = vpop.f32.mrf.mxu0
        %699 = vdwg.mxu0
        %v700 = vadd.f32 %v612, %v697
        %701 = vrot.lane.b32.xlu0 %v624, 120
        %v702 = vpop.permute.xlu0 %701
        %v704 = vsel %vm463, %v244, 0
        %v706 = vsel %vm467, %v702, 0
        %708 = vmatprep.subr.mxu0 0.0
        %709 = vmatpush1.msra.mxu0 0.0
        %710 = vmatprep.subr.mxu0 0.0
        %711 = vmatpush1.msra.mxu0 0.0
        %712 = vmatprep.subr.mxu0 0.0
        %713 = vmatpush1.msra.mxu0 0.0
        %714 = vmatprep.subr.mxu0 0.0
        %715 = vmatpush1.msra.mxu0 0.0
        %716 = vmatprep.subr.mxu0 0.0
        %717 = vmatpush1.msra.mxu0 0.0
        %718 = vmatprep.subr.mxu0 0.0
        %719 = vmatpush1.msra.mxu0 0.0
        %720 = vmatprep.subr.mxu0 0.0
        %721 = vmatpush1.msra.mxu0 0.0
        %722 = vmatprep.subr.mxu0 0.0
        %723 = vmatpush1.msra.mxu0 0.0
        %724 = vmatprep.subr.mxu0 0.0
        %725 = vmatpush1.msra.mxu0 0.0
        %726 = vmatprep.subr.mxu0 0.0
        %727 = vmatpush1.msra.mxu0 0.0
        %728 = vmatprep.subr.mxu0 0.0
        %729 = vmatpush1.msra.mxu0 0.0
        %730 = vmatprep.subr.mxu0 0.0
        %731 = vmatpush1.msra.mxu0 0.0
        %732 = vmatprep.subr.mxu0 0.0
        %733 = vmatpush1.msra.mxu0 0.0
        %734 = vmatprep.subr.mxu0 0.0
        %735 = vmatpush1.msra.mxu0 0.0
        %736 = vmatprep.subr.mxu0 0.0
        %737 = vmatpush1.msra.mxu0 0.0
        %738 = vmatprep.subr.mxu0 0.0
        %739 = vmatpush1.msra.mxu0 %v706
        %740 = vmatprep.subr.mxu0 0.0
        %741 = vmatpush2.msra.mxu0 0.0
        %742 = vmatprep.subr.mxu0 0.0
        %743 = vmatpush2.msra.mxu0 0.0
        %744 = vmatprep.subr.mxu0 0.0
        %745 = vmatpush2.msra.mxu0 0.0
        %746 = vmatprep.subr.mxu0 0.0
        %747 = vmatpush2.msra.mxu0 0.0
        %748 = vmatprep.subr.mxu0 0.0
        %749 = vmatpush2.msra.mxu0 0.0
        %750 = vmatprep.subr.mxu0 0.0
        %751 = vmatpush2.msra.mxu0 0.0
        %752 = vmatprep.subr.mxu0 0.0
        %753 = vmatpush2.msra.mxu0 0.0
        %754 = vmatprep.subr.mxu0 0.0
        %755 = vmatpush2.msra.mxu0 0.0
        %756 = vmatprep.subr.mxu0 0.0
        %757 = vmatpush2.msra.mxu0 0.0
        %758 = vmatprep.subr.mxu0 0.0
        %759 = vmatpush2.msra.mxu0 0.0
        %760 = vmatprep.subr.mxu0 0.0
        %761 = vmatpush2.msra.mxu0 0.0
        %762 = vmatprep.subr.mxu0 0.0
        %763 = vmatpush2.msra.mxu0 0.0
        %764 = vmatprep.subr.mxu0 0.0
        %765 = vmatpush2.msra.mxu0 0.0
        %766 = vmatprep.subr.mxu0 0.0
        %767 = vmatpush2.msra.mxu0 0.0
        %768 = vmatprep.subr.mxu0 0.0
        %769 = vmatpush2.msra.mxu0 0.0
        %770 = vmatprep.subr.mxu0 0.0
        %771 = vmatpush2.msra.mxu0 0.0
        %772 = vmatprep.mubr.f32.mxu0 0.0
        %773 = vmatmul.mubr.f32.gmra.mxu0 %v704
        %v774 = vpop.f32.mrf.mxu0
        %v775 = vadd.f32 0.0, %v774
        %v776 = vpop.f32.mrf.mxu0
        %777 = vdwg.mxu0
        %v778 = vadd.f32 %v700, %v775
        %780 = vset.pattern.permute.xlu0 0
        %781 = vperm.xlu0 %780, %v237
        %v782 = vpop.permute.xlu0 %781
        %v784 = vadd.f32 %v778, %v782
        %vm785 = vcmask 64512
        %786 = vst.msk [vmem:[%s232] sm:$0xff] %vm785, %v784
        %v787 = vrot.slane %v329, 1
        %v788 = vsel %vm453, %v334, %v787
        %v789 = vrot.slane %v339, 7
        %v790 = vsel %vm456, %v789, %v788
        %v791 = vrot.slane %v344, 6
        %v792 = vsel %vm459, %v791, %v790
        %793 = vrot.lane.b32.xlu0 %v792, 120
        %v794 = vpop.permute.xlu0 %793
        %v795 = vsel %vm467, %v794, 0
        %797 = vmatprep.subr.mxu0 0.0
        %798 = vmatpush1.msra.mxu0 0.0
        %799 = vmatprep.subr.mxu0 0.0
        %800 = vmatpush1.msra.mxu0 0.0
        %801 = vmatprep.subr.mxu0 0.0
        %802 = vmatpush1.msra.mxu0 0.0
        %803 = vmatprep.subr.mxu0 0.0
        %804 = vmatpush1.msra.mxu0 0.0
        %805 = vmatprep.subr.mxu0 0.0
        %806 = vmatpush1.msra.mxu0 0.0
        %807 = vmatprep.subr.mxu0 0.0
        %808 = vmatpush1.msra.mxu0 0.0
        %809 = vmatprep.subr.mxu0 0.0
        %810 = vmatpush1.msra.mxu0 0.0
        %811 = vmatprep.subr.mxu0 0.0
        %812 = vmatpush1.msra.mxu0 0.0
        %813 = vmatprep.subr.mxu0 0.0
        %814 = vmatpush1.msra.mxu0 0.0
        %815 = vmatprep.subr.mxu0 0.0
        %816 = vmatpush1.msra.mxu0 0.0
        %817 = vmatprep.subr.mxu0 0.0
        %818 = vmatpush1.msra.mxu0 0.0
        %819 = vmatprep.subr.mxu0 0.0
        %820 = vmatpush1.msra.mxu0 0.0
        %821 = vmatprep.subr.mxu0 0.0
        %822 = vmatpush1.msra.mxu0 0.0
        %823 = vmatprep.subr.mxu0 0.0
        %824 = vmatpush1.msra.mxu0 0.0
        %825 = vmatprep.subr.mxu0 0.0
        %826 = vmatpush1.msra.mxu0 0.0
        %827 = vmatprep.subr.mxu0 0.0
        %828 = vmatpush1.msra.mxu0 %v795
        %829 = vmatprep.subr.mxu0 0.0
        %830 = vmatpush2.msra.mxu0 0.0
        %831 = vmatprep.subr.mxu0 0.0
        %832 = vmatpush2.msra.mxu0 0.0
        %833 = vmatprep.subr.mxu0 0.0
        %834 = vmatpush2.msra.mxu0 0.0
        %835 = vmatprep.subr.mxu0 0.0
        %836 = vmatpush2.msra.mxu0 0.0
        %837 = vmatprep.subr.mxu0 0.0
        %838 = vmatpush2.msra.mxu0 0.0
        %839 = vmatprep.subr.mxu0 0.0
        %840 = vmatpush2.msra.mxu0 0.0
        %841 = vmatprep.subr.mxu0 0.0
        %842 = vmatpush2.msra.mxu0 0.0
        %843 = vmatprep.subr.mxu0 0.0
        %844 = vmatpush2.msra.mxu0 0.0
        %845 = vmatprep.subr.mxu0 0.0
        %846 = vmatpush2.msra.mxu0 0.0
        %847 = vmatprep.subr.mxu0 0.0
        %848 = vmatpush2.msra.mxu0 0.0
        %849 = vmatprep.subr.mxu0 0.0
        %850 = vmatpush2.msra.mxu0 0.0
        %851 = vmatprep.subr.mxu0 0.0
        %852 = vmatpush2.msra.mxu0 0.0
        %853 = vmatprep.subr.mxu0 0.0
        %854 = vmatpush2.msra.mxu0 0.0
        %855 = vmatprep.subr.mxu0 0.0
        %856 = vmatpush2.msra.mxu0 0.0
        %857 = vmatprep.subr.mxu0 0.0
        %858 = vmatpush2.msra.mxu0 0.0
        %859 = vmatprep.subr.mxu0 0.0
        %860 = vmatpush2.msra.mxu0 0.0
        %861 = vmatprep.mubr.f32.mxu0 0.0
        %862 = vmatmul.mubr.f32.gmra.mxu0 %v465
        %v863 = vpop.f32.mrf.mxu0
        %v864 = vadd.f32 0.0, %v863
        %v865 = vpop.f32.mrf.mxu0
        %866 = vdwg.mxu0
        %v867 = vsel %vm467, %v792, 0
        %869 = vmatprep.subr.mxu0 0.0
        %870 = vmatpush1.msra.mxu0 0.0
        %871 = vmatprep.subr.mxu0 0.0
        %872 = vmatpush1.msra.mxu0 0.0
        %873 = vmatprep.subr.mxu0 0.0
        %874 = vmatpush1.msra.mxu0 0.0
        %875 = vmatprep.subr.mxu0 0.0
        %876 = vmatpush1.msra.mxu0 0.0
        %877 = vmatprep.subr.mxu0 0.0
        %878 = vmatpush1.msra.mxu0 0.0
        %879 = vmatprep.subr.mxu0 0.0
        %880 = vmatpush1.msra.mxu0 0.0
        %881 = vmatprep.subr.mxu0 0.0
        %882 = vmatpush1.msra.mxu0 0.0
        %883 = vmatprep.subr.mxu0 0.0
        %884 = vmatpush1.msra.mxu0 0.0
        %885 = vmatprep.subr.mxu0 0.0
        %886 = vmatpush1.msra.mxu0 0.0
        %887 = vmatprep.subr.mxu0 0.0
        %888 = vmatpush1.msra.mxu0 0.0
        %889 = vmatprep.subr.mxu0 0.0
        %890 = vmatpush1.msra.mxu0 0.0
        %891 = vmatprep.subr.mxu0 0.0
        %892 = vmatpush1.msra.mxu0 0.0
        %893 = vmatprep.subr.mxu0 0.0
        %894 = vmatpush1.msra.mxu0 0.0
        %895 = vmatprep.subr.mxu0 0.0
        %896 = vmatpush1.msra.mxu0 0.0
        %897 = vmatprep.subr.mxu0 0.0
        %898 = vmatpush1.msra.mxu0 0.0
        %899 = vmatprep.subr.mxu0 0.0
        %900 = vmatpush1.msra.mxu0 %v867
        %901 = vmatprep.subr.mxu0 0.0
        %902 = vmatpush2.msra.mxu0 0.0
        %903 = vmatprep.subr.mxu0 0.0
        %904 = vmatpush2.msra.mxu0 0.0
        %905 = vmatprep.subr.mxu0 0.0
        %906 = vmatpush2.msra.mxu0 0.0
        %907 = vmatprep.subr.mxu0 0.0
        %908 = vmatpush2.msra.mxu0 0.0
        %909 = vmatprep.subr.mxu0 0.0
        %910 = vmatpush2.msra.mxu0 0.0
        %911 = vmatprep.subr.mxu0 0.0
        %912 = vmatpush2.msra.mxu0 0.0
        %913 = vmatprep.subr.mxu0 0.0
        %914 = vmatpush2.msra.mxu0 0.0
        %915 = vmatprep.subr.mxu0 0.0
        %916 = vmatpush2.msra.mxu0 0.0
        %917 = vmatprep.subr.mxu0 0.0
        %918 = vmatpush2.msra.mxu0 0.0
        %919 = vmatprep.subr.mxu0 0.0
        %920 = vmatpush2.msra.mxu0 0.0
        %921 = vmatprep.subr.mxu0 0.0
        %922 = vmatpush2.msra.mxu0 0.0
        %923 = vmatprep.subr.mxu0 0.0
        %924 = vmatpush2.msra.mxu0 0.0
        %925 = vmatprep.subr.mxu0 0.0
        %926 = vmatpush2.msra.mxu0 0.0
        %927 = vmatprep.subr.mxu0 0.0
        %928 = vmatpush2.msra.mxu0 0.0
        %929 = vmatprep.subr.mxu0 0.0
        %930 = vmatpush2.msra.mxu0 0.0
        %931 = vmatprep.subr.mxu0 0.0
        %932 = vmatpush2.msra.mxu0 0.0
        %933 = vmatprep.mubr.f32.mxu0 0.0
        %934 = vmatmul.mubr.f32.gmra.mxu0 %v541
        %v935 = vpop.f32.mrf.mxu0
        %v936 = vadd.f32 %v864, %v935
        %v937 = vpop.f32.mrf.mxu0
        %938 = vdwg.mxu0
        %v939 = vrot.slane %v430, 1
        %v940 = vsel %vm453, %v435, %v939
        %v941 = vrot.slane %v440, 7
        %v942 = vsel %vm456, %v941, %v940
        %v943 = vrot.slane %v445, 6
        %v944 = vsel %vm459, %v943, %v942
        %v945 = vsel %vm467, %v944, 0
        %947 = vmatprep.subr.mxu0 0.0
        %948 = vmatpush1.msra.mxu0 0.0
        %949 = vmatprep.subr.mxu0 0.0
        %950 = vmatpush1.msra.mxu0 0.0
        %951 = vmatprep.subr.mxu0 0.0
        %952 = vmatpush1.msra.mxu0 0.0
        %953 = vmatprep.subr.mxu0 0.0
        %954 = vmatpush1.msra.mxu0 0.0
        %955 = vmatprep.subr.mxu0 0.0
        %956 = vmatpush1.msra.mxu0 0.0
        %957 = vmatprep.subr.mxu0 0.0
        %958 = vmatpush1.msra.mxu0 0.0
        %959 = vmatprep.subr.mxu0 0.0
        %960 = vmatpush1.msra.mxu0 0.0
        %961 = vmatprep.subr.mxu0 0.0
        %962 = vmatpush1.msra.mxu0 0.0
        %963 = vmatprep.subr.mxu0 0.0
        %964 = vmatpush1.msra.mxu0 0.0
        %965 = vmatprep.subr.mxu0 0.0
        %966 = vmatpush1.msra.mxu0 0.0
        %967 = vmatprep.subr.mxu0 0.0
        %968 = vmatpush1.msra.mxu0 0.0
        %969 = vmatprep.subr.mxu0 0.0
        %970 = vmatpush1.msra.mxu0 0.0
        %971 = vmatprep.subr.mxu0 0.0
        %972 = vmatpush1.msra.mxu0 0.0
        %973 = vmatprep.subr.mxu0 0.0
        %974 = vmatpush1.msra.mxu0 0.0
        %975 = vmatprep.subr.mxu0 0.0
        %976 = vmatpush1.msra.mxu0 0.0
        %977 = vmatprep.subr.mxu0 0.0
        %978 = vmatpush1.msra.mxu0 %v945
        %979 = vmatprep.subr.mxu0 0.0
        %980 = vmatpush2.msra.mxu0 0.0
        %981 = vmatprep.subr.mxu0 0.0
        %982 = vmatpush2.msra.mxu0 0.0
        %983 = vmatprep.subr.mxu0 0.0
        %984 = vmatpush2.msra.mxu0 0.0
        %985 = vmatprep.subr.mxu0 0.0
        %986 = vmatpush2.msra.mxu0 0.0
        %987 = vmatprep.subr.mxu0 0.0
        %988 = vmatpush2.msra.mxu0 0.0
        %989 = vmatprep.subr.mxu0 0.0
        %990 = vmatpush2.msra.mxu0 0.0
        %991 = vmatprep.subr.mxu0 0.0
        %992 = vmatpush2.msra.mxu0 0.0
        %993 = vmatprep.subr.mxu0 0.0
        %994 = vmatpush2.msra.mxu0 0.0
        %995 = vmatprep.subr.mxu0 0.0
        %996 = vmatpush2.msra.mxu0 0.0
        %997 = vmatprep.subr.mxu0 0.0
        %998 = vmatpush2.msra.mxu0 0.0
        %999 = vmatprep.subr.mxu0 0.0
        %1000 = vmatpush2.msra.mxu0 0.0
        %1001 = vmatprep.subr.mxu0 0.0
        %1002 = vmatpush2.msra.mxu0 0.0
        %1003 = vmatprep.subr.mxu0 0.0
        %1004 = vmatpush2.msra.mxu0 0.0
        %1005 = vmatprep.subr.mxu0 0.0
        %1006 = vmatpush2.msra.mxu0 0.0
        %1007 = vmatprep.subr.mxu0 0.0
        %1008 = vmatpush2.msra.mxu0 0.0
        %1009 = vmatprep.subr.mxu0 0.0
        %1010 = vmatpush2.msra.mxu0 0.0
        %1011 = vmatprep.mubr.f32.mxu0 0.0
        %1012 = vmatmul.mubr.f32.gmra.mxu0 %v626
        %v1013 = vpop.f32.mrf.mxu0
        %v1014 = vadd.f32 0.0, %v1013
        %v1015 = vpop.f32.mrf.mxu0
        %1016 = vdwg.mxu0
        %v1017 = vadd.f32 %v936, %v1014
        %1018 = vrot.lane.b32.xlu0 %v944, 120
        %v1019 = vpop.permute.xlu0 %1018
        %v1020 = vsel %vm467, %v1019, 0
        %1022 = vmatprep.subr.mxu0 0.0
        %1023 = vmatpush1.msra.mxu0 0.0
        %1024 = vmatprep.subr.mxu0 0.0
        %1025 = vmatpush1.msra.mxu0 0.0
        %1026 = vmatprep.subr.mxu0 0.0
        %1027 = vmatpush1.msra.mxu0 0.0
        %1028 = vmatprep.subr.mxu0 0.0
        %1029 = vmatpush1.msra.mxu0 0.0
        %1030 = vmatprep.subr.mxu0 0.0
        %1031 = vmatpush1.msra.mxu0 0.0
        %1032 = vmatprep.subr.mxu0 0.0
        %1033 = vmatpush1.msra.mxu0 0.0
        %1034 = vmatprep.subr.mxu0 0.0
        %1035 = vmatpush1.msra.mxu0 0.0
        %1036 = vmatprep.subr.mxu0 0.0
        %1037 = vmatpush1.msra.mxu0 0.0
        %1038 = vmatprep.subr.mxu0 0.0
        %1039 = vmatpush1.msra.mxu0 0.0
        %1040 = vmatprep.subr.mxu0 0.0
        %1041 = vmatpush1.msra.mxu0 0.0
        %1042 = vmatprep.subr.mxu0 0.0
        %1043 = vmatpush1.msra.mxu0 0.0
        %1044 = vmatprep.subr.mxu0 0.0
        %1045 = vmatpush1.msra.mxu0 0.0
        %1046 = vmatprep.subr.mxu0 0.0
        %1047 = vmatpush1.msra.mxu0 0.0
        %1048 = vmatprep.subr.mxu0 0.0
        %1049 = vmatpush1.msra.mxu0 0.0
        %1050 = vmatprep.subr.mxu0 0.0
        %1051 = vmatpush1.msra.mxu0 0.0
        %1052 = vmatprep.subr.mxu0 0.0
        %1053 = vmatpush1.msra.mxu0 %v1020
        %1054 = vmatprep.subr.mxu0 0.0
        %1055 = vmatpush2.msra.mxu0 0.0
        %1056 = vmatprep.subr.mxu0 0.0
        %1057 = vmatpush2.msra.mxu0 0.0
        %1058 = vmatprep.subr.mxu0 0.0
        %1059 = vmatpush2.msra.mxu0 0.0
        %1060 = vmatprep.subr.mxu0 0.0
        %1061 = vmatpush2.msra.mxu0 0.0
        %1062 = vmatprep.subr.mxu0 0.0
        %1063 = vmatpush2.msra.mxu0 0.0
        %1064 = vmatprep.subr.mxu0 0.0
        %1065 = vmatpush2.msra.mxu0 0.0
        %1066 = vmatprep.subr.mxu0 0.0
        %1067 = vmatpush2.msra.mxu0 0.0
        %1068 = vmatprep.subr.mxu0 0.0
        %1069 = vmatpush2.msra.mxu0 0.0
        %1070 = vmatprep.subr.mxu0 0.0
        %1071 = vmatpush2.msra.mxu0 0.0
        %1072 = vmatprep.subr.mxu0 0.0
        %1073 = vmatpush2.msra.mxu0 0.0
        %1074 = vmatprep.subr.mxu0 0.0
        %1075 = vmatpush2.msra.mxu0 0.0
        %1076 = vmatprep.subr.mxu0 0.0
        %1077 = vmatpush2.msra.mxu0 0.0
        %1078 = vmatprep.subr.mxu0 0.0
        %1079 = vmatpush2.msra.mxu0 0.0
        %1080 = vmatprep.subr.mxu0 0.0
        %1081 = vmatpush2.msra.mxu0 0.0
        %1082 = vmatprep.subr.mxu0 0.0
        %1083 = vmatpush2.msra.mxu0 0.0
        %1084 = vmatprep.subr.mxu0 0.0
        %1085 = vmatpush2.msra.mxu0 0.0
        %1086 = vmatprep.mubr.f32.mxu0 0.0
        %1087 = vmatmul.mubr.f32.gmra.mxu0 %v704
        %v1088 = vpop.f32.mrf.mxu0
        %v1089 = vadd.f32 0.0, %v1088
        %v1090 = vpop.f32.mrf.mxu0
        %1091 = vdwg.mxu0
        %v1092 = vadd.f32 %v1017, %v1089
        %v1093 = vadd.f32 %v1092, %v782
        %1095 = vrot.lane.b32.xlu0 %v1093, 8
        %v1096 = vpop.permute.xlu0 %1095
        %vm1098 = vcmask 130112
        %1099 = vst.msk [vmem:[%s232] sm:$0xff] %vm1098, %v1096
        %v1100 = vrot.slane %v329, 2
        %v1101 = vrot.slane %v334, 1
        %v1102 = vsel %vm453, %v1101, %v1100
        %v1103 = vsel %vm456, %v339, %v1102
        %v1104 = vrot.slane %v344, 7
        %v1105 = vsel %vm459, %v1104, %v1103
        %1106 = vrot.lane.b32.xlu0 %v1105, 120
        %v1107 = vpop.permute.xlu0 %1106
        %v1108 = vsel %vm467, %v1107, 0
        %1110 = vmatprep.subr.mxu0 0.0
        %1111 = vmatpush1.msra.mxu0 0.0
        %1112 = vmatprep.subr.mxu0 0.0
        %1113 = vmatpush1.msra.mxu0 0.0
        %1114 = vmatprep.subr.mxu0 0.0
        %1115 = vmatpush1.msra.mxu0 0.0
        %1116 = vmatprep.subr.mxu0 0.0
        %1117 = vmatpush1.msra.mxu0 0.0
        %1118 = vmatprep.subr.mxu0 0.0
        %1119 = vmatpush1.msra.mxu0 0.0
        %1120 = vmatprep.subr.mxu0 0.0
        %1121 = vmatpush1.msra.mxu0 0.0
        %1122 = vmatprep.subr.mxu0 0.0
        %1123 = vmatpush1.msra.mxu0 0.0
        %1124 = vmatprep.subr.mxu0 0.0
        %1125 = vmatpush1.msra.mxu0 0.0
        %1126 = vmatprep.subr.mxu0 0.0
        %1127 = vmatpush1.msra.mxu0 0.0
        %1128 = vmatprep.subr.mxu0 0.0
        %1129 = vmatpush1.msra.mxu0 0.0
        %1130 = vmatprep.subr.mxu0 0.0
        %1131 = vmatpush1.msra.mxu0 0.0
        %1132 = vmatprep.subr.mxu0 0.0
        %1133 = vmatpush1.msra.mxu0 0.0
        %1134 = vmatprep.subr.mxu0 0.0
        %1135 = vmatpush1.msra.mxu0 0.0
        %1136 = vmatprep.subr.mxu0 0.0
        %1137 = vmatpush1.msra.mxu0 0.0
        %1138 = vmatprep.subr.mxu0 0.0
        %1139 = vmatpush1.msra.mxu0 0.0
        %1140 = vmatprep.subr.mxu0 0.0
        %1141 = vmatpush1.msra.mxu0 %v1108
        %1142 = vmatprep.subr.mxu0 0.0
        %1143 = vmatpush2.msra.mxu0 0.0
        %1144 = vmatprep.subr.mxu0 0.0
        %1145 = vmatpush2.msra.mxu0 0.0
        %1146 = vmatprep.subr.mxu0 0.0
        %1147 = vmatpush2.msra.mxu0 0.0
        %1148 = vmatprep.subr.mxu0 0.0
        %1149 = vmatpush2.msra.mxu0 0.0
        %1150 = vmatprep.subr.mxu0 0.0
        %1151 = vmatpush2.msra.mxu0 0.0
        %1152 = vmatprep.subr.mxu0 0.0
        %1153 = vmatpush2.msra.mxu0 0.0
        %1154 = vmatprep.subr.mxu0 0.0
        %1155 = vmatpush2.msra.mxu0 0.0
        %1156 = vmatprep.subr.mxu0 0.0
        %1157 = vmatpush2.msra.mxu0 0.0
        %1158 = vmatprep.subr.mxu0 0.0
        %1159 = vmatpush2.msra.mxu0 0.0
        %1160 = vmatprep.subr.mxu0 0.0
        %1161 = vmatpush2.msra.mxu0 0.0
        %1162 = vmatprep.subr.mxu0 0.0
        %1163 = vmatpush2.msra.mxu0 0.0
        %1164 = vmatprep.subr.mxu0 0.0
        %1165 = vmatpush2.msra.mxu0 0.0
        %1166 = vmatprep.subr.mxu0 0.0
        %1167 = vmatpush2.msra.mxu0 0.0
        %1168 = vmatprep.subr.mxu0 0.0
        %1169 = vmatpush2.msra.mxu0 0.0
        %1170 = vmatprep.subr.mxu0 0.0
        %1171 = vmatpush2.msra.mxu0 0.0
        %1172 = vmatprep.subr.mxu0 0.0
        %1173 = vmatpush2.msra.mxu0 0.0
        %1174 = vmatprep.mubr.f32.mxu0 0.0
        %1175 = vmatmul.mubr.f32.gmra.mxu0 %v465
        %v1176 = vpop.f32.mrf.mxu0
        %v1177 = vadd.f32 0.0, %v1176
        %v1178 = vpop.f32.mrf.mxu0
        %1179 = vdwg.mxu0
        %v1180 = vsel %vm467, %v1105, 0
        %1182 = vmatprep.subr.mxu0 0.0
        %1183 = vmatpush1.msra.mxu0 0.0
        %1184 = vmatprep.subr.mxu0 0.0
        %1185 = vmatpush1.msra.mxu0 0.0
        %1186 = vmatprep.subr.mxu0 0.0
        %1187 = vmatpush1.msra.mxu0 0.0
        %1188 = vmatprep.subr.mxu0 0.0
        %1189 = vmatpush1.msra.mxu0 0.0
        %1190 = vmatprep.subr.mxu0 0.0
        %1191 = vmatpush1.msra.mxu0 0.0
        %1192 = vmatprep.subr.mxu0 0.0
        %1193 = vmatpush1.msra.mxu0 0.0
        %1194 = vmatprep.subr.mxu0 0.0
        %1195 = vmatpush1.msra.mxu0 0.0
        %1196 = vmatprep.subr.mxu0 0.0
        %1197 = vmatpush1.msra.mxu0 0.0
        %1198 = vmatprep.subr.mxu0 0.0
        %1199 = vmatpush1.msra.mxu0 0.0
        %1200 = vmatprep.subr.mxu0 0.0
        %1201 = vmatpush1.msra.mxu0 0.0
        %1202 = vmatprep.subr.mxu0 0.0
        %1203 = vmatpush1.msra.mxu0 0.0
        %1204 = vmatprep.subr.mxu0 0.0
        %1205 = vmatpush1.msra.mxu0 0.0
        %1206 = vmatprep.subr.mxu0 0.0
        %1207 = vmatpush1.msra.mxu0 0.0
        %1208 = vmatprep.subr.mxu0 0.0
        %1209 = vmatpush1.msra.mxu0 0.0
        %1210 = vmatprep.subr.mxu0 0.0
        %1211 = vmatpush1.msra.mxu0 0.0
        %1212 = vmatprep.subr.mxu0 0.0
        %1213 = vmatpush1.msra.mxu0 %v1180
        %1214 = vmatprep.subr.mxu0 0.0
        %1215 = vmatpush2.msra.mxu0 0.0
        %1216 = vmatprep.subr.mxu0 0.0
        %1217 = vmatpush2.msra.mxu0 0.0
        %1218 = vmatprep.subr.mxu0 0.0
        %1219 = vmatpush2.msra.mxu0 0.0
        %1220 = vmatprep.subr.mxu0 0.0
        %1221 = vmatpush2.msra.mxu0 0.0
        %1222 = vmatprep.subr.mxu0 0.0
        %1223 = vmatpush2.msra.mxu0 0.0
        %1224 = vmatprep.subr.mxu0 0.0
        %1225 = vmatpush2.msra.mxu0 0.0
        %1226 = vmatprep.subr.mxu0 0.0
        %1227 = vmatpush2.msra.mxu0 0.0
        %1228 = vmatprep.subr.mxu0 0.0
        %1229 = vmatpush2.msra.mxu0 0.0
        %1230 = vmatprep.subr.mxu0 0.0
        %1231 = vmatpush2.msra.mxu0 0.0
        %1232 = vmatprep.subr.mxu0 0.0
        %1233 = vmatpush2.msra.mxu0 0.0
        %1234 = vmatprep.subr.mxu0 0.0
        %1235 = vmatpush2.msra.mxu0 0.0
        %1236 = vmatprep.subr.mxu0 0.0
        %1237 = vmatpush2.msra.mxu0 0.0
        %1238 = vmatprep.subr.mxu0 0.0
        %1239 = vmatpush2.msra.mxu0 0.0
        %1240 = vmatprep.subr.mxu0 0.0
        %1241 = vmatpush2.msra.mxu0 0.0
        %1242 = vmatprep.subr.mxu0 0.0
        %1243 = vmatpush2.msra.mxu0 0.0
        %1244 = vmatprep.subr.mxu0 0.0
        %1245 = vmatpush2.msra.mxu0 0.0
        %1246 = vmatprep.mubr.f32.mxu0 0.0
        %1247 = vmatmul.mubr.f32.gmra.mxu0 %v541
        %v1248 = vpop.f32.mrf.mxu0
        %v1249 = vadd.f32 %v1177, %v1248
        %v1250 = vpop.f32.mrf.mxu0
        %1251 = vdwg.mxu0
        %v1252 = vrot.slane %v430, 2
        %v1253 = vrot.slane %v435, 1
        %v1254 = vsel %vm453, %v1253, %v1252
        %v1255 = vsel %vm456, %v440, %v1254
        %v1256 = vrot.slane %v445, 7
        %v1257 = vsel %vm459, %v1256, %v1255
        %v1258 = vsel %vm467, %v1257, 0
        %1260 = vmatprep.subr.mxu0 0.0
        %1261 = vmatpush1.msra.mxu0 0.0
        %1262 = vmatprep.subr.mxu0 0.0
        %1263 = vmatpush1.msra.mxu0 0.0
        %1264 = vmatprep.subr.mxu0 0.0
        %1265 = vmatpush1.msra.mxu0 0.0
        %1266 = vmatprep.subr.mxu0 0.0
        %1267 = vmatpush1.msra.mxu0 0.0
        %1268 = vmatprep.subr.mxu0 0.0
        %1269 = vmatpush1.msra.mxu0 0.0
        %1270 = vmatprep.subr.mxu0 0.0
        %1271 = vmatpush1.msra.mxu0 0.0
        %1272 = vmatprep.subr.mxu0 0.0
        %1273 = vmatpush1.msra.mxu0 0.0
        %1274 = vmatprep.subr.mxu0 0.0
        %1275 = vmatpush1.msra.mxu0 0.0
        %1276 = vmatprep.subr.mxu0 0.0
        %1277 = vmatpush1.msra.mxu0 0.0
        %1278 = vmatprep.subr.mxu0 0.0
        %1279 = vmatpush1.msra.mxu0 0.0
        %1280 = vmatprep.subr.mxu0 0.0
        %1281 = vmatpush1.msra.mxu0 0.0
        %1282 = vmatprep.subr.mxu0 0.0
        %1283 = vmatpush1.msra.mxu0 0.0
        %1284 = vmatprep.subr.mxu0 0.0
        %1285 = vmatpush1.msra.mxu0 0.0
        %1286 = vmatprep.subr.mxu0 0.0
        %1287 = vmatpush1.msra.mxu0 0.0
        %1288 = vmatprep.subr.mxu0 0.0
        %1289 = vmatpush1.msra.mxu0 0.0
        %1290 = vmatprep.subr.mxu0 0.0
        %1291 = vmatpush1.msra.mxu0 %v1258
        %1292 = vmatprep.subr.mxu0 0.0
        %1293 = vmatpush2.msra.mxu0 0.0
        %1294 = vmatprep.subr.mxu0 0.0
        %1295 = vmatpush2.msra.mxu0 0.0
        %1296 = vmatprep.subr.mxu0 0.0
        %1297 = vmatpush2.msra.mxu0 0.0
        %1298 = vmatprep.subr.mxu0 0.0
        %1299 = vmatpush2.msra.mxu0 0.0
        %1300 = vmatprep.subr.mxu0 0.0
        %1301 = vmatpush2.msra.mxu0 0.0
        %1302 = vmatprep.subr.mxu0 0.0
        %1303 = vmatpush2.msra.mxu0 0.0
        %1304 = vmatprep.subr.mxu0 0.0
        %1305 = vmatpush2.msra.mxu0 0.0
        %1306 = vmatprep.subr.mxu0 0.0
        %1307 = vmatpush2.msra.mxu0 0.0
        %1308 = vmatprep.subr.mxu0 0.0
        %1309 = vmatpush2.msra.mxu0 0.0
        %1310 = vmatprep.subr.mxu0 0.0
        %1311 = vmatpush2.msra.mxu0 0.0
        %1312 = vmatprep.subr.mxu0 0.0
        %1313 = vmatpush2.msra.mxu0 0.0
        %1314 = vmatprep.subr.mxu0 0.0
        %1315 = vmatpush2.msra.mxu0 0.0
        %1316 = vmatprep.subr.mxu0 0.0
        %1317 = vmatpush2.msra.mxu0 0.0
        %1318 = vmatprep.subr.mxu0 0.0
        %1319 = vmatpush2.msra.mxu0 0.0
        %1320 = vmatprep.subr.mxu0 0.0
        %1321 = vmatpush2.msra.mxu0 0.0
        %1322 = vmatprep.subr.mxu0 0.0
        %1323 = vmatpush2.msra.mxu0 0.0
        %1324 = vmatprep.mubr.f32.mxu0 0.0
        %1325 = vmatmul.mubr.f32.gmra.mxu0 %v626
        %v1326 = vpop.f32.mrf.mxu0
        %v1327 = vadd.f32 0.0, %v1326
        %v1328 = vpop.f32.mrf.mxu0
        %1329 = vdwg.mxu0
        %v1330 = vadd.f32 %v1249, %v1327
        %1331 = vrot.lane.b32.xlu0 %v1257, 120
        %v1332 = vpop.permute.xlu0 %1331
        %v1333 = vsel %vm467, %v1332, 0
        %1335 = vmatprep.subr.mxu0 0.0
        %1336 = vmatpush1.msra.mxu0 0.0
        %1337 = vmatprep.subr.mxu0 0.0
        %1338 = vmatpush1.msra.mxu0 0.0
        %1339 = vmatprep.subr.mxu0 0.0
        %1340 = vmatpush1.msra.mxu0 0.0
        %1341 = vmatprep.subr.mxu0 0.0
        %1342 = vmatpush1.msra.mxu0 0.0
        %1343 = vmatprep.subr.mxu0 0.0
        %1344 = vmatpush1.msra.mxu0 0.0
        %1345 = vmatprep.subr.mxu0 0.0
        %1346 = vmatpush1.msra.mxu0 0.0
        %1347 = vmatprep.subr.mxu0 0.0
        %1348 = vmatpush1.msra.mxu0 0.0
        %1349 = vmatprep.subr.mxu0 0.0
        %1350 = vmatpush1.msra.mxu0 0.0
        %1351 = vmatprep.subr.mxu0 0.0
        %1352 = vmatpush1.msra.mxu0 0.0
        %1353 = vmatprep.subr.mxu0 0.0
        %1354 = vmatpush1.msra.mxu0 0.0
        %1355 = vmatprep.subr.mxu0 0.0
        %1356 = vmatpush1.msra.mxu0 0.0
        %1357 = vmatprep.subr.mxu0 0.0
        %1358 = vmatpush1.msra.mxu0 0.0
        %1359 = vmatprep.subr.mxu0 0.0
        %1360 = vmatpush1.msra.mxu0 0.0
        %1361 = vmatprep.subr.mxu0 0.0
        %1362 = vmatpush1.msra.mxu0 0.0
        %1363 = vmatprep.subr.mxu0 0.0
        %1364 = vmatpush1.msra.mxu0 0.0
        %1365 = vmatprep.subr.mxu0 0.0
        %1366 = vmatpush1.msra.mxu0 %v1333
        %1367 = vmatprep.subr.mxu0 0.0
        %1368 = vmatpush2.msra.mxu0 0.0
        %1369 = vmatprep.subr.mxu0 0.0
        %1370 = vmatpush2.msra.mxu0 0.0
        %1371 = vmatprep.subr.mxu0 0.0
        %1372 = vmatpush2.msra.mxu0 0.0
        %1373 = vmatprep.subr.mxu0 0.0
        %1374 = vmatpush2.msra.mxu0 0.0
        %1375 = vmatprep.subr.mxu0 0.0
        %1376 = vmatpush2.msra.mxu0 0.0
        %1377 = vmatprep.subr.mxu0 0.0
        %1378 = vmatpush2.msra.mxu0 0.0
        %1379 = vmatprep.subr.mxu0 0.0
        %1380 = vmatpush2.msra.mxu0 0.0
        %1381 = vmatprep.subr.mxu0 0.0
        %1382 = vmatpush2.msra.mxu0 0.0
        %1383 = vmatprep.subr.mxu0 0.0
        %1384 = vmatpush2.msra.mxu0 0.0
        %1385 = vmatprep.subr.mxu0 0.0
        %1386 = vmatpush2.msra.mxu0 0.0
        %1387 = vmatprep.subr.mxu0 0.0
        %1388 = vmatpush2.msra.mxu0 0.0
        %1389 = vmatprep.subr.mxu0 0.0
        %1390 = vmatpush2.msra.mxu0 0.0
        %1391 = vmatprep.subr.mxu0 0.0
        %1392 = vmatpush2.msra.mxu0 0.0
        %1393 = vmatprep.subr.mxu0 0.0
        %1394 = vmatpush2.msra.mxu0 0.0
        %1395 = vmatprep.subr.mxu0 0.0
        %1396 = vmatpush2.msra.mxu0 0.0
        %1397 = vmatprep.subr.mxu0 0.0
        %1398 = vmatpush2.msra.mxu0 0.0
        %1399 = vmatprep.mubr.f32.mxu0 0.0
        %1400 = vmatmul.mubr.f32.gmra.mxu0 %v704
        %v1401 = vpop.f32.mrf.mxu0
        %v1402 = vadd.f32 0.0, %v1401
        %v1403 = vpop.f32.mrf.mxu0
        %1404 = vdwg.mxu0
        %v1405 = vadd.f32 %v1330, %v1402
        %v1406 = vadd.f32 %v1405, %v782
        %1408 = vrot.lane.b32.xlu0 %v1406, 16
        %v1409 = vpop.permute.xlu0 %1408
        %vm1411 = vcmask 195712
        %1412 = vst.msk [vmem:[%s232] sm:$0xff] %vm1411, %v1409
        %v1413 = vrot.slane %v329, 3
        %v1414 = vrot.slane %v334, 2
        %v1415 = vsel %vm453, %v1414, %v1413
        %v1416 = vrot.slane %v339, 1
        %v1417 = vsel %vm456, %v1416, %v1415
        %v1418 = vsel %vm459, %v344, %v1417
        %1419 = vrot.lane.b32.xlu0 %v1418, 120
        %v1420 = vpop.permute.xlu0 %1419
        %v1421 = vsel %vm467, %v1420, 0
        %1423 = vmatprep.subr.mxu0 0.0
        %1424 = vmatpush1.msra.mxu0 0.0
        %1425 = vmatprep.subr.mxu0 0.0
        %1426 = vmatpush1.msra.mxu0 0.0
        %1427 = vmatprep.subr.mxu0 0.0
        %1428 = vmatpush1.msra.mxu0 0.0
        %1429 = vmatprep.subr.mxu0 0.0
        %1430 = vmatpush1.msra.mxu0 0.0
        %1431 = vmatprep.subr.mxu0 0.0
        %1432 = vmatpush1.msra.mxu0 0.0
        %1433 = vmatprep.subr.mxu0 0.0
        %1434 = vmatpush1.msra.mxu0 0.0
        %1435 = vmatprep.subr.mxu0 0.0
        %1436 = vmatpush1.msra.mxu0 0.0
        %1437 = vmatprep.subr.mxu0 0.0
        %1438 = vmatpush1.msra.mxu0 0.0
        %1439 = vmatprep.subr.mxu0 0.0
        %1440 = vmatpush1.msra.mxu0 0.0
        %1441 = vmatprep.subr.mxu0 0.0
        %1442 = vmatpush1.msra.mxu0 0.0
        %1443 = vmatprep.subr.mxu0 0.0
        %1444 = vmatpush1.msra.mxu0 0.0
        %1445 = vmatprep.subr.mxu0 0.0
        %1446 = vmatpush1.msra.mxu0 0.0
        %1447 = vmatprep.subr.mxu0 0.0
        %1448 = vmatpush1.msra.mxu0 0.0
        %1449 = vmatprep.subr.mxu0 0.0
        %1450 = vmatpush1.msra.mxu0 0.0
        %1451 = vmatprep.subr.mxu0 0.0
        %1452 = vmatpush1.msra.mxu0 0.0
        %1453 = vmatprep.subr.mxu0 0.0
        %1454 = vmatpush1.msra.mxu0 %v1421
        %1455 = vmatprep.subr.mxu0 0.0
        %1456 = vmatpush2.msra.mxu0 0.0
        %1457 = vmatprep.subr.mxu0 0.0
        %1458 = vmatpush2.msra.mxu0 0.0
        %1459 = vmatprep.subr.mxu0 0.0
        %1460 = vmatpush2.msra.mxu0 0.0
        %1461 = vmatprep.subr.mxu0 0.0
        %1462 = vmatpush2.msra.mxu0 0.0
        %1463 = vmatprep.subr.mxu0 0.0
        %1464 = vmatpush2.msra.mxu0 0.0
        %1465 = vmatprep.subr.mxu0 0.0
        %1466 = vmatpush2.msra.mxu0 0.0
        %1467 = vmatprep.subr.mxu0 0.0
        %1468 = vmatpush2.msra.mxu0 0.0
        %1469 = vmatprep.subr.mxu0 0.0
        %1470 = vmatpush2.msra.mxu0 0.0
        %1471 = vmatprep.subr.mxu0 0.0
        %1472 = vmatpush2.msra.mxu0 0.0
        %1473 = vmatprep.subr.mxu0 0.0
        %1474 = vmatpush2.msra.mxu0 0.0
        %1475 = vmatprep.subr.mxu0 0.0
        %1476 = vmatpush2.msra.mxu0 0.0
        %1477 = vmatprep.subr.mxu0 0.0
        %1478 = vmatpush2.msra.mxu0 0.0
        %1479 = vmatprep.subr.mxu0 0.0
        %1480 = vmatpush2.msra.mxu0 0.0
        %1481 = vmatprep.subr.mxu0 0.0
        %1482 = vmatpush2.msra.mxu0 0.0
        %1483 = vmatprep.subr.mxu0 0.0
        %1484 = vmatpush2.msra.mxu0 0.0
        %1485 = vmatprep.subr.mxu0 0.0
        %1486 = vmatpush2.msra.mxu0 0.0
        %1487 = vmatprep.mubr.f32.mxu0 0.0
        %1488 = vmatmul.mubr.f32.gmra.mxu0 %v465
        %v1489 = vpop.f32.mrf.mxu0
        %v1490 = vadd.f32 0.0, %v1489
        %v1491 = vpop.f32.mrf.mxu0
        %1492 = vdwg.mxu0
        %v1493 = vsel %vm467, %v1418, 0
        %1495 = vmatprep.subr.mxu0 0.0
        %1496 = vmatpush1.msra.mxu0 0.0
        %1497 = vmatprep.subr.mxu0 0.0
        %1498 = vmatpush1.msra.mxu0 0.0
        %1499 = vmatprep.subr.mxu0 0.0
        %1500 = vmatpush1.msra.mxu0 0.0
        %1501 = vmatprep.subr.mxu0 0.0
        %1502 = vmatpush1.msra.mxu0 0.0
        %1503 = vmatprep.subr.mxu0 0.0
        %1504 = vmatpush1.msra.mxu0 0.0
        %1505 = vmatprep.subr.mxu0 0.0
        %1506 = vmatpush1.msra.mxu0 0.0
        %1507 = vmatprep.subr.mxu0 0.0
        %1508 = vmatpush1.msra.mxu0 0.0
        %1509 = vmatprep.subr.mxu0 0.0
        %1510 = vmatpush1.msra.mxu0 0.0
        %1511 = vmatprep.subr.mxu0 0.0
        %1512 = vmatpush1.msra.mxu0 0.0
        %1513 = vmatprep.subr.mxu0 0.0
        %1514 = vmatpush1.msra.mxu0 0.0
        %1515 = vmatprep.subr.mxu0 0.0
        %1516 = vmatpush1.msra.mxu0 0.0
        %1517 = vmatprep.subr.mxu0 0.0
        %1518 = vmatpush1.msra.mxu0 0.0
        %1519 = vmatprep.subr.mxu0 0.0
        %1520 = vmatpush1.msra.mxu0 0.0
        %1521 = vmatprep.subr.mxu0 0.0
        %1522 = vmatpush1.msra.mxu0 0.0
        %1523 = vmatprep.subr.mxu0 0.0
        %1524 = vmatpush1.msra.mxu0 0.0
        %1525 = vmatprep.subr.mxu0 0.0
        %1526 = vmatpush1.msra.mxu0 %v1493
        %1527 = vmatprep.subr.mxu0 0.0
        %1528 = vmatpush2.msra.mxu0 0.0
        %1529 = vmatprep.subr.mxu0 0.0
        %1530 = vmatpush2.msra.mxu0 0.0
        %1531 = vmatprep.subr.mxu0 0.0
        %1532 = vmatpush2.msra.mxu0 0.0
        %1533 = vmatprep.subr.mxu0 0.0
        %1534 = vmatpush2.msra.mxu0 0.0
        %1535 = vmatprep.subr.mxu0 0.0
        %1536 = vmatpush2.msra.mxu0 0.0
        %1537 = vmatprep.subr.mxu0 0.0
        %1538 = vmatpush2.msra.mxu0 0.0
        %1539 = vmatprep.subr.mxu0 0.0
        %1540 = vmatpush2.msra.mxu0 0.0
        %1541 = vmatprep.subr.mxu0 0.0
        %1542 = vmatpush2.msra.mxu0 0.0
        %1543 = vmatprep.subr.mxu0 0.0
        %1544 = vmatpush2.msra.mxu0 0.0
        %1545 = vmatprep.subr.mxu0 0.0
        %1546 = vmatpush2.msra.mxu0 0.0
        %1547 = vmatprep.subr.mxu0 0.0
        %1548 = vmatpush2.msra.mxu0 0.0
        %1549 = vmatprep.subr.mxu0 0.0
        %1550 = vmatpush2.msra.mxu0 0.0
        %1551 = vmatprep.subr.mxu0 0.0
        %1552 = vmatpush2.msra.mxu0 0.0
        %1553 = vmatprep.subr.mxu0 0.0
        %1554 = vmatpush2.msra.mxu0 0.0
        %1555 = vmatprep.subr.mxu0 0.0
        %1556 = vmatpush2.msra.mxu0 0.0
        %1557 = vmatprep.subr.mxu0 0.0
        %1558 = vmatpush2.msra.mxu0 0.0
        %1559 = vmatprep.mubr.f32.mxu0 0.0
        %1560 = vmatmul.mubr.f32.gmra.mxu0 %v541
        %v1561 = vpop.f32.mrf.mxu0
        %v1562 = vadd.f32 %v1490, %v1561
        %v1563 = vpop.f32.mrf.mxu0
        %1564 = vdwg.mxu0
        %v1565 = vrot.slane %v430, 3
        %v1566 = vrot.slane %v435, 2
        %v1567 = vsel %vm453, %v1566, %v1565
        %v1568 = vrot.slane %v440, 1
        %v1569 = vsel %vm456, %v1568, %v1567
        %v1570 = vsel %vm459, %v445, %v1569
        %v1571 = vsel %vm467, %v1570, 0
        %1573 = vmatprep.subr.mxu0 0.0
        %1574 = vmatpush1.msra.mxu0 0.0
        %1575 = vmatprep.subr.mxu0 0.0
        %1576 = vmatpush1.msra.mxu0 0.0
        %1577 = vmatprep.subr.mxu0 0.0
        %1578 = vmatpush1.msra.mxu0 0.0
        %1579 = vmatprep.subr.mxu0 0.0
        %1580 = vmatpush1.msra.mxu0 0.0
        %1581 = vmatprep.subr.mxu0 0.0
        %1582 = vmatpush1.msra.mxu0 0.0
        %1583 = vmatprep.subr.mxu0 0.0
        %1584 = vmatpush1.msra.mxu0 0.0
        %1585 = vmatprep.subr.mxu0 0.0
        %1586 = vmatpush1.msra.mxu0 0.0
        %1587 = vmatprep.subr.mxu0 0.0
        %1588 = vmatpush1.msra.mxu0 0.0
        %1589 = vmatprep.subr.mxu0 0.0
        %1590 = vmatpush1.msra.mxu0 0.0
        %1591 = vmatprep.subr.mxu0 0.0
        %1592 = vmatpush1.msra.mxu0 0.0
        %1593 = vmatprep.subr.mxu0 0.0
        %1594 = vmatpush1.msra.mxu0 0.0
        %1595 = vmatprep.subr.mxu0 0.0
        %1596 = vmatpush1.msra.mxu0 0.0
        %1597 = vmatprep.subr.mxu0 0.0
        %1598 = vmatpush1.msra.mxu0 0.0
        %1599 = vmatprep.subr.mxu0 0.0
        %1600 = vmatpush1.msra.mxu0 0.0
        %1601 = vmatprep.subr.mxu0 0.0
        %1602 = vmatpush1.msra.mxu0 0.0
        %1603 = vmatprep.subr.mxu0 0.0
        %1604 = vmatpush1.msra.mxu0 %v1571
        %1605 = vmatprep.subr.mxu0 0.0
        %1606 = vmatpush2.msra.mxu0 0.0
        %1607 = vmatprep.subr.mxu0 0.0
        %1608 = vmatpush2.msra.mxu0 0.0
        %1609 = vmatprep.subr.mxu0 0.0
        %1610 = vmatpush2.msra.mxu0 0.0
        %1611 = vmatprep.subr.mxu0 0.0
        %1612 = vmatpush2.msra.mxu0 0.0
        %1613 = vmatprep.subr.mxu0 0.0
        %1614 = vmatpush2.msra.mxu0 0.0
        %1615 = vmatprep.subr.mxu0 0.0
        %1616 = vmatpush2.msra.mxu0 0.0
        %1617 = vmatprep.subr.mxu0 0.0
        %1618 = vmatpush2.msra.mxu0 0.0
        %1619 = vmatprep.subr.mxu0 0.0
        %1620 = vmatpush2.msra.mxu0 0.0
        %1621 = vmatprep.subr.mxu0 0.0
        %1622 = vmatpush2.msra.mxu0 0.0
        %1623 = vmatprep.subr.mxu0 0.0
        %1624 = vmatpush2.msra.mxu0 0.0
        %1625 = vmatprep.subr.mxu0 0.0
        %1626 = vmatpush2.msra.mxu0 0.0
        %1627 = vmatprep.subr.mxu0 0.0
        %1628 = vmatpush2.msra.mxu0 0.0
        %1629 = vmatprep.subr.mxu0 0.0
        %1630 = vmatpush2.msra.mxu0 0.0
        %1631 = vmatprep.subr.mxu0 0.0
        %1632 = vmatpush2.msra.mxu0 0.0
        %1633 = vmatprep.subr.mxu0 0.0
        %1634 = vmatpush2.msra.mxu0 0.0
        %1635 = vmatprep.subr.mxu0 0.0
        %1636 = vmatpush2.msra.mxu0 0.0
        %1637 = vmatprep.mubr.f32.mxu0 0.0
        %1638 = vmatmul.mubr.f32.gmra.mxu0 %v626
        %v1639 = vpop.f32.mrf.mxu0
        %v1640 = vadd.f32 0.0, %v1639
        %v1641 = vpop.f32.mrf.mxu0
        %1642 = vdwg.mxu0
        %v1643 = vadd.f32 %v1562, %v1640
        %1644 = vrot.lane.b32.xlu0 %v1570, 120
        %v1645 = vpop.permute.xlu0 %1644
        %v1646 = vsel %vm467, %v1645, 0
        %1648 = vmatprep.subr.mxu0 0.0
        %1649 = vmatpush1.msra.mxu0 0.0
        %1650 = vmatprep.subr.mxu0 0.0
        %1651 = vmatpush1.msra.mxu0 0.0
        %1652 = vmatprep.subr.mxu0 0.0
        %1653 = vmatpush1.msra.mxu0 0.0
        %1654 = vmatprep.subr.mxu0 0.0
        %1655 = vmatpush1.msra.mxu0 0.0
        %1656 = vmatprep.subr.mxu0 0.0
        %1657 = vmatpush1.msra.mxu0 0.0
        %1658 = vmatprep.subr.mxu0 0.0
        %1659 = vmatpush1.msra.mxu0 0.0
        %1660 = vmatprep.subr.mxu0 0.0
        %1661 = vmatpush1.msra.mxu0 0.0
        %1662 = vmatprep.subr.mxu0 0.0
        %1663 = vmatpush1.msra.mxu0 0.0
        %1664 = vmatprep.subr.mxu0 0.0
        %1665 = vmatpush1.msra.mxu0 0.0
        %1666 = vmatprep.subr.mxu0 0.0
        %1667 = vmatpush1.msra.mxu0 0.0
        %1668 = vmatprep.subr.mxu0 0.0
        %1669 = vmatpush1.msra.mxu0 0.0
        %1670 = vmatprep.subr.mxu0 0.0
        %1671 = vmatpush1.msra.mxu0 0.0
        %1672 = vmatprep.subr.mxu0 0.0
        %1673 = vmatpush1.msra.mxu0 0.0
        %1674 = vmatprep.subr.mxu0 0.0
        %1675 = vmatpush1.msra.mxu0 0.0
        %1676 = vmatprep.subr.mxu0 0.0
        %1677 = vmatpush1.msra.mxu0 0.0
        %1678 = vmatprep.subr.mxu0 0.0
        %1679 = vmatpush1.msra.mxu0 %v1646
        %1680 = vmatprep.subr.mxu0 0.0
        %1681 = vmatpush2.msra.mxu0 0.0
        %1682 = vmatprep.subr.mxu0 0.0
        %1683 = vmatpush2.msra.mxu0 0.0
        %1684 = vmatprep.subr.mxu0 0.0
        %1685 = vmatpush2.msra.mxu0 0.0
        %1686 = vmatprep.subr.mxu0 0.0
        %1687 = vmatpush2.msra.mxu0 0.0
        %1688 = vmatprep.subr.mxu0 0.0
        %1689 = vmatpush2.msra.mxu0 0.0
        %1690 = vmatprep.subr.mxu0 0.0
        %1691 = vmatpush2.msra.mxu0 0.0
        %1692 = vmatprep.subr.mxu0 0.0
        %1693 = vmatpush2.msra.mxu0 0.0
        %1694 = vmatprep.subr.mxu0 0.0
        %1695 = vmatpush2.msra.mxu0 0.0
        %1696 = vmatprep.subr.mxu0 0.0
        %1697 = vmatpush2.msra.mxu0 0.0
        %1698 = vmatprep.subr.mxu0 0.0
        %1699 = vmatpush2.msra.mxu0 0.0
        %1700 = vmatprep.subr.mxu0 0.0
        %1701 = vmatpush2.msra.mxu0 0.0
        %1702 = vmatprep.subr.mxu0 0.0
        %1703 = vmatpush2.msra.mxu0 0.0
        %1704 = vmatprep.subr.mxu0 0.0
        %1705 = vmatpush2.msra.mxu0 0.0
        %1706 = vmatprep.subr.mxu0 0.0
        %1707 = vmatpush2.msra.mxu0 0.0
        %1708 = vmatprep.subr.mxu0 0.0
        %1709 = vmatpush2.msra.mxu0 0.0
        %1710 = vmatprep.subr.mxu0 0.0
        %1711 = vmatpush2.msra.mxu0 0.0
        %1712 = vmatprep.mubr.f32.mxu0 0.0
        %1713 = vmatmul.mubr.f32.gmra.mxu0 %v704
        %v1714 = vpop.f32.mrf.mxu0
        %v1715 = vadd.f32 0.0, %v1714
        %v1716 = vpop.f32.mrf.mxu0
        %1717 = vdwg.mxu0
        %v1718 = vadd.f32 %v1643, %v1715
        %v1719 = vadd.f32 %v1718, %v782
        %1721 = vrot.lane.b32.xlu0 %v1719, 24
        %v1722 = vpop.permute.xlu0 %1721
        %vm1724 = vcmask 261312
        %1725 = vst.msk [vmem:[%s232] sm:$0xff] %vm1724, %v1722
        %v1726 = vrot.slane %v329, 4
        %v1727 = vrot.slane %v334, 3
        %v1728 = vsel %vm453, %v1727, %v1726
        %v1729 = vrot.slane %v339, 2
        %v1730 = vsel %vm456, %v1729, %v1728
        %v1731 = vrot.slane %v344, 1
        %v1732 = vsel %vm459, %v1731, %v1730
        %1733 = vrot.lane.b32.xlu0 %v1732, 120
        %v1734 = vpop.permute.xlu0 %1733
        %v1735 = vsel %vm467, %v1734, 0
        %1737 = vmatprep.subr.mxu0 0.0
        %1738 = vmatpush1.msra.mxu0 0.0
        %1739 = vmatprep.subr.mxu0 0.0
        %1740 = vmatpush1.msra.mxu0 0.0
        %1741 = vmatprep.subr.mxu0 0.0
        %1742 = vmatpush1.msra.mxu0 0.0
        %1743 = vmatprep.subr.mxu0 0.0
        %1744 = vmatpush1.msra.mxu0 0.0
        %1745 = vmatprep.subr.mxu0 0.0
        %1746 = vmatpush1.msra.mxu0 0.0
        %1747 = vmatprep.subr.mxu0 0.0
        %1748 = vmatpush1.msra.mxu0 0.0
        %1749 = vmatprep.subr.mxu0 0.0
        %1750 = vmatpush1.msra.mxu0 0.0
        %1751 = vmatprep.subr.mxu0 0.0
        %1752 = vmatpush1.msra.mxu0 0.0
        %1753 = vmatprep.subr.mxu0 0.0
        %1754 = vmatpush1.msra.mxu0 0.0
        %1755 = vmatprep.subr.mxu0 0.0
        %1756 = vmatpush1.msra.mxu0 0.0
        %1757 = vmatprep.subr.mxu0 0.0
        %1758 = vmatpush1.msra.mxu0 0.0
        %1759 = vmatprep.subr.mxu0 0.0
        %1760 = vmatpush1.msra.mxu0 0.0
        %1761 = vmatprep.subr.mxu0 0.0
        %1762 = vmatpush1.msra.mxu0 0.0
        %1763 = vmatprep.subr.mxu0 0.0
        %1764 = vmatpush1.msra.mxu0 0.0
        %1765 = vmatprep.subr.mxu0 0.0
        %1766 = vmatpush1.msra.mxu0 0.0
        %1767 = vmatprep.subr.mxu0 0.0
        %1768 = vmatpush1.msra.mxu0 %v1735
        %1769 = vmatprep.subr.mxu0 0.0
        %1770 = vmatpush2.msra.mxu0 0.0
        %1771 = vmatprep.subr.mxu0 0.0
        %1772 = vmatpush2.msra.mxu0 0.0
        %1773 = vmatprep.subr.mxu0 0.0
        %1774 = vmatpush2.msra.mxu0 0.0
        %1775 = vmatprep.subr.mxu0 0.0
        %1776 = vmatpush2.msra.mxu0 0.0
        %1777 = vmatprep.subr.mxu0 0.0
        %1778 = vmatpush2.msra.mxu0 0.0
        %1779 = vmatprep.subr.mxu0 0.0
        %1780 = vmatpush2.msra.mxu0 0.0
        %1781 = vmatprep.subr.mxu0 0.0
        %1782 = vmatpush2.msra.mxu0 0.0
        %1783 = vmatprep.subr.mxu0 0.0
        %1784 = vmatpush2.msra.mxu0 0.0
        %1785 = vmatprep.subr.mxu0 0.0
        %1786 = vmatpush2.msra.mxu0 0.0
        %1787 = vmatprep.subr.mxu0 0.0
        %1788 = vmatpush2.msra.mxu0 0.0
        %1789 = vmatprep.subr.mxu0 0.0
        %1790 = vmatpush2.msra.mxu0 0.0
        %1791 = vmatprep.subr.mxu0 0.0
        %1792 = vmatpush2.msra.mxu0 0.0
        %1793 = vmatprep.subr.mxu0 0.0
        %1794 = vmatpush2.msra.mxu0 0.0
        %1795 = vmatprep.subr.mxu0 0.0
        %1796 = vmatpush2.msra.mxu0 0.0
        %1797 = vmatprep.subr.mxu0 0.0
        %1798 = vmatpush2.msra.mxu0 0.0
        %1799 = vmatprep.subr.mxu0 0.0
        %1800 = vmatpush2.msra.mxu0 0.0
        %1801 = vmatprep.mubr.f32.mxu0 0.0
        %1802 = vmatmul.mubr.f32.gmra.mxu0 %v465
        %v1803 = vpop.f32.mrf.mxu0
        %v1804 = vadd.f32 0.0, %v1803
        %v1805 = vpop.f32.mrf.mxu0
        %1806 = vdwg.mxu0
        %v1807 = vsel %vm467, %v1732, 0
        %1809 = vmatprep.subr.mxu0 0.0
        %1810 = vmatpush1.msra.mxu0 0.0
        %1811 = vmatprep.subr.mxu0 0.0
        %1812 = vmatpush1.msra.mxu0 0.0
        %1813 = vmatprep.subr.mxu0 0.0
        %1814 = vmatpush1.msra.mxu0 0.0
        %1815 = vmatprep.subr.mxu0 0.0
        %1816 = vmatpush1.msra.mxu0 0.0
        %1817 = vmatprep.subr.mxu0 0.0
        %1818 = vmatpush1.msra.mxu0 0.0
        %1819 = vmatprep.subr.mxu0 0.0
        %1820 = vmatpush1.msra.mxu0 0.0
        %1821 = vmatprep.subr.mxu0 0.0
        %1822 = vmatpush1.msra.mxu0 0.0
        %1823 = vmatprep.subr.mxu0 0.0
        %1824 = vmatpush1.msra.mxu0 0.0
        %1825 = vmatprep.subr.mxu0 0.0
        %1826 = vmatpush1.msra.mxu0 0.0
        %1827 = vmatprep.subr.mxu0 0.0
        %1828 = vmatpush1.msra.mxu0 0.0
        %1829 = vmatprep.subr.mxu0 0.0
        %1830 = vmatpush1.msra.mxu0 0.0
        %1831 = vmatprep.subr.mxu0 0.0
        %1832 = vmatpush1.msra.mxu0 0.0
        %1833 = vmatprep.subr.mxu0 0.0
        %1834 = vmatpush1.msra.mxu0 0.0
        %1835 = vmatprep.subr.mxu0 0.0
        %1836 = vmatpush1.msra.mxu0 0.0
        %1837 = vmatprep.subr.mxu0 0.0
        %1838 = vmatpush1.msra.mxu0 0.0
        %1839 = vmatprep.subr.mxu0 0.0
        %1840 = vmatpush1.msra.mxu0 %v1807
        %1841 = vmatprep.subr.mxu0 0.0
        %1842 = vmatpush2.msra.mxu0 0.0
        %1843 = vmatprep.subr.mxu0 0.0
        %1844 = vmatpush2.msra.mxu0 0.0
        %1845 = vmatprep.subr.mxu0 0.0
        %1846 = vmatpush2.msra.mxu0 0.0
        %1847 = vmatprep.subr.mxu0 0.0
        %1848 = vmatpush2.msra.mxu0 0.0
        %1849 = vmatprep.subr.mxu0 0.0
        %1850 = vmatpush2.msra.mxu0 0.0
        %1851 = vmatprep.subr.mxu0 0.0
        %1852 = vmatpush2.msra.mxu0 0.0
        %1853 = vmatprep.subr.mxu0 0.0
        %1854 = vmatpush2.msra.mxu0 0.0
        %1855 = vmatprep.subr.mxu0 0.0
        %1856 = vmatpush2.msra.mxu0 0.0
        %1857 = vmatprep.subr.mxu0 0.0
        %1858 = vmatpush2.msra.mxu0 0.0
        %1859 = vmatprep.subr.mxu0 0.0
        %1860 = vmatpush2.msra.mxu0 0.0
        %1861 = vmatprep.subr.mxu0 0.0
        %1862 = vmatpush2.msra.mxu0 0.0
        %1863 = vmatprep.subr.mxu0 0.0
        %1864 = vmatpush2.msra.mxu0 0.0
        %1865 = vmatprep.subr.mxu0 0.0
        %1866 = vmatpush2.msra.mxu0 0.0
        %1867 = vmatprep.subr.mxu0 0.0
        %1868 = vmatpush2.msra.mxu0 0.0
        %1869 = vmatprep.subr.mxu0 0.0
        %1870 = vmatpush2.msra.mxu0 0.0
        %1871 = vmatprep.subr.mxu0 0.0
        %1872 = vmatpush2.msra.mxu0 0.0
        %1873 = vmatprep.mubr.f32.mxu0 0.0
        %1874 = vmatmul.mubr.f32.gmra.mxu0 %v541
        %v1875 = vpop.f32.mrf.mxu0
        %v1876 = vadd.f32 %v1804, %v1875
        %v1877 = vpop.f32.mrf.mxu0
        %1878 = vdwg.mxu0
        %v1879 = vrot.slane %v430, 4
        %v1880 = vrot.slane %v435, 3
        %v1881 = vsel %vm453, %v1880, %v1879
        %v1882 = vrot.slane %v440, 2
        %v1883 = vsel %vm456, %v1882, %v1881
        %v1884 = vrot.slane %v445, 1
        %v1885 = vsel %vm459, %v1884, %v1883
        %v1886 = vsel %vm467, %v1885, 0
        %1888 = vmatprep.subr.mxu0 0.0
        %1889 = vmatpush1.msra.mxu0 0.0
        %1890 = vmatprep.subr.mxu0 0.0
        %1891 = vmatpush1.msra.mxu0 0.0
        %1892 = vmatprep.subr.mxu0 0.0
        %1893 = vmatpush1.msra.mxu0 0.0
        %1894 = vmatprep.subr.mxu0 0.0
        %1895 = vmatpush1.msra.mxu0 0.0
        %1896 = vmatprep.subr.mxu0 0.0
        %1897 = vmatpush1.msra.mxu0 0.0
        %1898 = vmatprep.subr.mxu0 0.0
        %1899 = vmatpush1.msra.mxu0 0.0
        %1900 = vmatprep.subr.mxu0 0.0
        %1901 = vmatpush1.msra.mxu0 0.0
        %1902 = vmatprep.subr.mxu0 0.0
        %1903 = vmatpush1.msra.mxu0 0.0
        %1904 = vmatprep.subr.mxu0 0.0
        %1905 = vmatpush1.msra.mxu0 0.0
        %1906 = vmatprep.subr.mxu0 0.0
        %1907 = vmatpush1.msra.mxu0 0.0
        %1908 = vmatprep.subr.mxu0 0.0
        %1909 = vmatpush1.msra.mxu0 0.0
        %1910 = vmatprep.subr.mxu0 0.0
        %1911 = vmatpush1.msra.mxu0 0.0
        %1912 = vmatprep.subr.mxu0 0.0
        %1913 = vmatpush1.msra.mxu0 0.0
        %1914 = vmatprep.subr.mxu0 0.0
        %1915 = vmatpush1.msra.mxu0 0.0
        %1916 = vmatprep.subr.mxu0 0.0
        %1917 = vmatpush1.msra.mxu0 0.0
        %1918 = vmatprep.subr.mxu0 0.0
        %1919 = vmatpush1.msra.mxu0 %v1886
        %1920 = vmatprep.subr.mxu0 0.0
        %1921 = vmatpush2.msra.mxu0 0.0
        %1922 = vmatprep.subr.mxu0 0.0
        %1923 = vmatpush2.msra.mxu0 0.0
        %1924 = vmatprep.subr.mxu0 0.0
        %1925 = vmatpush2.msra.mxu0 0.0
        %1926 = vmatprep.subr.mxu0 0.0
        %1927 = vmatpush2.msra.mxu0 0.0
        %1928 = vmatprep.subr.mxu0 0.0
        %1929 = vmatpush2.msra.mxu0 0.0
        %1930 = vmatprep.subr.mxu0 0.0
        %1931 = vmatpush2.msra.mxu0 0.0
        %1932 = vmatprep.subr.mxu0 0.0
        %1933 = vmatpush2.msra.mxu0 0.0
        %1934 = vmatprep.subr.mxu0 0.0
        %1935 = vmatpush2.msra.mxu0 0.0
        %1936 = vmatprep.subr.mxu0 0.0
        %1937 = vmatpush2.msra.mxu0 0.0
        %1938 = vmatprep.subr.mxu0 0.0
        %1939 = vmatpush2.msra.mxu0 0.0
        %1940 = vmatprep.subr.mxu0 0.0
        %1941 = vmatpush2.msra.mxu0 0.0
        %1942 = vmatprep.subr.mxu0 0.0
        %1943 = vmatpush2.msra.mxu0 0.0
        %1944 = vmatprep.subr.mxu0 0.0
        %1945 = vmatpush2.msra.mxu0 0.0
        %1946 = vmatprep.subr.mxu0 0.0
        %1947 = vmatpush2.msra.mxu0 0.0
        %1948 = vmatprep.subr.mxu0 0.0
        %1949 = vmatpush2.msra.mxu0 0.0
        %1950 = vmatprep.subr.mxu0 0.0
        %1951 = vmatpush2.msra.mxu0 0.0
        %1952 = vmatprep.mubr.f32.mxu0 0.0
        %1953 = vmatmul.mubr.f32.gmra.mxu0 %v626
        %v1954 = vpop.f32.mrf.mxu0
        %v1955 = vadd.f32 0.0, %v1954
        %v1956 = vpop.f32.mrf.mxu0
        %1957 = vdwg.mxu0
        %v1958 = vadd.f32 %v1876, %v1955
        %1959 = vrot.lane.b32.xlu0 %v1885, 120
        %v1960 = vpop.permute.xlu0 %1959
        %v1961 = vsel %vm467, %v1960, 0
        %1963 = vmatprep.subr.mxu0 0.0
        %1964 = vmatpush1.msra.mxu0 0.0
        %1965 = vmatprep.subr.mxu0 0.0
        %1966 = vmatpush1.msra.mxu0 0.0
        %1967 = vmatprep.subr.mxu0 0.0
        %1968 = vmatpush1.msra.mxu0 0.0
        %1969 = vmatprep.subr.mxu0 0.0
        %1970 = vmatpush1.msra.mxu0 0.0
        %1971 = vmatprep.subr.mxu0 0.0
        %1972 = vmatpush1.msra.mxu0 0.0
        %1973 = vmatprep.subr.mxu0 0.0
        %1974 = vmatpush1.msra.mxu0 0.0
        %1975 = vmatprep.subr.mxu0 0.0
        %1976 = vmatpush1.msra.mxu0 0.0
        %1977 = vmatprep.subr.mxu0 0.0
        %1978 = vmatpush1.msra.mxu0 0.0
        %1979 = vmatprep.subr.mxu0 0.0
        %1980 = vmatpush1.msra.mxu0 0.0
        %1981 = vmatprep.subr.mxu0 0.0
        %1982 = vmatpush1.msra.mxu0 0.0
        %1983 = vmatprep.subr.mxu0 0.0
        %1984 = vmatpush1.msra.mxu0 0.0
        %1985 = vmatprep.subr.mxu0 0.0
        %1986 = vmatpush1.msra.mxu0 0.0
        %1987 = vmatprep.subr.mxu0 0.0
        %1988 = vmatpush1.msra.mxu0 0.0
        %1989 = vmatprep.subr.mxu0 0.0
        %1990 = vmatpush1.msra.mxu0 0.0
        %1991 = vmatprep.subr.mxu0 0.0
        %1992 = vmatpush1.msra.mxu0 0.0
        %1993 = vmatprep.subr.mxu0 0.0
        %1994 = vmatpush1.msra.mxu0 %v1961
        %1995 = vmatprep.subr.mxu0 0.0
        %1996 = vmatpush2.msra.mxu0 0.0
        %1997 = vmatprep.subr.mxu0 0.0
        %1998 = vmatpush2.msra.mxu0 0.0
        %1999 = vmatprep.subr.mxu0 0.0
        %2000 = vmatpush2.msra.mxu0 0.0
        %2001 = vmatprep.subr.mxu0 0.0
        %2002 = vmatpush2.msra.mxu0 0.0
        %2003 = vmatprep.subr.mxu0 0.0
        %2004 = vmatpush2.msra.mxu0 0.0
        %2005 = vmatprep.subr.mxu0 0.0
        %2006 = vmatpush2.msra.mxu0 0.0
        %2007 = vmatprep.subr.mxu0 0.0
        %2008 = vmatpush2.msra.mxu0 0.0
        %2009 = vmatprep.subr.mxu0 0.0
        %2010 = vmatpush2.msra.mxu0 0.0
        %2011 = vmatprep.subr.mxu0 0.0
        %2012 = vmatpush2.msra.mxu0 0.0
        %2013 = vmatprep.subr.mxu0 0.0
        %2014 = vmatpush2.msra.mxu0 0.0
        %2015 = vmatprep.subr.mxu0 0.0
        %2016 = vmatpush2.msra.mxu0 0.0
        %2017 = vmatprep.subr.mxu0 0.0
        %2018 = vmatpush2.msra.mxu0 0.0
        %2019 = vmatprep.subr.mxu0 0.0
        %2020 = vmatpush2.msra.mxu0 0.0
        %2021 = vmatprep.subr.mxu0 0.0
        %2022 = vmatpush2.msra.mxu0 0.0
        %2023 = vmatprep.subr.mxu0 0.0
        %2024 = vmatpush2.msra.mxu0 0.0
        %2025 = vmatprep.subr.mxu0 0.0
        %2026 = vmatpush2.msra.mxu0 0.0
        %2027 = vmatprep.mubr.f32.mxu0 0.0
        %2028 = vmatmul.mubr.f32.gmra.mxu0 %v704
        %v2029 = vpop.f32.mrf.mxu0
        %v2030 = vadd.f32 0.0, %v2029
        %v2031 = vpop.f32.mrf.mxu0
        %2032 = vdwg.mxu0
        %v2033 = vadd.f32 %v1958, %v2030
        %v2034 = vadd.f32 %v2033, %v782
        %2036 = vrot.lane.b32.xlu0 %v2034, 32
        %v2037 = vpop.permute.xlu0 %2036
        %vm2039 = vcmask 326912
        %2040 = vst.msk [vmem:[%s232] sm:$0xff] %vm2039, %v2037
        %v2041 = vrot.slane %v329, 5
        %v2042 = vrot.slane %v334, 4
        %v2043 = vsel %vm453, %v2042, %v2041
        %v2044 = vrot.slane %v339, 3
        %v2045 = vsel %vm456, %v2044, %v2043
        %v2046 = vrot.slane %v344, 2
        %v2047 = vsel %vm459, %v2046, %v2045
        %2048 = vrot.lane.b32.xlu0 %v2047, 120
        %v2049 = vpop.permute.xlu0 %2048
        %v2050 = vsel %vm467, %v2049, 0
        %2052 = vmatprep.subr.mxu0 0.0
        %2053 = vmatpush1.msra.mxu0 0.0
        %2054 = vmatprep.subr.mxu0 0.0
        %2055 = vmatpush1.msra.mxu0 0.0
        %2056 = vmatprep.subr.mxu0 0.0
        %2057 = vmatpush1.msra.mxu0 0.0
        %2058 = vmatprep.subr.mxu0 0.0
        %2059 = vmatpush1.msra.mxu0 0.0
        %2060 = vmatprep.subr.mxu0 0.0
        %2061 = vmatpush1.msra.mxu0 0.0
        %2062 = vmatprep.subr.mxu0 0.0
        %2063 = vmatpush1.msra.mxu0 0.0
        %2064 = vmatprep.subr.mxu0 0.0
        %2065 = vmatpush1.msra.mxu0 0.0
        %2066 = vmatprep.subr.mxu0 0.0
        %2067 = vmatpush1.msra.mxu0 0.0
        %2068 = vmatprep.subr.mxu0 0.0
        %2069 = vmatpush1.msra.mxu0 0.0
        %2070 = vmatprep.subr.mxu0 0.0
        %2071 = vmatpush1.msra.mxu0 0.0
        %2072 = vmatprep.subr.mxu0 0.0
        %2073 = vmatpush1.msra.mxu0 0.0
        %2074 = vmatprep.subr.mxu0 0.0
        %2075 = vmatpush1.msra.mxu0 0.0
        %2076 = vmatprep.subr.mxu0 0.0
        %2077 = vmatpush1.msra.mxu0 0.0
        %2078 = vmatprep.subr.mxu0 0.0
        %2079 = vmatpush1.msra.mxu0 0.0
        %2080 = vmatprep.subr.mxu0 0.0
        %2081 = vmatpush1.msra.mxu0 0.0
        %2082 = vmatprep.subr.mxu0 0.0
        %2083 = vmatpush1.msra.mxu0 %v2050
        %2084 = vmatprep.subr.mxu0 0.0
        %2085 = vmatpush2.msra.mxu0 0.0
        %2086 = vmatprep.subr.mxu0 0.0
        %2087 = vmatpush2.msra.mxu0 0.0
        %2088 = vmatprep.subr.mxu0 0.0
        %2089 = vmatpush2.msra.mxu0 0.0
        %2090 = vmatprep.subr.mxu0 0.0
        %2091 = vmatpush2.msra.mxu0 0.0
        %2092 = vmatprep.subr.mxu0 0.0
        %2093 = vmatpush2.msra.mxu0 0.0
        %2094 = vmatprep.subr.mxu0 0.0
        %2095 = vmatpush2.msra.mxu0 0.0
        %2096 = vmatprep.subr.mxu0 0.0
        %2097 = vmatpush2.msra.mxu0 0.0
        %2098 = vmatprep.subr.mxu0 0.0
        %2099 = vmatpush2.msra.mxu0 0.0
        %2100 = vmatprep.subr.mxu0 0.0
        %2101 = vmatpush2.msra.mxu0 0.0
        %2102 = vmatprep.subr.mxu0 0.0
        %2103 = vmatpush2.msra.mxu0 0.0
        %2104 = vmatprep.subr.mxu0 0.0
        %2105 = vmatpush2.msra.mxu0 0.0
        %2106 = vmatprep.subr.mxu0 0.0
        %2107 = vmatpush2.msra.mxu0 0.0
        %2108 = vmatprep.subr.mxu0 0.0
        %2109 = vmatpush2.msra.mxu0 0.0
        %2110 = vmatprep.subr.mxu0 0.0
        %2111 = vmatpush2.msra.mxu0 0.0
        %2112 = vmatprep.subr.mxu0 0.0
        %2113 = vmatpush2.msra.mxu0 0.0
        %2114 = vmatprep.subr.mxu0 0.0
        %2115 = vmatpush2.msra.mxu0 0.0
        %2116 = vmatprep.mubr.f32.mxu0 0.0
        %2117 = vmatmul.mubr.f32.gmra.mxu0 %v465
        %v2118 = vpop.f32.mrf.mxu0
        %v2119 = vadd.f32 0.0, %v2118
        %v2120 = vpop.f32.mrf.mxu0
        %2121 = vdwg.mxu0
        %v2122 = vsel %vm467, %v2047, 0
        %2124 = vmatprep.subr.mxu0 0.0
        %2125 = vmatpush1.msra.mxu0 0.0
        %2126 = vmatprep.subr.mxu0 0.0
        %2127 = vmatpush1.msra.mxu0 0.0
        %2128 = vmatprep.subr.mxu0 0.0
        %2129 = vmatpush1.msra.mxu0 0.0
        %2130 = vmatprep.subr.mxu0 0.0
        %2131 = vmatpush1.msra.mxu0 0.0
        %2132 = vmatprep.subr.mxu0 0.0
        %2133 = vmatpush1.msra.mxu0 0.0
        %2134 = vmatprep.subr.mxu0 0.0
        %2135 = vmatpush1.msra.mxu0 0.0
        %2136 = vmatprep.subr.mxu0 0.0
        %2137 = vmatpush1.msra.mxu0 0.0
        %2138 = vmatprep.subr.mxu0 0.0
        %2139 = vmatpush1.msra.mxu0 0.0
        %2140 = vmatprep.subr.mxu0 0.0
        %2141 = vmatpush1.msra.mxu0 0.0
        %2142 = vmatprep.subr.mxu0 0.0
        %2143 = vmatpush1.msra.mxu0 0.0
        %2144 = vmatprep.subr.mxu0 0.0
        %2145 = vmatpush1.msra.mxu0 0.0
        %2146 = vmatprep.subr.mxu0 0.0
        %2147 = vmatpush1.msra.mxu0 0.0
        %2148 = vmatprep.subr.mxu0 0.0
        %2149 = vmatpush1.msra.mxu0 0.0
        %2150 = vmatprep.subr.mxu0 0.0
        %2151 = vmatpush1.msra.mxu0 0.0
        %2152 = vmatprep.subr.mxu0 0.0
        %2153 = vmatpush1.msra.mxu0 0.0
        %2154 = vmatprep.subr.mxu0 0.0
        %2155 = vmatpush1.msra.mxu0 %v2122
        %2156 = vmatprep.subr.mxu0 0.0
        %2157 = vmatpush2.msra.mxu0 0.0
        %2158 = vmatprep.subr.mxu0 0.0
        %2159 = vmatpush2.msra.mxu0 0.0
        %2160 = vmatprep.subr.mxu0 0.0
        %2161 = vmatpush2.msra.mxu0 0.0
        %2162 = vmatprep.subr.mxu0 0.0
        %2163 = vmatpush2.msra.mxu0 0.0
        %2164 = vmatprep.subr.mxu0 0.0
        %2165 = vmatpush2.msra.mxu0 0.0
        %2166 = vmatprep.subr.mxu0 0.0
        %2167 = vmatpush2.msra.mxu0 0.0
        %2168 = vmatprep.subr.mxu0 0.0
        %2169 = vmatpush2.msra.mxu0 0.0
        %2170 = vmatprep.subr.mxu0 0.0
        %2171 = vmatpush2.msra.mxu0 0.0
        %2172 = vmatprep.subr.mxu0 0.0
        %2173 = vmatpush2.msra.mxu0 0.0
        %2174 = vmatprep.subr.mxu0 0.0
        %2175 = vmatpush2.msra.mxu0 0.0
        %2176 = vmatprep.subr.mxu0 0.0
        %2177 = vmatpush2.msra.mxu0 0.0
        %2178 = vmatprep.subr.mxu0 0.0
        %2179 = vmatpush2.msra.mxu0 0.0
        %2180 = vmatprep.subr.mxu0 0.0
        %2181 = vmatpush2.msra.mxu0 0.0
        %2182 = vmatprep.subr.mxu0 0.0
        %2183 = vmatpush2.msra.mxu0 0.0
        %2184 = vmatprep.subr.mxu0 0.0
        %2185 = vmatpush2.msra.mxu0 0.0
        %2186 = vmatprep.subr.mxu0 0.0
        %2187 = vmatpush2.msra.mxu0 0.0
        %2188 = vmatprep.mubr.f32.mxu0 0.0
        %2189 = vmatmul.mubr.f32.gmra.mxu0 %v541
        %v2190 = vpop.f32.mrf.mxu0
        %v2191 = vadd.f32 %v2119, %v2190
        %v2192 = vpop.f32.mrf.mxu0
        %2193 = vdwg.mxu0
        %v2194 = vrot.slane %v430, 5
        %v2195 = vrot.slane %v435, 4
        %v2196 = vsel %vm453, %v2195, %v2194
        %v2197 = vrot.slane %v440, 3
        %v2198 = vsel %vm456, %v2197, %v2196
        %v2199 = vrot.slane %v445, 2
        %v2200 = vsel %vm459, %v2199, %v2198
        %v2201 = vsel %vm467, %v2200, 0
        %2203 = vmatprep.subr.mxu0 0.0
        %2204 = vmatpush1.msra.mxu0 0.0
        %2205 = vmatprep.subr.mxu0 0.0
        %2206 = vmatpush1.msra.mxu0 0.0
        %2207 = vmatprep.subr.mxu0 0.0
        %2208 = vmatpush1.msra.mxu0 0.0
        %2209 = vmatprep.subr.mxu0 0.0
        %2210 = vmatpush1.msra.mxu0 0.0
        %2211 = vmatprep.subr.mxu0 0.0
        %2212 = vmatpush1.msra.mxu0 0.0
        %2213 = vmatprep.subr.mxu0 0.0
        %2214 = vmatpush1.msra.mxu0 0.0
        %2215 = vmatprep.subr.mxu0 0.0
        %2216 = vmatpush1.msra.mxu0 0.0
        %2217 = vmatprep.subr.mxu0 0.0
        %2218 = vmatpush1.msra.mxu0 0.0
        %2219 = vmatprep.subr.mxu0 0.0
        %2220 = vmatpush1.msra.mxu0 0.0
        %2221 = vmatprep.subr.mxu0 0.0
        %2222 = vmatpush1.msra.mxu0 0.0
        %2223 = vmatprep.subr.mxu0 0.0
        %2224 = vmatpush1.msra.mxu0 0.0
        %2225 = vmatprep.subr.mxu0 0.0
        %2226 = vmatpush1.msra.mxu0 0.0
        %2227 = vmatprep.subr.mxu0 0.0
        %2228 = vmatpush1.msra.mxu0 0.0
        %2229 = vmatprep.subr.mxu0 0.0
        %2230 = vmatpush1.msra.mxu0 0.0
        %2231 = vmatprep.subr.mxu0 0.0
        %2232 = vmatpush1.msra.mxu0 0.0
        %2233 = vmatprep.subr.mxu0 0.0
        %2234 = vmatpush1.msra.mxu0 %v2201
        %2235 = vmatprep.subr.mxu0 0.0
        %2236 = vmatpush2.msra.mxu0 0.0
        %2237 = vmatprep.subr.mxu0 0.0
        %2238 = vmatpush2.msra.mxu0 0.0
        %2239 = vmatprep.subr.mxu0 0.0
        %2240 = vmatpush2.msra.mxu0 0.0
        %2241 = vmatprep.subr.mxu0 0.0
        %2242 = vmatpush2.msra.mxu0 0.0
        %2243 = vmatprep.subr.mxu0 0.0
        %2244 = vmatpush2.msra.mxu0 0.0
        %2245 = vmatprep.subr.mxu0 0.0
        %2246 = vmatpush2.msra.mxu0 0.0
        %2247 = vmatprep.subr.mxu0 0.0
        %2248 = vmatpush2.msra.mxu0 0.0
        %2249 = vmatprep.subr.mxu0 0.0
        %2250 = vmatpush2.msra.mxu0 0.0
        %2251 = vmatprep.subr.mxu0 0.0
        %2252 = vmatpush2.msra.mxu0 0.0
        %2253 = vmatprep.subr.mxu0 0.0
        %2254 = vmatpush2.msra.mxu0 0.0
        %2255 = vmatprep.subr.mxu0 0.0
        %2256 = vmatpush2.msra.mxu0 0.0
        %2257 = vmatprep.subr.mxu0 0.0
        %2258 = vmatpush2.msra.mxu0 0.0
        %2259 = vmatprep.subr.mxu0 0.0
        %2260 = vmatpush2.msra.mxu0 0.0
        %2261 = vmatprep.subr.mxu0 0.0
        %2262 = vmatpush2.msra.mxu0 0.0
        %2263 = vmatprep.subr.mxu0 0.0
        %2264 = vmatpush2.msra.mxu0 0.0
        %2265 = vmatprep.subr.mxu0 0.0
        %2266 = vmatpush2.msra.mxu0 0.0
        %2267 = vmatprep.mubr.f32.mxu0 0.0
        %2268 = vmatmul.mubr.f32.gmra.mxu0 %v626
        %v2269 = vpop.f32.mrf.mxu0
        %v2270 = vadd.f32 0.0, %v2269
        %v2271 = vpop.f32.mrf.mxu0
        %2272 = vdwg.mxu0
        %v2273 = vadd.f32 %v2191, %v2270
        %2274 = vrot.lane.b32.xlu0 %v2200, 120
        %v2275 = vpop.permute.xlu0 %2274
        %v2276 = vsel %vm467, %v2275, 0
        %2278 = vmatprep.subr.mxu0 0.0
        %2279 = vmatpush1.msra.mxu0 0.0
        %2280 = vmatprep.subr.mxu0 0.0
        %2281 = vmatpush1.msra.mxu0 0.0
        %2282 = vmatprep.subr.mxu0 0.0
        %2283 = vmatpush1.msra.mxu0 0.0
        %2284 = vmatprep.subr.mxu0 0.0
        %2285 = vmatpush1.msra.mxu0 0.0
        %2286 = vmatprep.subr.mxu0 0.0
        %2287 = vmatpush1.msra.mxu0 0.0
        %2288 = vmatprep.subr.mxu0 0.0
        %2289 = vmatpush1.msra.mxu0 0.0
        %2290 = vmatprep.subr.mxu0 0.0
        %2291 = vmatpush1.msra.mxu0 0.0
        %2292 = vmatprep.subr.mxu0 0.0
        %2293 = vmatpush1.msra.mxu0 0.0
        %2294 = vmatprep.subr.mxu0 0.0
        %2295 = vmatpush1.msra.mxu0 0.0
        %2296 = vmatprep.subr.mxu0 0.0
        %2297 = vmatpush1.msra.mxu0 0.0
        %2298 = vmatprep.subr.mxu0 0.0
        %2299 = vmatpush1.msra.mxu0 0.0
        %2300 = vmatprep.subr.mxu0 0.0
        %2301 = vmatpush1.msra.mxu0 0.0
        %2302 = vmatprep.subr.mxu0 0.0
        %2303 = vmatpush1.msra.mxu0 0.0
        %2304 = vmatprep.subr.mxu0 0.0
        %2305 = vmatpush1.msra.mxu0 0.0
        %2306 = vmatprep.subr.mxu0 0.0
        %2307 = vmatpush1.msra.mxu0 0.0
        %2308 = vmatprep.subr.mxu0 0.0
        %2309 = vmatpush1.msra.mxu0 %v2276
        %2310 = vmatprep.subr.mxu0 0.0
        %2311 = vmatpush2.msra.mxu0 0.0
        %2312 = vmatprep.subr.mxu0 0.0
        %2313 = vmatpush2.msra.mxu0 0.0
        %2314 = vmatprep.subr.mxu0 0.0
        %2315 = vmatpush2.msra.mxu0 0.0
        %2316 = vmatprep.subr.mxu0 0.0
        %2317 = vmatpush2.msra.mxu0 0.0
        %2318 = vmatprep.subr.mxu0 0.0
        %2319 = vmatpush2.msra.mxu0 0.0
        %2320 = vmatprep.subr.mxu0 0.0
        %2321 = vmatpush2.msra.mxu0 0.0
        %2322 = vmatprep.subr.mxu0 0.0
        %2323 = vmatpush2.msra.mxu0 0.0
        %2324 = vmatprep.subr.mxu0 0.0
        %2325 = vmatpush2.msra.mxu0 0.0
        %2326 = vmatprep.subr.mxu0 0.0
        %2327 = vmatpush2.msra.mxu0 0.0
        %2328 = vmatprep.subr.mxu0 0.0
        %2329 = vmatpush2.msra.mxu0 0.0
        %2330 = vmatprep.subr.mxu0 0.0
        %2331 = vmatpush2.msra.mxu0 0.0
        %2332 = vmatprep.subr.mxu0 0.0
        %2333 = vmatpush2.msra.mxu0 0.0
        %2334 = vmatprep.subr.mxu0 0.0
        %2335 = vmatpush2.msra.mxu0 0.0
        %2336 = vmatprep.subr.mxu0 0.0
        %2337 = vmatpush2.msra.mxu0 0.0
        %2338 = vmatprep.subr.mxu0 0.0
        %2339 = vmatpush2.msra.mxu0 0.0
        %2340 = vmatprep.subr.mxu0 0.0
        %2341 = vmatpush2.msra.mxu0 0.0
        %2342 = vmatprep.mubr.f32.mxu0 0.0
        %2343 = vmatmul.mubr.f32.gmra.mxu0 %v704
        %v2344 = vpop.f32.mrf.mxu0
        %v2345 = vadd.f32 0.0, %v2344
        %v2346 = vpop.f32.mrf.mxu0
        %2347 = vdwg.mxu0
        %v2348 = vadd.f32 %v2273, %v2345
        %v2349 = vadd.f32 %v2348, %v782
        %2351 = vrot.lane.b32.xlu0 %v2349, 40
        %v2352 = vpop.permute.xlu0 %2351
        %vm2354 = vcmask 392512
        %2355 = vst.msk [vmem:[%s232] sm:$0xff] %vm2354, %v2352
        %v2356 = vrot.slane %v329, 6
        %v2357 = vrot.slane %v334, 5
        %v2358 = vsel %vm453, %v2357, %v2356
        %v2359 = vrot.slane %v339, 4
        %v2360 = vsel %vm456, %v2359, %v2358
        %v2361 = vrot.slane %v344, 3
        %v2362 = vsel %vm459, %v2361, %v2360
        %2363 = vrot.lane.b32.xlu0 %v2362, 120
        %v2364 = vpop.permute.xlu0 %2363
        %v2365 = vsel %vm467, %v2364, 0
        %2367 = vmatprep.subr.mxu0 0.0
        %2368 = vmatpush1.msra.mxu0 0.0
        %2369 = vmatprep.subr.mxu0 0.0
        %2370 = vmatpush1.msra.mxu0 0.0
        %2371 = vmatprep.subr.mxu0 0.0
        %2372 = vmatpush1.msra.mxu0 0.0
        %2373 = vmatprep.subr.mxu0 0.0
        %2374 = vmatpush1.msra.mxu0 0.0
        %2375 = vmatprep.subr.mxu0 0.0
        %2376 = vmatpush1.msra.mxu0 0.0
        %2377 = vmatprep.subr.mxu0 0.0
        %2378 = vmatpush1.msra.mxu0 0.0
        %2379 = vmatprep.subr.mxu0 0.0
        %2380 = vmatpush1.msra.mxu0 0.0
        %2381 = vmatprep.subr.mxu0 0.0
        %2382 = vmatpush1.msra.mxu0 0.0
        %2383 = vmatprep.subr.mxu0 0.0
        %2384 = vmatpush1.msra.mxu0 0.0
        %2385 = vmatprep.subr.mxu0 0.0
        %2386 = vmatpush1.msra.mxu0 0.0
        %2387 = vmatprep.subr.mxu0 0.0
        %2388 = vmatpush1.msra.mxu0 0.0
        %2389 = vmatprep.subr.mxu0 0.0
        %2390 = vmatpush1.msra.mxu0 0.0
        %2391 = vmatprep.subr.mxu0 0.0
        %2392 = vmatpush1.msra.mxu0 0.0
        %2393 = vmatprep.subr.mxu0 0.0
        %2394 = vmatpush1.msra.mxu0 0.0
        %2395 = vmatprep.subr.mxu0 0.0
        %2396 = vmatpush1.msra.mxu0 0.0
        %2397 = vmatprep.subr.mxu0 0.0
        %2398 = vmatpush1.msra.mxu0 %v2365
        %2399 = vmatprep.subr.mxu0 0.0
        %2400 = vmatpush2.msra.mxu0 0.0
        %2401 = vmatprep.subr.mxu0 0.0
        %2402 = vmatpush2.msra.mxu0 0.0
        %2403 = vmatprep.subr.mxu0 0.0
        %2404 = vmatpush2.msra.mxu0 0.0
        %2405 = vmatprep.subr.mxu0 0.0
        %2406 = vmatpush2.msra.mxu0 0.0
        %2407 = vmatprep.subr.mxu0 0.0
        %2408 = vmatpush2.msra.mxu0 0.0
        %2409 = vmatprep.subr.mxu0 0.0
        %2410 = vmatpush2.msra.mxu0 0.0
        %2411 = vmatprep.subr.mxu0 0.0
        %2412 = vmatpush2.msra.mxu0 0.0
        %2413 = vmatprep.subr.mxu0 0.0
        %2414 = vmatpush2.msra.mxu0 0.0
        %2415 = vmatprep.subr.mxu0 0.0
        %2416 = vmatpush2.msra.mxu0 0.0
        %2417 = vmatprep.subr.mxu0 0.0
        %2418 = vmatpush2.msra.mxu0 0.0
        %2419 = vmatprep.subr.mxu0 0.0
        %2420 = vmatpush2.msra.mxu0 0.0
        %2421 = vmatprep.subr.mxu0 0.0
        %2422 = vmatpush2.msra.mxu0 0.0
        %2423 = vmatprep.subr.mxu0 0.0
        %2424 = vmatpush2.msra.mxu0 0.0
        %2425 = vmatprep.subr.mxu0 0.0
        %2426 = vmatpush2.msra.mxu0 0.0
        %2427 = vmatprep.subr.mxu0 0.0
        %2428 = vmatpush2.msra.mxu0 0.0
        %2429 = vmatprep.subr.mxu0 0.0
        %2430 = vmatpush2.msra.mxu0 0.0
        %2431 = vmatprep.mubr.f32.mxu0 0.0
        %2432 = vmatmul.mubr.f32.gmra.mxu0 %v465
        %v2433 = vpop.f32.mrf.mxu0
        %v2434 = vadd.f32 0.0, %v2433
        %v2435 = vpop.f32.mrf.mxu0
        %2436 = vdwg.mxu0
        %v2437 = vsel %vm467, %v2362, 0
        %2439 = vmatprep.subr.mxu0 0.0
        %2440 = vmatpush1.msra.mxu0 0.0
        %2441 = vmatprep.subr.mxu0 0.0
        %2442 = vmatpush1.msra.mxu0 0.0
        %2443 = vmatprep.subr.mxu0 0.0
        %2444 = vmatpush1.msra.mxu0 0.0
        %2445 = vmatprep.subr.mxu0 0.0
        %2446 = vmatpush1.msra.mxu0 0.0
        %2447 = vmatprep.subr.mxu0 0.0
        %2448 = vmatpush1.msra.mxu0 0.0
        %2449 = vmatprep.subr.mxu0 0.0
        %2450 = vmatpush1.msra.mxu0 0.0
        %2451 = vmatprep.subr.mxu0 0.0
        %2452 = vmatpush1.msra.mxu0 0.0
        %2453 = vmatprep.subr.mxu0 0.0
        %2454 = vmatpush1.msra.mxu0 0.0
        %2455 = vmatprep.subr.mxu0 0.0
        %2456 = vmatpush1.msra.mxu0 0.0
        %2457 = vmatprep.subr.mxu0 0.0
        %2458 = vmatpush1.msra.mxu0 0.0
        %2459 = vmatprep.subr.mxu0 0.0
        %2460 = vmatpush1.msra.mxu0 0.0
        %2461 = vmatprep.subr.mxu0 0.0
        %2462 = vmatpush1.msra.mxu0 0.0
        %2463 = vmatprep.subr.mxu0 0.0
        %2464 = vmatpush1.msra.mxu0 0.0
        %2465 = vmatprep.subr.mxu0 0.0
        %2466 = vmatpush1.msra.mxu0 0.0
        %2467 = vmatprep.subr.mxu0 0.0
        %2468 = vmatpush1.msra.mxu0 0.0
        %2469 = vmatprep.subr.mxu0 0.0
        %2470 = vmatpush1.msra.mxu0 %v2437
        %2471 = vmatprep.subr.mxu0 0.0
        %2472 = vmatpush2.msra.mxu0 0.0
        %2473 = vmatprep.subr.mxu0 0.0
        %2474 = vmatpush2.msra.mxu0 0.0
        %2475 = vmatprep.subr.mxu0 0.0
        %2476 = vmatpush2.msra.mxu0 0.0
        %2477 = vmatprep.subr.mxu0 0.0
        %2478 = vmatpush2.msra.mxu0 0.0
        %2479 = vmatprep.subr.mxu0 0.0
        %2480 = vmatpush2.msra.mxu0 0.0
        %2481 = vmatprep.subr.mxu0 0.0
        %2482 = vmatpush2.msra.mxu0 0.0
        %2483 = vmatprep.subr.mxu0 0.0
        %2484 = vmatpush2.msra.mxu0 0.0
        %2485 = vmatprep.subr.mxu0 0.0
        %2486 = vmatpush2.msra.mxu0 0.0
        %2487 = vmatprep.subr.mxu0 0.0
        %2488 = vmatpush2.msra.mxu0 0.0
        %2489 = vmatprep.subr.mxu0 0.0
        %2490 = vmatpush2.msra.mxu0 0.0
        %2491 = vmatprep.subr.mxu0 0.0
        %2492 = vmatpush2.msra.mxu0 0.0
        %2493 = vmatprep.subr.mxu0 0.0
        %2494 = vmatpush2.msra.mxu0 0.0
        %2495 = vmatprep.subr.mxu0 0.0
        %2496 = vmatpush2.msra.mxu0 0.0
        %2497 = vmatprep.subr.mxu0 0.0
        %2498 = vmatpush2.msra.mxu0 0.0
        %2499 = vmatprep.subr.mxu0 0.0
        %2500 = vmatpush2.msra.mxu0 0.0
        %2501 = vmatprep.subr.mxu0 0.0
        %2502 = vmatpush2.msra.mxu0 0.0
        %2503 = vmatprep.mubr.f32.mxu0 0.0
        %2504 = vmatmul.mubr.f32.gmra.mxu0 %v541
        %v2505 = vpop.f32.mrf.mxu0
        %v2506 = vadd.f32 %v2434, %v2505
        %v2507 = vpop.f32.mrf.mxu0
        %2508 = vdwg.mxu0
        %v2509 = vrot.slane %v430, 6
        %v2510 = vrot.slane %v435, 5
        %v2511 = vsel %vm453, %v2510, %v2509
        %v2512 = vrot.slane %v440, 4
        %v2513 = vsel %vm456, %v2512, %v2511
        %v2514 = vrot.slane %v445, 3
        %v2515 = vsel %vm459, %v2514, %v2513
        %v2516 = vsel %vm467, %v2515, 0
        %2518 = vmatprep.subr.mxu0 0.0
        %2519 = vmatpush1.msra.mxu0 0.0
        %2520 = vmatprep.subr.mxu0 0.0
        %2521 = vmatpush1.msra.mxu0 0.0
        %2522 = vmatprep.subr.mxu0 0.0
        %2523 = vmatpush1.msra.mxu0 0.0
        %2524 = vmatprep.subr.mxu0 0.0
        %2525 = vmatpush1.msra.mxu0 0.0
        %2526 = vmatprep.subr.mxu0 0.0
        %2527 = vmatpush1.msra.mxu0 0.0
        %2528 = vmatprep.subr.mxu0 0.0
        %2529 = vmatpush1.msra.mxu0 0.0
        %2530 = vmatprep.subr.mxu0 0.0
        %2531 = vmatpush1.msra.mxu0 0.0
        %2532 = vmatprep.subr.mxu0 0.0
        %2533 = vmatpush1.msra.mxu0 0.0
        %2534 = vmatprep.subr.mxu0 0.0
        %2535 = vmatpush1.msra.mxu0 0.0
        %2536 = vmatprep.subr.mxu0 0.0
        %2537 = vmatpush1.msra.mxu0 0.0
        %2538 = vmatprep.subr.mxu0 0.0
        %2539 = vmatpush1.msra.mxu0 0.0
        %2540 = vmatprep.subr.mxu0 0.0
        %2541 = vmatpush1.msra.mxu0 0.0
        %2542 = vmatprep.subr.mxu0 0.0
        %2543 = vmatpush1.msra.mxu0 0.0
        %2544 = vmatprep.subr.mxu0 0.0
        %2545 = vmatpush1.msra.mxu0 0.0
        %2546 = vmatprep.subr.mxu0 0.0
        %2547 = vmatpush1.msra.mxu0 0.0
        %2548 = vmatprep.subr.mxu0 0.0
        %2549 = vmatpush1.msra.mxu0 %v2516
        %2550 = vmatprep.subr.mxu0 0.0
        %2551 = vmatpush2.msra.mxu0 0.0
        %2552 = vmatprep.subr.mxu0 0.0
        %2553 = vmatpush2.msra.mxu0 0.0
        %2554 = vmatprep.subr.mxu0 0.0
        %2555 = vmatpush2.msra.mxu0 0.0
        %2556 = vmatprep.subr.mxu0 0.0
        %2557 = vmatpush2.msra.mxu0 0.0
        %2558 = vmatprep.subr.mxu0 0.0
        %2559 = vmatpush2.msra.mxu0 0.0
        %2560 = vmatprep.subr.mxu0 0.0
        %2561 = vmatpush2.msra.mxu0 0.0
        %2562 = vmatprep.subr.mxu0 0.0
        %2563 = vmatpush2.msra.mxu0 0.0
        %2564 = vmatprep.subr.mxu0 0.0
        %2565 = vmatpush2.msra.mxu0 0.0
        %2566 = vmatprep.subr.mxu0 0.0
        %2567 = vmatpush2.msra.mxu0 0.0
        %2568 = vmatprep.subr.mxu0 0.0
        %2569 = vmatpush2.msra.mxu0 0.0
        %2570 = vmatprep.subr.mxu0 0.0
        %2571 = vmatpush2.msra.mxu0 0.0
        %2572 = vmatprep.subr.mxu0 0.0
        %2573 = vmatpush2.msra.mxu0 0.0
        %2574 = vmatprep.subr.mxu0 0.0
        %2575 = vmatpush2.msra.mxu0 0.0
        %2576 = vmatprep.subr.mxu0 0.0
        %2577 = vmatpush2.msra.mxu0 0.0
        %2578 = vmatprep.subr.mxu0 0.0
        %2579 = vmatpush2.msra.mxu0 0.0
        %2580 = vmatprep.subr.mxu0 0.0
        %2581 = vmatpush2.msra.mxu0 0.0
        %2582 = vmatprep.mubr.f32.mxu0 0.0
        %2583 = vmatmul.mubr.f32.gmra.mxu0 %v626
        %v2584 = vpop.f32.mrf.mxu0
        %v2585 = vadd.f32 0.0, %v2584
        %v2586 = vpop.f32.mrf.mxu0
        %2587 = vdwg.mxu0
        %v2588 = vadd.f32 %v2506, %v2585
        %2589 = vrot.lane.b32.xlu0 %v2515, 120
        %v2590 = vpop.permute.xlu0 %2589
        %v2591 = vsel %vm467, %v2590, 0
        %2593 = vmatprep.subr.mxu0 0.0
        %2594 = vmatpush1.msra.mxu0 0.0
        %2595 = vmatprep.subr.mxu0 0.0
        %2596 = vmatpush1.msra.mxu0 0.0
        %2597 = vmatprep.subr.mxu0 0.0
        %2598 = vmatpush1.msra.mxu0 0.0
        %2599 = vmatprep.subr.mxu0 0.0
        %2600 = vmatpush1.msra.mxu0 0.0
        %2601 = vmatprep.subr.mxu0 0.0
        %2602 = vmatpush1.msra.mxu0 0.0
        %2603 = vmatprep.subr.mxu0 0.0
        %2604 = vmatpush1.msra.mxu0 0.0
        %2605 = vmatprep.subr.mxu0 0.0
        %2606 = vmatpush1.msra.mxu0 0.0
        %2607 = vmatprep.subr.mxu0 0.0
        %2608 = vmatpush1.msra.mxu0 0.0
        %2609 = vmatprep.subr.mxu0 0.0
        %2610 = vmatpush1.msra.mxu0 0.0
        %2611 = vmatprep.subr.mxu0 0.0
        %2612 = vmatpush1.msra.mxu0 0.0
        %2613 = vmatprep.subr.mxu0 0.0
        %2614 = vmatpush1.msra.mxu0 0.0
        %2615 = vmatprep.subr.mxu0 0.0
        %2616 = vmatpush1.msra.mxu0 0.0
        %2617 = vmatprep.subr.mxu0 0.0
        %2618 = vmatpush1.msra.mxu0 0.0
        %2619 = vmatprep.subr.mxu0 0.0
        %2620 = vmatpush1.msra.mxu0 0.0
        %2621 = vmatprep.subr.mxu0 0.0
        %2622 = vmatpush1.msra.mxu0 0.0
        %2623 = vmatprep.subr.mxu0 0.0
        %2624 = vmatpush1.msra.mxu0 %v2591
        %2625 = vmatprep.subr.mxu0 0.0
        %2626 = vmatpush2.msra.mxu0 0.0
        %2627 = vmatprep.subr.mxu0 0.0
        %2628 = vmatpush2.msra.mxu0 0.0
        %2629 = vmatprep.subr.mxu0 0.0
        %2630 = vmatpush2.msra.mxu0 0.0
        %2631 = vmatprep.subr.mxu0 0.0
        %2632 = vmatpush2.msra.mxu0 0.0
        %2633 = vmatprep.subr.mxu0 0.0
        %2634 = vmatpush2.msra.mxu0 0.0
        %2635 = vmatprep.subr.mxu0 0.0
        %2636 = vmatpush2.msra.mxu0 0.0
        %2637 = vmatprep.subr.mxu0 0.0
        %2638 = vmatpush2.msra.mxu0 0.0
        %2639 = vmatprep.subr.mxu0 0.0
        %2640 = vmatpush2.msra.mxu0 0.0
        %2641 = vmatprep.subr.mxu0 0.0
        %2642 = vmatpush2.msra.mxu0 0.0
        %2643 = vmatprep.subr.mxu0 0.0
        %2644 = vmatpush2.msra.mxu0 0.0
        %2645 = vmatprep.subr.mxu0 0.0
        %2646 = vmatpush2.msra.mxu0 0.0
        %2647 = vmatprep.subr.mxu0 0.0
        %2648 = vmatpush2.msra.mxu0 0.0
        %2649 = vmatprep.subr.mxu0 0.0
        %2650 = vmatpush2.msra.mxu0 0.0
        %2651 = vmatprep.subr.mxu0 0.0
        %2652 = vmatpush2.msra.mxu0 0.0
        %2653 = vmatprep.subr.mxu0 0.0
        %2654 = vmatpush2.msra.mxu0 0.0
        %2655 = vmatprep.subr.mxu0 0.0
        %2656 = vmatpush2.msra.mxu0 0.0
        %2657 = vmatprep.mubr.f32.mxu0 0.0
        %2658 = vmatmul.mubr.f32.gmra.mxu0 %v704
        %v2659 = vpop.f32.mrf.mxu0
        %v2660 = vadd.f32 0.0, %v2659
        %v2661 = vpop.f32.mrf.mxu0
        %2662 = vdwg.mxu0
        %v2663 = vadd.f32 %v2588, %v2660
        %v2664 = vadd.f32 %v2663, %v782
        %2666 = vrot.lane.b32.xlu0 %v2664, 48
        %v2667 = vpop.permute.xlu0 %2666
        %vm2669 = vcmask 458112
        %2670 = vst.msk [vmem:[%s232] sm:$0xff] %vm2669, %v2667
        %v2671 = vrot.slane %v329, 7
        %v2672 = vrot.slane %v334, 6
        %v2673 = vsel %vm453, %v2672, %v2671
        %v2674 = vrot.slane %v339, 5
        %v2675 = vsel %vm456, %v2674, %v2673
        %v2676 = vrot.slane %v344, 4
        %v2677 = vsel %vm459, %v2676, %v2675
        %2678 = vrot.lane.b32.xlu0 %v2677, 120
        %v2679 = vpop.permute.xlu0 %2678
        %v2680 = vsel %vm467, %v2679, 0
        %2682 = vmatprep.subr.mxu0 0.0
        %2683 = vmatpush1.msra.mxu0 0.0
        %2684 = vmatprep.subr.mxu0 0.0
        %2685 = vmatpush1.msra.mxu0 0.0
        %2686 = vmatprep.subr.mxu0 0.0
        %2687 = vmatpush1.msra.mxu0 0.0
        %2688 = vmatprep.subr.mxu0 0.0
        %2689 = vmatpush1.msra.mxu0 0.0
        %2690 = vmatprep.subr.mxu0 0.0
        %2691 = vmatpush1.msra.mxu0 0.0
        %2692 = vmatprep.subr.mxu0 0.0
        %2693 = vmatpush1.msra.mxu0 0.0
        %2694 = vmatprep.subr.mxu0 0.0
        %2695 = vmatpush1.msra.mxu0 0.0
        %2696 = vmatprep.subr.mxu0 0.0
        %2697 = vmatpush1.msra.mxu0 0.0
        %2698 = vmatprep.subr.mxu0 0.0
        %2699 = vmatpush1.msra.mxu0 0.0
        %2700 = vmatprep.subr.mxu0 0.0
        %2701 = vmatpush1.msra.mxu0 0.0
        %2702 = vmatprep.subr.mxu0 0.0
        %2703 = vmatpush1.msra.mxu0 0.0
        %2704 = vmatprep.subr.mxu0 0.0
        %2705 = vmatpush1.msra.mxu0 0.0
        %2706 = vmatprep.subr.mxu0 0.0
        %2707 = vmatpush1.msra.mxu0 0.0
        %2708 = vmatprep.subr.mxu0 0.0
        %2709 = vmatpush1.msra.mxu0 0.0
        %2710 = vmatprep.subr.mxu0 0.0
        %2711 = vmatpush1.msra.mxu0 0.0
        %2712 = vmatprep.subr.mxu0 0.0
        %2713 = vmatpush1.msra.mxu0 %v2680
        %2714 = vmatprep.subr.mxu0 0.0
        %2715 = vmatpush2.msra.mxu0 0.0
        %2716 = vmatprep.subr.mxu0 0.0
        %2717 = vmatpush2.msra.mxu0 0.0
        %2718 = vmatprep.subr.mxu0 0.0
        %2719 = vmatpush2.msra.mxu0 0.0
        %2720 = vmatprep.subr.mxu0 0.0
        %2721 = vmatpush2.msra.mxu0 0.0
        %2722 = vmatprep.subr.mxu0 0.0
        %2723 = vmatpush2.msra.mxu0 0.0
        %2724 = vmatprep.subr.mxu0 0.0
        %2725 = vmatpush2.msra.mxu0 0.0
        %2726 = vmatprep.subr.mxu0 0.0
        %2727 = vmatpush2.msra.mxu0 0.0
        %2728 = vmatprep.subr.mxu0 0.0
        %2729 = vmatpush2.msra.mxu0 0.0
        %2730 = vmatprep.subr.mxu0 0.0
        %2731 = vmatpush2.msra.mxu0 0.0
        %2732 = vmatprep.subr.mxu0 0.0
        %2733 = vmatpush2.msra.mxu0 0.0
        %2734 = vmatprep.subr.mxu0 0.0
        %2735 = vmatpush2.msra.mxu0 0.0
        %2736 = vmatprep.subr.mxu0 0.0
        %2737 = vmatpush2.msra.mxu0 0.0
        %2738 = vmatprep.subr.mxu0 0.0
        %2739 = vmatpush2.msra.mxu0 0.0
        %2740 = vmatprep.subr.mxu0 0.0
        %2741 = vmatpush2.msra.mxu0 0.0
        %2742 = vmatprep.subr.mxu0 0.0
        %2743 = vmatpush2.msra.mxu0 0.0
        %2744 = vmatprep.subr.mxu0 0.0
        %2745 = vmatpush2.msra.mxu0 0.0
        %2746 = vmatprep.mubr.f32.mxu0 0.0
        %2747 = vmatmul.mubr.f32.gmra.mxu0 %v465
        %v2748 = vpop.f32.mrf.mxu0
        %v2749 = vadd.f32 0.0, %v2748
        %v2750 = vpop.f32.mrf.mxu0
        %2751 = vdwg.mxu0
        %v2752 = vsel %vm467, %v2677, 0
        %2754 = vmatprep.subr.mxu0 0.0
        %2755 = vmatpush1.msra.mxu0 0.0
        %2756 = vmatprep.subr.mxu0 0.0
        %2757 = vmatpush1.msra.mxu0 0.0
        %2758 = vmatprep.subr.mxu0 0.0
        %2759 = vmatpush1.msra.mxu0 0.0
        %2760 = vmatprep.subr.mxu0 0.0
        %2761 = vmatpush1.msra.mxu0 0.0
        %2762 = vmatprep.subr.mxu0 0.0
        %2763 = vmatpush1.msra.mxu0 0.0
        %2764 = vmatprep.subr.mxu0 0.0
        %2765 = vmatpush1.msra.mxu0 0.0
        %2766 = vmatprep.subr.mxu0 0.0
        %2767 = vmatpush1.msra.mxu0 0.0
        %2768 = vmatprep.subr.mxu0 0.0
        %2769 = vmatpush1.msra.mxu0 0.0
        %2770 = vmatprep.subr.mxu0 0.0
        %2771 = vmatpush1.msra.mxu0 0.0
        %2772 = vmatprep.subr.mxu0 0.0
        %2773 = vmatpush1.msra.mxu0 0.0
        %2774 = vmatprep.subr.mxu0 0.0
        %2775 = vmatpush1.msra.mxu0 0.0
        %2776 = vmatprep.subr.mxu0 0.0
        %2777 = vmatpush1.msra.mxu0 0.0
        %2778 = vmatprep.subr.mxu0 0.0
        %2779 = vmatpush1.msra.mxu0 0.0
        %2780 = vmatprep.subr.mxu0 0.0
        %2781 = vmatpush1.msra.mxu0 0.0
        %2782 = vmatprep.subr.mxu0 0.0
        %2783 = vmatpush1.msra.mxu0 0.0
        %2784 = vmatprep.subr.mxu0 0.0
        %2785 = vmatpush1.msra.mxu0 %v2752
        %2786 = vmatprep.subr.mxu0 0.0
        %2787 = vmatpush2.msra.mxu0 0.0
        %2788 = vmatprep.subr.mxu0 0.0
        %2789 = vmatpush2.msra.mxu0 0.0
        %2790 = vmatprep.subr.mxu0 0.0
        %2791 = vmatpush2.msra.mxu0 0.0
        %2792 = vmatprep.subr.mxu0 0.0
        %2793 = vmatpush2.msra.mxu0 0.0
        %2794 = vmatprep.subr.mxu0 0.0
        %2795 = vmatpush2.msra.mxu0 0.0
        %2796 = vmatprep.subr.mxu0 0.0
        %2797 = vmatpush2.msra.mxu0 0.0
        %2798 = vmatprep.subr.mxu0 0.0
        %2799 = vmatpush2.msra.mxu0 0.0
        %2800 = vmatprep.subr.mxu0 0.0
        %2801 = vmatpush2.msra.mxu0 0.0
        %2802 = vmatprep.subr.mxu0 0.0
        %2803 = vmatpush2.msra.mxu0 0.0
        %2804 = vmatprep.subr.mxu0 0.0
        %2805 = vmatpush2.msra.mxu0 0.0
        %2806 = vmatprep.subr.mxu0 0.0
        %2807 = vmatpush2.msra.mxu0 0.0
        %2808 = vmatprep.subr.mxu0 0.0
        %2809 = vmatpush2.msra.mxu0 0.0
        %2810 = vmatprep.subr.mxu0 0.0
        %2811 = vmatpush2.msra.mxu0 0.0
        %2812 = vmatprep.subr.mxu0 0.0
        %2813 = vmatpush2.msra.mxu0 0.0
        %2814 = vmatprep.subr.mxu0 0.0
        %2815 = vmatpush2.msra.mxu0 0.0
        %2816 = vmatprep.subr.mxu0 0.0
        %2817 = vmatpush2.msra.mxu0 0.0
        %2818 = vmatprep.mubr.f32.mxu0 0.0
        %2819 = vmatmul.mubr.f32.gmra.mxu0 %v541
        %v2820 = vpop.f32.mrf.mxu0
        %v2821 = vadd.f32 %v2749, %v2820
        %v2822 = vpop.f32.mrf.mxu0
        %2823 = vdwg.mxu0
        %v2824 = vrot.slane %v430, 7
        %v2825 = vrot.slane %v435, 6
        %v2826 = vsel %vm453, %v2825, %v2824
        %v2827 = vrot.slane %v440, 5
        %v2828 = vsel %vm456, %v2827, %v2826
        %v2829 = vrot.slane %v445, 4
        %v2830 = vsel %vm459, %v2829, %v2828
        %v2831 = vsel %vm467, %v2830, 0
        %2833 = vmatprep.subr.mxu0 0.0
        %2834 = vmatpush1.msra.mxu0 0.0
        %2835 = vmatprep.subr.mxu0 0.0
        %2836 = vmatpush1.msra.mxu0 0.0
        %2837 = vmatprep.subr.mxu0 0.0
        %2838 = vmatpush1.msra.mxu0 0.0
        %2839 = vmatprep.subr.mxu0 0.0
        %2840 = vmatpush1.msra.mxu0 0.0
        %2841 = vmatprep.subr.mxu0 0.0
        %2842 = vmatpush1.msra.mxu0 0.0
        %2843 = vmatprep.subr.mxu0 0.0
        %2844 = vmatpush1.msra.mxu0 0.0
        %2845 = vmatprep.subr.mxu0 0.0
        %2846 = vmatpush1.msra.mxu0 0.0
        %2847 = vmatprep.subr.mxu0 0.0
        %2848 = vmatpush1.msra.mxu0 0.0
        %2849 = vmatprep.subr.mxu0 0.0
        %2850 = vmatpush1.msra.mxu0 0.0
        %2851 = vmatprep.subr.mxu0 0.0
        %2852 = vmatpush1.msra.mxu0 0.0
        %2853 = vmatprep.subr.mxu0 0.0
        %2854 = vmatpush1.msra.mxu0 0.0
        %2855 = vmatprep.subr.mxu0 0.0
        %2856 = vmatpush1.msra.mxu0 0.0
        %2857 = vmatprep.subr.mxu0 0.0
        %2858 = vmatpush1.msra.mxu0 0.0
        %2859 = vmatprep.subr.mxu0 0.0
        %2860 = vmatpush1.msra.mxu0 0.0
        %2861 = vmatprep.subr.mxu0 0.0
        %2862 = vmatpush1.msra.mxu0 0.0
        %2863 = vmatprep.subr.mxu0 0.0
        %2864 = vmatpush1.msra.mxu0 %v2831
        %2865 = vmatprep.subr.mxu0 0.0
        %2866 = vmatpush2.msra.mxu0 0.0
        %2867 = vmatprep.subr.mxu0 0.0
        %2868 = vmatpush2.msra.mxu0 0.0
        %2869 = vmatprep.subr.mxu0 0.0
        %2870 = vmatpush2.msra.mxu0 0.0
        %2871 = vmatprep.subr.mxu0 0.0
        %2872 = vmatpush2.msra.mxu0 0.0
        %2873 = vmatprep.subr.mxu0 0.0
        %2874 = vmatpush2.msra.mxu0 0.0
        %2875 = vmatprep.subr.mxu0 0.0
        %2876 = vmatpush2.msra.mxu0 0.0
        %2877 = vmatprep.subr.mxu0 0.0
        %2878 = vmatpush2.msra.mxu0 0.0
        %2879 = vmatprep.subr.mxu0 0.0
        %2880 = vmatpush2.msra.mxu0 0.0
        %2881 = vmatprep.subr.mxu0 0.0
        %2882 = vmatpush2.msra.mxu0 0.0
        %2883 = vmatprep.subr.mxu0 0.0
        %2884 = vmatpush2.msra.mxu0 0.0
        %2885 = vmatprep.subr.mxu0 0.0
        %2886 = vmatpush2.msra.mxu0 0.0
        %2887 = vmatprep.subr.mxu0 0.0
        %2888 = vmatpush2.msra.mxu0 0.0
        %2889 = vmatprep.subr.mxu0 0.0
        %2890 = vmatpush2.msra.mxu0 0.0
        %2891 = vmatprep.subr.mxu0 0.0
        %2892 = vmatpush2.msra.mxu0 0.0
        %2893 = vmatprep.subr.mxu0 0.0
        %2894 = vmatpush2.msra.mxu0 0.0
        %2895 = vmatprep.subr.mxu0 0.0
        %2896 = vmatpush2.msra.mxu0 0.0
        %2897 = vmatprep.mubr.f32.mxu0 0.0
        %2898 = vmatmul.mubr.f32.gmra.mxu0 %v626
        %v2899 = vpop.f32.mrf.mxu0
        %v2900 = vadd.f32 0.0, %v2899
        %v2901 = vpop.f32.mrf.mxu0
        %2902 = vdwg.mxu0
        %v2903 = vadd.f32 %v2821, %v2900
        %2904 = vrot.lane.b32.xlu0 %v2830, 120
        %v2905 = vpop.permute.xlu0 %2904
        %v2906 = vsel %vm467, %v2905, 0
        %2908 = vmatprep.subr.mxu0 0.0
        %2909 = vmatpush1.msra.mxu0 0.0
        %2910 = vmatprep.subr.mxu0 0.0
        %2911 = vmatpush1.msra.mxu0 0.0
        %2912 = vmatprep.subr.mxu0 0.0
        %2913 = vmatpush1.msra.mxu0 0.0
        %2914 = vmatprep.subr.mxu0 0.0
        %2915 = vmatpush1.msra.mxu0 0.0
        %2916 = vmatprep.subr.mxu0 0.0
        %2917 = vmatpush1.msra.mxu0 0.0
        %2918 = vmatprep.subr.mxu0 0.0
        %2919 = vmatpush1.msra.mxu0 0.0
        %2920 = vmatprep.subr.mxu0 0.0
        %2921 = vmatpush1.msra.mxu0 0.0
        %2922 = vmatprep.subr.mxu0 0.0
        %2923 = vmatpush1.msra.mxu0 0.0
        %2924 = vmatprep.subr.mxu0 0.0
        %2925 = vmatpush1.msra.mxu0 0.0
        %2926 = vmatprep.subr.mxu0 0.0
        %2927 = vmatpush1.msra.mxu0 0.0
        %2928 = vmatprep.subr.mxu0 0.0
        %2929 = vmatpush1.msra.mxu0 0.0
        %2930 = vmatprep.subr.mxu0 0.0
        %2931 = vmatpush1.msra.mxu0 0.0
        %2932 = vmatprep.subr.mxu0 0.0
        %2933 = vmatpush1.msra.mxu0 0.0
        %2934 = vmatprep.subr.mxu0 0.0
        %2935 = vmatpush1.msra.mxu0 0.0
        %2936 = vmatprep.subr.mxu0 0.0
        %2937 = vmatpush1.msra.mxu0 0.0
        %2938 = vmatprep.subr.mxu0 0.0
        %2939 = vmatpush1.msra.mxu0 %v2906
        %2940 = vmatprep.subr.mxu0 0.0
        %2941 = vmatpush2.msra.mxu0 0.0
        %2942 = vmatprep.subr.mxu0 0.0
        %2943 = vmatpush2.msra.mxu0 0.0
        %2944 = vmatprep.subr.mxu0 0.0
        %2945 = vmatpush2.msra.mxu0 0.0
        %2946 = vmatprep.subr.mxu0 0.0
        %2947 = vmatpush2.msra.mxu0 0.0
        %2948 = vmatprep.subr.mxu0 0.0
        %2949 = vmatpush2.msra.mxu0 0.0
        %2950 = vmatprep.subr.mxu0 0.0
        %2951 = vmatpush2.msra.mxu0 0.0
        %2952 = vmatprep.subr.mxu0 0.0
        %2953 = vmatpush2.msra.mxu0 0.0
        %2954 = vmatprep.subr.mxu0 0.0
        %2955 = vmatpush2.msra.mxu0 0.0
        %2956 = vmatprep.subr.mxu0 0.0
        %2957 = vmatpush2.msra.mxu0 0.0
        %2958 = vmatprep.subr.mxu0 0.0
        %2959 = vmatpush2.msra.mxu0 0.0
        %2960 = vmatprep.subr.mxu0 0.0
        %2961 = vmatpush2.msra.mxu0 0.0
        %2962 = vmatprep.subr.mxu0 0.0
        %2963 = vmatpush2.msra.mxu0 0.0
        %2964 = vmatprep.subr.mxu0 0.0
        %2965 = vmatpush2.msra.mxu0 0.0
        %2966 = vmatprep.subr.mxu0 0.0
        %2967 = vmatpush2.msra.mxu0 0.0
        %2968 = vmatprep.subr.mxu0 0.0
        %2969 = vmatpush2.msra.mxu0 0.0
        %2970 = vmatprep.subr.mxu0 0.0
        %2971 = vmatpush2.msra.mxu0 0.0
        %2972 = vmatprep.mubr.f32.mxu0 0.0
        %2973 = vmatmul.mubr.f32.gmra.mxu0 %v704
        %v2974 = vpop.f32.mrf.mxu0
        %v2975 = vadd.f32 0.0, %v2974
        %v2976 = vpop.f32.mrf.mxu0
        %2977 = vdwg.mxu0
        %v2978 = vadd.f32 %v2903, %v2975
        %v2979 = vadd.f32 %v2978, %v782
        %2981 = vrot.lane.b32.xlu0 %v2979, 56
        %v2982 = vpop.permute.xlu0 %2981
        %vm2984 = vcmask 523712
        %2985 = vst.msk [vmem:[%s232] sm:$0xff] %vm2984, %v2982
        %s2986 = sand.u32 %s134, 1
        %s2987 = scalar_lea.sflag [#allocation4], %s2986
        %s2988 = sand.u32 %s134, 1
        %s2989 = smul.addr %s2988, 8
        %s2990 = scalar_lea.vmem [#allocation5], %s2989
        // Predicated region
        $region41: #{tpu_custom_call.1} parent=35 // pred_check
          %p2991 = pneg %p144
        $region42: #{tpu_custom_call.1} parent=35 // pred_check_branch
          %2993 = sbr.rel (%p2991) target = $region44
        $region43: #{tpu_custom_call.1} parent=35 // pred_region
          %s2995 = ssub.s32 128, 128
          %2996 = vsyncadd %s2987, %s2995
          %s2997 = sadd.s32 %s26, %s25
          %s2998 = smul.addr %s2997, 128
          %s2999 = scalar_lea.hbm %s4, %s2998
          %s3001 = sshll.u32 %s2990, 4
          %s3002 = int_to_ptr.vmem [resolvable:$true] %s3001
          %3004 = dma.vmem_to_hbm [thread:$0]  %s3002, 128, %s2999, %s2987
        $region44: #{tpu_custom_call.1} parent=35 // pred_fallthru
          _
      $region36: #{tpu_custom_call.1} parent=5 // pred_fallthru
        _
      %p3005 = scmp.le.s32.totalorder 2, %s16
      // Predicated region
      $region45: #{tpu_custom_call.1} parent=5 // pred_check
        %p3006 = pneg %p3005
      $region46: #{tpu_custom_call.1} parent=5 // pred_check_branch
        %3008 = sbr.rel (%p3006) target = $region48
      $region47: #{tpu_custom_call.1} parent=5 // pred_region
        %s3009 = ssub.s32 %s16, 2
        // Predicated region
        $region49: #{tpu_custom_call.1} parent=47 // pred_check
          %p3010 = pneg %p150
        $region50: #{tpu_custom_call.1} parent=47 // pred_check_branch
          %3012 = sbr.rel (%p3010) target = $region52
        $region51: #{tpu_custom_call.1} parent=47 // pred_region
          %s3013 = sand.u32 %s135, 1
          %s3014 = scalar_lea.sflag [#allocation4], %s3013
          %s3015 = sand.u32 %s135, 1
          %s3016 = smul.addr %s3015, 8
          %s3017 = scalar_lea.vmem [#allocation5], %s3016
          %3018 = dma.done %s3014, 128
        $region52: #{tpu_custom_call.1} parent=47 // pred_fallthru
          _
      $region48: #{tpu_custom_call.1} parent=5 // pred_fallthru
        _
    $region6: #{tpu_custom_call.1} parent=1 // loop_footer
      %s20 = sadd.s32 1, %s16
    $region7: #{tpu_custom_call.1} parent=1 // loop_footer_branch
      %15 = sbr.rel target = $region3
    $region8: #{tpu_custom_call.1} parent=1 // loop_exit
      _
    %3019 = vsyncpa [#allocation3], 1
    %s3020 = scalar_lea.sflag [#allocation3], 1
    %3021 = vsyncpa %s3020, 1
    %3022 = vsyncpa [#allocation4], 1
    %s3023 = scalar_lea.sflag [#allocation4], 1
    %3024 = vsyncpa %s3023, 1

</llo_original>
